<compile_context>
chip_gen: v7x
topology: tpu7x:2x2x1
jax: 0.10.0
libtpu: 0.0.40
codegen_flags: <defaults>
</compile_context>

<pallas_src>
import math
import jax
import jax.numpy as jnp
from jax.experimental import pallas as pl
from jax.experimental.pallas import tpu as pltpu

# small, forward-consistent sizes (emb_size, n_heads, mlp_ratio as in the
# module, just scaled down)
EMB = 32
DEPTH = 2
N_HEADS = 4
MLP_RATIO = 4.0
FF = int(EMB * MLP_RATIO)
SEQ = 8
BATCH = 2
EPS = 1e-5


def _layernorm(y, gamma, beta):
    mu = jnp.mean(y, axis=-1, keepdims=True)
    var = jnp.mean((y - mu) ** 2, axis=-1, keepdims=True)
    return (y - mu) * jax.lax.rsqrt(var + EPS) * gamma + beta


def make_encoder_kernel(depth, n_heads, batch, seq):
    def kernel(x_ref, wattn_ref, w1_ref, w2_ref, vecs_ref, b1_ref, out_ref):
        x = x_ref[...]                          # (N, E), rows b-major (N=B*S)
        N, E = x.shape
        B, S, H = batch, seq, n_heads
        Dh = E // H

        for d in range(depth):                  # static unroll over layers
            # packed per-layer vectors: bq(scaled), bk, bv, bo, g1, be1, b2, g2, be2
            vecs = vecs_ref[d]                  # (9, E)
            bq, bk, bv = vecs[0:1], vecs[1:2], vecs[2:3]
            bo, g1, be1 = vecs[3:4], vecs[4:5], vecs[5:6]
            b2, g2, be2 = vecs[6:7], vecs[7:8], vecs[8:9]

            # ---- fused full-E projections (lane-dense MXU results) ----
            # 1/sqrt(Dh) is folded into wattn[:,0] / bq wrapper-side.
            q = jnp.dot(x, wattn_ref[d, 0], preferred_element_type=jnp.float32) + bq
            k = jnp.dot(x, wattn_ref[d, 1], preferred_element_type=jnp.float32) + bk
            v = jnp.dot(x, wattn_ref[d, 2], preferred_element_type=jnp.float32) + bv

            # ---- per-head score / softmax / PV on static Dh-wide slices ----
            heads = []
            for h in range(H):                  # static; tiny VPU/EUP/XLU work
                lo, hi = h * Dh, (h + 1) * Dh
                q3 = q[:, lo:hi].reshape(B, S, Dh)
                k3 = k[:, lo:hi].reshape(B, S, Dh)
                v3 = v[:, lo:hi].reshape(B, S, Dh)
                s = jnp.einsum('bqd,bkd->bqk', q3, k3,
                               preferred_element_type=jnp.float32)
                s = s - jnp.max(s, axis=-1, keepdims=True)
                p = jnp.exp(s)
                p = p / jnp.sum(p, axis=-1, keepdims=True)   # exact reciprocal
                a = jnp.einsum('bqk,bkd->bqd', p, v3,
                               preferred_element_type=jnp.float32)
                heads.append(a.reshape(N, Dh))
            attn = jnp.concatenate(heads, axis=-1)           # (N, E)

            # single fused out-projection
            attn = jnp.dot(attn, wattn_ref[d, 3],
                           preferred_element_type=jnp.float32) + bo

            # residual + LayerNorm1  (dropout1 = identity)
            y = _layernorm(x + attn, g1, be1)

            # ---- feed-forward: linear2(relu(linear1(y))) ----
            h1 = jnp.maximum(
                jnp.dot(y, w1_ref[d], preferred_element_type=jnp.float32)
                + b1_ref[d], 0.0)
            h2 = jnp.dot(h1, w2_ref[d], preferred_element_type=jnp.float32) + b2

            # residual + LayerNorm2  (dropout2 = identity)
            x = _layernorm(y + h2, g2, be2)

        out_ref[...] = x

    return kernel


def transformer_encoder(x_sbe, params, n_heads=N_HEADS):
    """x_sbe: (S, B, E) — PyTorch batch_first=False convention."""
    S, B, E = x_sbe.shape
    depth = params['wqkv'].shape[0]
    F = params['w1'].shape[1]
    H = n_heads
    Dh = E // H
    N = B * S
    scale = 1.0 / math.sqrt(Dh)

    # ---- one-time wrapper-side layout plumbing (free, runs in XLA) ----
    wqkv = params['wqkv']                        # (depth, 3E, E)  (out, in)
    bqkv = params['bqkv']                        # (depth, 3E)
    wq = jnp.transpose(wqkv[:, :E, :], (0, 2, 1)) * scale   # fold 1/sqrt(Dh)
    wk = jnp.transpose(wqkv[:, E:2 * E, :], (0, 2, 1))
    wv = jnp.transpose(wqkv[:, 2 * E:, :], (0, 2, 1))
    wo = jnp.transpose(params['wo'], (0, 2, 1))
    wattn = jnp.stack([wq, wk, wv, wo], axis=1)  # (depth, 4, E, E)  (in, out)

    w1 = jnp.transpose(params['w1'], (0, 2, 1))  # (depth, E, F)
    w2 = jnp.transpose(params['w2'], (0, 2, 1))  # (depth, F, E)
    b1 = params['b1'].reshape(depth, 1, F)       # F=128 — already lane-dense

    # all E-wide per-layer vectors packed into one slab (fewer DMA descriptors)
    vecs = jnp.stack([
        bqkv[:, :E] * scale, bqkv[:, E:2 * E], bqkv[:, 2 * E:],
        params['bo'], params['g1'], params['be1'],
        params['b2'], params['g2'], params['be2'],
    ], axis=1)                                   # (depth, 9, E)

    # (S, B, E) -> (B*S, E), rows b-major
    x2 = jnp.transpose(x_sbe, (1, 0, 2)).astype(jnp.float32).reshape(N, E)

    args = (x2, wattn, w1, w2, vecs, b1)

    out2 = pl.pallas_call(
        make_encoder_kernel(depth, H, B, S),
        out_shape=jax.ShapeDtypeStruct((N, E), jnp.float32),
        in_specs=[pl.BlockSpec(memory_space=pltpu.MemorySpace.VMEM)
                  for _ in args],
        out_specs=pl.BlockSpec(memory_space=pltpu.MemorySpace.VMEM),
        input_output_aliases={0: 0},             # x2 is dead after the call
    )(*args)

    return jnp.transpose(out2.reshape(B, S, E), (1, 0, 2))


def ref_forward(x_sbe, params, n_heads=N_HEADS):
    """Pure-JAX reference mirroring PyTorch TransformerEncoderLayer (eval)."""
    x = jnp.transpose(x_sbe, (1, 0, 2)).astype(jnp.float32)
    B, S, E = x.shape
    depth = params['wqkv'].shape[0]
    Dh = E // n_heads
    for d in range(depth):
        x2 = x.reshape(B * S, E)
        qkv = x2 @ params['wqkv'][d].T + params['bqkv'][d]
        q = (qkv[:, :E] / math.sqrt(Dh)).reshape(B, S, n_heads, Dh)
        k = qkv[:, E:2 * E].reshape(B, S, n_heads, Dh)
        v = qkv[:, 2 * E:].reshape(B, S, n_heads, Dh)
        s = jnp.einsum('bqhd,bkhd->bhqk', q, k)
        p = jax.nn.softmax(s, axis=-1)
        a = jnp.einsum('bhqk,bkhd->bqhd', p, v).reshape(B * S, E)
        a = a @ params['wo'][d].T + params['bo'][d]
        y = x2 + a
        mu = y.mean(-1, keepdims=True)
        var = ((y - mu) ** 2).mean(-1, keepdims=True)
        y = (y - mu) / jnp.sqrt(var + EPS) * params['g1'][d] + params['be1'][d]
        h1 = jax.nn.relu(y @ params['w1'][d].T + params['b1'][d])
        h2 = h1 @ params['w2'][d].T + params['b2'][d]
        z = y + h2
        mu = z.mean(-1, keepdims=True)
        var = ((z - mu) ** 2).mean(-1, keepdims=True)
        z = (z - mu) / jnp.sqrt(var + EPS) * params['g2'][d] + params['be2'][d]
        x = z.reshape(B, S, E)
    return jnp.transpose(x, (1, 0, 2))


def init_params(key, depth=DEPTH, E=EMB, F=FF):
    ks = jax.random.split(key, 12)
    n = lambda k, shape, s: jax.random.normal(k, shape, jnp.float32) * s
    return dict(
        wqkv=n(ks[0], (depth, 3 * E, E), 0.06),
        bqkv=n(ks[1], (depth, 3 * E), 0.02),
        wo=n(ks[2], (depth, E, E), 0.06),
        bo=n(ks[3], (depth, E), 0.02),
        g1=1.0 + n(ks[4], (depth, E), 0.01),
        be1=n(ks[5], (depth, E), 0.01),
        w1=n(ks[6], (depth, F, E), 0.06),
        b1=n(ks[7], (depth, F), 0.02),
        w2=n(ks[8], (depth, E, F), 0.06),
        b2=n(ks[9], (depth, E), 0.02),
        g2=1.0 + n(ks[10], (depth, E), 0.01),
        be2=n(ks[11], (depth, E), 0.01),
    )


if __name__ == "__main__":
    key = jax.random.PRNGKey(0)
    kx, kp = jax.random.split(key)
    x = jax.random.normal(kx, (SEQ, BATCH, EMB), jnp.float32)  # (S, B, E)
    params = init_params(kp)

    fwd = jax.jit(transformer_encoder)
    out = jax.block_until_ready(fwd(x, params))

    ref = ref_forward(x, params)
    assert out.shape == (SEQ, BATCH, EMB)
    err = float(jnp.max(jnp.abs(out - ref)))
    if err < 2e-3:
        print("KERNEL_OK")
    else:
        print(f"MISMATCH max_abs_err={err}")
</pallas_src>

<mosaic_0001>
module attributes {stable_mosaic.version = 11 : i64} {
  func.func @kernel(%arg0: memref<16x32xf32, #tpu.memory_space<vmem>>, %arg1: memref<2x4x32x32xf32, #tpu.memory_space<vmem>>, %arg2: memref<2x32x128xf32, #tpu.memory_space<vmem>>, %arg3: memref<2x128x32xf32, #tpu.memory_space<vmem>>, %arg4: memref<2x9x32xf32, #tpu.memory_space<vmem>>, %arg5: memref<2x1x128xf32, #tpu.memory_space<vmem>>, %arg6: memref<16x32xf32, #tpu.memory_space<vmem>>) attributes {dimension_semantics = [], scalar_prefetch = 0 : i64, scratch_operands = 0 : i64, tpu.core_type = #tpu.core_type<tc>} {
    %c0 = arith.constant 0 : index
    %c0_0 = arith.constant 0 : index
    %0 = vector.load %arg0[%c0, %c0_0] : memref<16x32xf32, #tpu.memory_space<vmem>>, vector<16x32xf32>
    %c0_1 = arith.constant 0 : index
    %c0_2 = arith.constant 0 : index
    %c0_3 = arith.constant 0 : index
    %1 = vector.load %arg4[%c0_1, %c0_2, %c0_3] : memref<2x9x32xf32, #tpu.memory_space<vmem>>, vector<1x9x32xf32>
    %2 = vector.shape_cast %1 : vector<1x9x32xf32> to vector<9x32xf32>
    %3 = vector.extract_strided_slice %2 {offsets = [0, 0], sizes = [1, 32], strides = [1, 1]} : vector<9x32xf32> to vector<1x32xf32>
    %4 = vector.extract_strided_slice %2 {offsets = [1, 0], sizes = [1, 32], strides = [1, 1]} : vector<9x32xf32> to vector<1x32xf32>
    %5 = vector.extract_strided_slice %2 {offsets = [2, 0], sizes = [1, 32], strides = [1, 1]} : vector<9x32xf32> to vector<1x32xf32>
    %6 = vector.extract_strided_slice %2 {offsets = [3, 0], sizes = [1, 32], strides = [1, 1]} : vector<9x32xf32> to vector<1x32xf32>
    %7 = vector.extract_strided_slice %2 {offsets = [4, 0], sizes = [1, 32], strides = [1, 1]} : vector<9x32xf32> to vector<1x32xf32>
    %8 = vector.extract_strided_slice %2 {offsets = [5, 0], sizes = [1, 32], strides = [1, 1]} : vector<9x32xf32> to vector<1x32xf32>
    %9 = vector.extract_strided_slice %2 {offsets = [6, 0], sizes = [1, 32], strides = [1, 1]} : vector<9x32xf32> to vector<1x32xf32>
    %10 = vector.extract_strided_slice %2 {offsets = [7, 0], sizes = [1, 32], strides = [1, 1]} : vector<9x32xf32> to vector<1x32xf32>
    %11 = vector.extract_strided_slice %2 {offsets = [8, 0], sizes = [1, 32], strides = [1, 1]} : vector<9x32xf32> to vector<1x32xf32>
    %c0_4 = arith.constant 0 : index
    %c0_5 = arith.constant 0 : index
    %c0_6 = arith.constant 0 : index
    %c0_7 = arith.constant 0 : index
    %12 = vector.load %arg1[%c0_4, %c0_5, %c0_6, %c0_7] : memref<2x4x32x32xf32, #tpu.memory_space<vmem>>, vector<1x1x32x32xf32>
    %13 = vector.shape_cast %12 : vector<1x1x32x32xf32> to vector<32x32xf32>
    %cst = arith.constant dense<0.000000e+00> : vector<16x32xf32>
    %14 = tpu.matmul %0, %13, %cst {dimension_numbers = #tpu.dot_dimension_numbers<[1], [0], [0], [1], [0, 0, 1, 1], [], []>} : vector<16x32xf32>, vector<32x32xf32>, vector<16x32xf32> -> vector<16x32xf32>
    %15 = vector.broadcast %3 : vector<1x32xf32> to vector<16x32xf32>
    %16 = arith.addf %14, %15 : vector<16x32xf32>
    %c0_8 = arith.constant 0 : index
    %c1 = arith.constant 1 : index
    %c0_9 = arith.constant 0 : index
    %c0_10 = arith.constant 0 : index
    %17 = vector.load %arg1[%c0_8, %c1, %c0_9, %c0_10] : memref<2x4x32x32xf32, #tpu.memory_space<vmem>>, vector<1x1x32x32xf32>
    %18 = vector.shape_cast %17 : vector<1x1x32x32xf32> to vector<32x32xf32>
    %cst_11 = arith.constant dense<0.000000e+00> : vector<16x32xf32>
    %19 = tpu.matmul %0, %18, %cst_11 {dimension_numbers = #tpu.dot_dimension_numbers<[1], [0], [0], [1], [0, 0, 1, 1], [], []>} : vector<16x32xf32>, vector<32x32xf32>, vector<16x32xf32> -> vector<16x32xf32>
    %20 = vector.broadcast %4 : vector<1x32xf32> to vector<16x32xf32>
    %21 = arith.addf %19, %20 : vector<16x32xf32>
    %c0_12 = arith.constant 0 : index
    %c2 = arith.constant 2 : index
    %c0_13 = arith.constant 0 : index
    %c0_14 = arith.constant 0 : index
    %22 = vector.load %arg1[%c0_12, %c2, %c0_13, %c0_14] : memref<2x4x32x32xf32, #tpu.memory_space<vmem>>, vector<1x1x32x32xf32>
    %23 = vector.shape_cast %22 : vector<1x1x32x32xf32> to vector<32x32xf32>
    %cst_15 = arith.constant dense<0.000000e+00> : vector<16x32xf32>
    %24 = tpu.matmul %0, %23, %cst_15 {dimension_numbers = #tpu.dot_dimension_numbers<[1], [0], [0], [1], [0, 0, 1, 1], [], []>} : vector<16x32xf32>, vector<32x32xf32>, vector<16x32xf32> -> vector<16x32xf32>
    %25 = vector.broadcast %5 : vector<1x32xf32> to vector<16x32xf32>
    %26 = arith.addf %24, %25 : vector<16x32xf32>
    %27 = vector.extract_strided_slice %16 {offsets = [0, 0], sizes = [16, 8], strides = [1, 1]} : vector<16x32xf32> to vector<16x8xf32>
    %28 = vector.shape_cast %27 : vector<16x8xf32> to vector<2x8x8xf32>
    %29 = vector.extract_strided_slice %21 {offsets = [0, 0], sizes = [16, 8], strides = [1, 1]} : vector<16x32xf32> to vector<16x8xf32>
    %30 = vector.shape_cast %29 : vector<16x8xf32> to vector<2x8x8xf32>
    %31 = vector.extract_strided_slice %26 {offsets = [0, 0], sizes = [16, 8], strides = [1, 1]} : vector<16x32xf32> to vector<16x8xf32>
    %32 = vector.shape_cast %31 : vector<16x8xf32> to vector<2x8x8xf32>
    "tpu.trace_start"() <{level = 10 : i32, message = "bqd,bkd->bqk"}> : () -> ()
    %cst_16 = arith.constant dense<0.000000e+00> : vector<2x8x8xf32>
    %33 = tpu.matmul %28, %30, %cst_16 {dimension_numbers = #tpu.dot_dimension_numbers<[2], [2], [1], [1], [0, 0, 0, 1, 1, 1], [0], [0]>} : vector<2x8x8xf32>, vector<2x8x8xf32>, vector<2x8x8xf32> -> vector<2x8x8xf32>
    "tpu.trace_stop"() : () -> ()
    %cst_17 = arith.constant dense<0xFF800000> : vector<2x8xf32>
    %34 = vector.multi_reduction <maximumf>, %33, %cst_17 [2] : vector<2x8x8xf32> to vector<2x8xf32>
    %35 = vector.shape_cast %34 : vector<2x8xf32> to vector<2x8x1xf32>
    %36 = vector.broadcast %35 : vector<2x8x1xf32> to vector<2x8x8xf32>
    %37 = arith.subf %33, %36 : vector<2x8x8xf32>
    %38 = math.exp %37 : vector<2x8x8xf32>
    %cst_18 = arith.constant dense<0.000000e+00> : vector<2x8xf32>
    %39 = vector.multi_reduction <add>, %38, %cst_18 [2] : vector<2x8x8xf32> to vector<2x8xf32>
    %40 = vector.shape_cast %39 : vector<2x8xf32> to vector<2x8x1xf32>
    %41 = vector.broadcast %40 : vector<2x8x1xf32> to vector<2x8x8xf32>
    %42 = arith.divf %38, %41 : vector<2x8x8xf32>
    "tpu.trace_start"() <{level = 10 : i32, message = "bqk,bkd->bqd"}> : () -> ()
    %cst_19 = arith.constant dense<0.000000e+00> : vector<2x8x8xf32>
    %43 = tpu.matmul %42, %32, %cst_19 {dimension_numbers = #tpu.dot_dimension_numbers<[2], [1], [1], [2], [0, 0, 0, 1, 1, 2], [0], [0]>} : vector<2x8x8xf32>, vector<2x8x8xf32>, vector<2x8x8xf32> -> vector<2x8x8xf32>
    "tpu.trace_stop"() : () -> ()
    %44 = vector.shape_cast %43 : vector<2x8x8xf32> to vector<16x8xf32>
    %45 = vector.extract_strided_slice %16 {offsets = [0, 8], sizes = [16, 8], strides = [1, 1]} : vector<16x32xf32> to vector<16x8xf32>
    %46 = vector.shape_cast %45 : vector<16x8xf32> to vector<2x8x8xf32>
    %47 = vector.extract_strided_slice %21 {offsets = [0, 8], sizes = [16, 8], strides = [1, 1]} : vector<16x32xf32> to vector<16x8xf32>
    %48 = vector.shape_cast %47 : vector<16x8xf32> to vector<2x8x8xf32>
    %49 = vector.extract_strided_slice %26 {offsets = [0, 8], sizes = [16, 8], strides = [1, 1]} : vector<16x32xf32> to vector<16x8xf32>
    %50 = vector.shape_cast %49 : vector<16x8xf32> to vector<2x8x8xf32>
    "tpu.trace_start"() <{level = 10 : i32, message = "bqd,bkd->bqk"}> : () -> ()
    %cst_20 = arith.constant dense<0.000000e+00> : vector<2x8x8xf32>
    %51 = tpu.matmul %46, %48, %cst_20 {dimension_numbers = #tpu.dot_dimension_numbers<[2], [2], [1], [1], [0, 0, 0, 1, 1, 1], [0], [0]>} : vector<2x8x8xf32>, vector<2x8x8xf32>, vector<2x8x8xf32> -> vector<2x8x8xf32>
    "tpu.trace_stop"() : () -> ()
    %cst_21 = arith.constant dense<0xFF800000> : vector<2x8xf32>
    %52 = vector.multi_reduction <maximumf>, %51, %cst_21 [2] : vector<2x8x8xf32> to vector<2x8xf32>
    %53 = vector.shape_cast %52 : vector<2x8xf32> to vector<2x8x1xf32>
    %54 = vector.broadcast %53 : vector<2x8x1xf32> to vector<2x8x8xf32>
    %55 = arith.subf %51, %54 : vector<2x8x8xf32>
    %56 = math.exp %55 : vector<2x8x8xf32>
    %cst_22 = arith.constant dense<0.000000e+00> : vector<2x8xf32>
    %57 = vector.multi_reduction <add>, %56, %cst_22 [2] : vector<2x8x8xf32> to vector<2x8xf32>
    %58 = vector.shape_cast %57 : vector<2x8xf32> to vector<2x8x1xf32>
    %59 = vector.broadcast %58 : vector<2x8x1xf32> to vector<2x8x8xf32>
    %60 = arith.divf %56, %59 : vector<2x8x8xf32>
    "tpu.trace_start"() <{level = 10 : i32, message = "bqk,bkd->bqd"}> : () -> ()
    %cst_23 = arith.constant dense<0.000000e+00> : vector<2x8x8xf32>
    %61 = tpu.matmul %60, %50, %cst_23 {dimension_numbers = #tpu.dot_dimension_numbers<[2], [1], [1], [2], [0, 0, 0, 1, 1, 2], [0], [0]>} : vector<2x8x8xf32>, vector<2x8x8xf32>, vector<2x8x8xf32> -> vector<2x8x8xf32>
    "tpu.trace_stop"() : () -> ()
    %62 = vector.shape_cast %61 : vector<2x8x8xf32> to vector<16x8xf32>
    %63 = vector.extract_strided_slice %16 {offsets = [0, 16], sizes = [16, 8], strides = [1, 1]} : vector<16x32xf32> to vector<16x8xf32>
    %64 = vector.shape_cast %63 : vector<16x8xf32> to vector<2x8x8xf32>
    %65 = vector.extract_strided_slice %21 {offsets = [0, 16], sizes = [16, 8], strides = [1, 1]} : vector<16x32xf32> to vector<16x8xf32>
    %66 = vector.shape_cast %65 : vector<16x8xf32> to vector<2x8x8xf32>
    %67 = vector.extract_strided_slice %26 {offsets = [0, 16], sizes = [16, 8], strides = [1, 1]} : vector<16x32xf32> to vector<16x8xf32>
    %68 = vector.shape_cast %67 : vector<16x8xf32> to vector<2x8x8xf32>
    "tpu.trace_start"() <{level = 10 : i32, message = "bqd,bkd->bqk"}> : () -> ()
    %cst_24 = arith.constant dense<0.000000e+00> : vector<2x8x8xf32>
    %69 = tpu.matmul %64, %66, %cst_24 {dimension_numbers = #tpu.dot_dimension_numbers<[2], [2], [1], [1], [0, 0, 0, 1, 1, 1], [0], [0]>} : vector<2x8x8xf32>, vector<2x8x8xf32>, vector<2x8x8xf32> -> vector<2x8x8xf32>
    "tpu.trace_stop"() : () -> ()
    %cst_25 = arith.constant dense<0xFF800000> : vector<2x8xf32>
    %70 = vector.multi_reduction <maximumf>, %69, %cst_25 [2] : vector<2x8x8xf32> to vector<2x8xf32>
    %71 = vector.shape_cast %70 : vector<2x8xf32> to vector<2x8x1xf32>
    %72 = vector.broadcast %71 : vector<2x8x1xf32> to vector<2x8x8xf32>
    %73 = arith.subf %69, %72 : vector<2x8x8xf32>
    %74 = math.exp %73 : vector<2x8x8xf32>
    %cst_26 = arith.constant dense<0.000000e+00> : vector<2x8xf32>
    %75 = vector.multi_reduction <add>, %74, %cst_26 [2] : vector<2x8x8xf32> to vector<2x8xf32>
    %76 = vector.shape_cast %75 : vector<2x8xf32> to vector<2x8x1xf32>
    %77 = vector.broadcast %76 : vector<2x8x1xf32> to vector<2x8x8xf32>
    %78 = arith.divf %74, %77 : vector<2x8x8xf32>
    "tpu.trace_start"() <{level = 10 : i32, message = "bqk,bkd->bqd"}> : () -> ()
    %cst_27 = arith.constant dense<0.000000e+00> : vector<2x8x8xf32>
    %79 = tpu.matmul %78, %68, %cst_27 {dimension_numbers = #tpu.dot_dimension_numbers<[2], [1], [1], [2], [0, 0, 0, 1, 1, 2], [0], [0]>} : vector<2x8x8xf32>, vector<2x8x8xf32>, vector<2x8x8xf32> -> vector<2x8x8xf32>
    "tpu.trace_stop"() : () -> ()
    %80 = vector.shape_cast %79 : vector<2x8x8xf32> to vector<16x8xf32>
    %81 = vector.extract_strided_slice %16 {offsets = [0, 24], sizes = [16, 8], strides = [1, 1]} : vector<16x32xf32> to vector<16x8xf32>
    %82 = vector.shape_cast %81 : vector<16x8xf32> to vector<2x8x8xf32>
    %83 = vector.extract_strided_slice %21 {offsets = [0, 24], sizes = [16, 8], strides = [1, 1]} : vector<16x32xf32> to vector<16x8xf32>
    %84 = vector.shape_cast %83 : vector<16x8xf32> to vector<2x8x8xf32>
    %85 = vector.extract_strided_slice %26 {offsets = [0, 24], sizes = [16, 8], strides = [1, 1]} : vector<16x32xf32> to vector<16x8xf32>
    %86 = vector.shape_cast %85 : vector<16x8xf32> to vector<2x8x8xf32>
    "tpu.trace_start"() <{level = 10 : i32, message = "bqd,bkd->bqk"}> : () -> ()
    %cst_28 = arith.constant dense<0.000000e+00> : vector<2x8x8xf32>
    %87 = tpu.matmul %82, %84, %cst_28 {dimension_numbers = #tpu.dot_dimension_numbers<[2], [2], [1], [1], [0, 0, 0, 1, 1, 1], [0], [0]>} : vector<2x8x8xf32>, vector<2x8x8xf32>, vector<2x8x8xf32> -> vector<2x8x8xf32>
    "tpu.trace_stop"() : () -> ()
    %cst_29 = arith.constant dense<0xFF800000> : vector<2x8xf32>
    %88 = vector.multi_reduction <maximumf>, %87, %cst_29 [2] : vector<2x8x8xf32> to vector<2x8xf32>
    %89 = vector.shape_cast %88 : vector<2x8xf32> to vector<2x8x1xf32>
    %90 = vector.broadcast %89 : vector<2x8x1xf32> to vector<2x8x8xf32>
    %91 = arith.subf %87, %90 : vector<2x8x8xf32>
    %92 = math.exp %91 : vector<2x8x8xf32>
    %cst_30 = arith.constant dense<0.000000e+00> : vector<2x8xf32>
    %93 = vector.multi_reduction <add>, %92, %cst_30 [2] : vector<2x8x8xf32> to vector<2x8xf32>
    %94 = vector.shape_cast %93 : vector<2x8xf32> to vector<2x8x1xf32>
    %95 = vector.broadcast %94 : vector<2x8x1xf32> to vector<2x8x8xf32>
    %96 = arith.divf %92, %95 : vector<2x8x8xf32>
    "tpu.trace_start"() <{level = 10 : i32, message = "bqk,bkd->bqd"}> : () -> ()
    %cst_31 = arith.constant dense<0.000000e+00> : vector<2x8x8xf32>
    %97 = tpu.matmul %96, %86, %cst_31 {dimension_numbers = #tpu.dot_dimension_numbers<[2], [1], [1], [2], [0, 0, 0, 1, 1, 2], [0], [0]>} : vector<2x8x8xf32>, vector<2x8x8xf32>, vector<2x8x8xf32> -> vector<2x8x8xf32>
    "tpu.trace_stop"() : () -> ()
    %98 = vector.shape_cast %97 : vector<2x8x8xf32> to vector<16x8xf32>
    %99 = tpu.concatenate %44, %62, %80, %98 in 1 : vector<16x8xf32>, vector<16x8xf32>, vector<16x8xf32>, vector<16x8xf32> -> vector<16x32xf32>
    %c0_32 = arith.constant 0 : index
    %c3 = arith.constant 3 : index
    %c0_33 = arith.constant 0 : index
    %c0_34 = arith.constant 0 : index
    %100 = vector.load %arg1[%c0_32, %c3, %c0_33, %c0_34] : memref<2x4x32x32xf32, #tpu.memory_space<vmem>>, vector<1x1x32x32xf32>
    %101 = vector.shape_cast %100 : vector<1x1x32x32xf32> to vector<32x32xf32>
    %cst_35 = arith.constant dense<0.000000e+00> : vector<16x32xf32>
    %102 = tpu.matmul %99, %101, %cst_35 {dimension_numbers = #tpu.dot_dimension_numbers<[1], [0], [0], [1], [0, 0, 1, 1], [], []>} : vector<16x32xf32>, vector<32x32xf32>, vector<16x32xf32> -> vector<16x32xf32>
    %103 = vector.broadcast %6 : vector<1x32xf32> to vector<16x32xf32>
    %104 = arith.addf %102, %103 : vector<16x32xf32>
    %105 = arith.addf %0, %104 : vector<16x32xf32>
    %cst_36 = arith.constant dense<0.000000e+00> : vector<16xf32>
    %106 = vector.multi_reduction <add>, %105, %cst_36 [1] : vector<16x32xf32> to vector<16xf32>
    %107 = vector.shape_cast %106 : vector<16xf32> to vector<16x1xf32>
    %cst_37 = arith.constant 3.200000e+01 : f32
    %108 = vector.broadcast %cst_37 : f32 to vector<16x1xf32>
    %109 = arith.divf %107, %108 : vector<16x1xf32>
    %110 = vector.broadcast %109 : vector<16x1xf32> to vector<16x32xf32>
    %111 = arith.subf %105, %110 : vector<16x32xf32>
    %112 = arith.mulf %111, %111 : vector<16x32xf32>
    %cst_38 = arith.constant dense<0.000000e+00> : vector<16xf32>
    %113 = vector.multi_reduction <add>, %112, %cst_38 [1] : vector<16x32xf32> to vector<16xf32>
    %114 = vector.shape_cast %113 : vector<16xf32> to vector<16x1xf32>
    %cst_39 = arith.constant 3.200000e+01 : f32
    %115 = vector.broadcast %cst_39 : f32 to vector<16x1xf32>
    %116 = arith.divf %114, %115 : vector<16x1xf32>
    %117 = vector.broadcast %109 : vector<16x1xf32> to vector<16x32xf32>
    %118 = arith.subf %105, %117 : vector<16x32xf32>
    %cst_40 = arith.constant 9.99999974E-6 : f32
    %119 = vector.broadcast %cst_40 : f32 to vector<16x1xf32>
    %120 = arith.addf %116, %119 : vector<16x1xf32>
    %121 = math.rsqrt %120 : vector<16x1xf32>
    %122 = vector.broadcast %121 : vector<16x1xf32> to vector<16x32xf32>
    %123 = arith.mulf %118, %122 : vector<16x32xf32>
    %124 = vector.broadcast %7 : vector<1x32xf32> to vector<16x32xf32>
    %125 = arith.mulf %123, %124 : vector<16x32xf32>
    %126 = vector.broadcast %8 : vector<1x32xf32> to vector<16x32xf32>
    %127 = arith.addf %125, %126 : vector<16x32xf32>
    %c0_41 = arith.constant 0 : index
    %c0_42 = arith.constant 0 : index
    %c0_43 = arith.constant 0 : index
    %128 = vector.load %arg2[%c0_41, %c0_42, %c0_43] : memref<2x32x128xf32, #tpu.memory_space<vmem>>, vector<1x32x128xf32>
    %129 = vector.shape_cast %128 : vector<1x32x128xf32> to vector<32x128xf32>
    %cst_44 = arith.constant dense<0.000000e+00> : vector<16x128xf32>
    %130 = tpu.matmul %127, %129, %cst_44 {dimension_numbers = #tpu.dot_dimension_numbers<[1], [0], [0], [1], [0, 0, 1, 1], [], []>} : vector<16x32xf32>, vector<32x128xf32>, vector<16x128xf32> -> vector<16x128xf32>
    %c0_45 = arith.constant 0 : index
    %c0_46 = arith.constant 0 : index
    %c0_47 = arith.constant 0 : index
    %131 = vector.load %arg5[%c0_45, %c0_46, %c0_47] : memref<2x1x128xf32, #tpu.memory_space<vmem>>, vector<1x1x128xf32>
    %132 = vector.shape_cast %131 : vector<1x1x128xf32> to vector<1x128xf32>
    %133 = vector.broadcast %132 : vector<1x128xf32> to vector<16x128xf32>
    %134 = arith.addf %130, %133 : vector<16x128xf32>
    %cst_48 = arith.constant 0.000000e+00 : f32
    %135 = vector.broadcast %cst_48 : f32 to vector<16x128xf32>
    %136 = arith.maximumf %134, %135 : vector<16x128xf32>
    %c0_49 = arith.constant 0 : index
    %c0_50 = arith.constant 0 : index
    %c0_51 = arith.constant 0 : index
    %137 = vector.load %arg3[%c0_49, %c0_50, %c0_51] : memref<2x128x32xf32, #tpu.memory_space<vmem>>, vector<1x128x32xf32>
    %138 = vector.shape_cast %137 : vector<1x128x32xf32> to vector<128x32xf32>
    %cst_52 = arith.constant dense<0.000000e+00> : vector<16x32xf32>
    %139 = tpu.matmul %136, %138, %cst_52 {dimension_numbers = #tpu.dot_dimension_numbers<[1], [0], [0], [1], [0, 0, 1, 1], [], []>} : vector<16x128xf32>, vector<128x32xf32>, vector<16x32xf32> -> vector<16x32xf32>
    %140 = vector.broadcast %9 : vector<1x32xf32> to vector<16x32xf32>
    %141 = arith.addf %139, %140 : vector<16x32xf32>
    %142 = arith.addf %127, %141 : vector<16x32xf32>
    %cst_53 = arith.constant dense<0.000000e+00> : vector<16xf32>
    %143 = vector.multi_reduction <add>, %142, %cst_53 [1] : vector<16x32xf32> to vector<16xf32>
    %144 = vector.shape_cast %143 : vector<16xf32> to vector<16x1xf32>
    %cst_54 = arith.constant 3.200000e+01 : f32
    %145 = vector.broadcast %cst_54 : f32 to vector<16x1xf32>
    %146 = arith.divf %144, %145 : vector<16x1xf32>
    %147 = vector.broadcast %146 : vector<16x1xf32> to vector<16x32xf32>
    %148 = arith.subf %142, %147 : vector<16x32xf32>
    %149 = arith.mulf %148, %148 : vector<16x32xf32>
    %cst_55 = arith.constant dense<0.000000e+00> : vector<16xf32>
    %150 = vector.multi_reduction <add>, %149, %cst_55 [1] : vector<16x32xf32> to vector<16xf32>
    %151 = vector.shape_cast %150 : vector<16xf32> to vector<16x1xf32>
    %cst_56 = arith.constant 3.200000e+01 : f32
    %152 = vector.broadcast %cst_56 : f32 to vector<16x1xf32>
    %153 = arith.divf %151, %152 : vector<16x1xf32>
    %154 = vector.broadcast %146 : vector<16x1xf32> to vector<16x32xf32>
    %155 = arith.subf %142, %154 : vector<16x32xf32>
    %cst_57 = arith.constant 9.99999974E-6 : f32
    %156 = vector.broadcast %cst_57 : f32 to vector<16x1xf32>
    %157 = arith.addf %153, %156 : vector<16x1xf32>
    %158 = math.rsqrt %157 : vector<16x1xf32>
    %159 = vector.broadcast %158 : vector<16x1xf32> to vector<16x32xf32>
    %160 = arith.mulf %155, %159 : vector<16x32xf32>
    %161 = vector.broadcast %10 : vector<1x32xf32> to vector<16x32xf32>
    %162 = arith.mulf %160, %161 : vector<16x32xf32>
    %163 = vector.broadcast %11 : vector<1x32xf32> to vector<16x32xf32>
    %164 = arith.addf %162, %163 : vector<16x32xf32>
    %c1_58 = arith.constant 1 : index
    %c0_59 = arith.constant 0 : index
    %c0_60 = arith.constant 0 : index
    %165 = vector.load %arg4[%c1_58, %c0_59, %c0_60] : memref<2x9x32xf32, #tpu.memory_space<vmem>>, vector<1x9x32xf32>
    %166 = vector.shape_cast %165 : vector<1x9x32xf32> to vector<9x32xf32>
    %167 = vector.extract_strided_slice %166 {offsets = [0, 0], sizes = [1, 32], strides = [1, 1]} : vector<9x32xf32> to vector<1x32xf32>
    %168 = vector.extract_strided_slice %166 {offsets = [1, 0], sizes = [1, 32], strides = [1, 1]} : vector<9x32xf32> to vector<1x32xf32>
    %169 = vector.extract_strided_slice %166 {offsets = [2, 0], sizes = [1, 32], strides = [1, 1]} : vector<9x32xf32> to vector<1x32xf32>
    %170 = vector.extract_strided_slice %166 {offsets = [3, 0], sizes = [1, 32], strides = [1, 1]} : vector<9x32xf32> to vector<1x32xf32>
    %171 = vector.extract_strided_slice %166 {offsets = [4, 0], sizes = [1, 32], strides = [1, 1]} : vector<9x32xf32> to vector<1x32xf32>
    %172 = vector.extract_strided_slice %166 {offsets = [5, 0], sizes = [1, 32], strides = [1, 1]} : vector<9x32xf32> to vector<1x32xf32>
    %173 = vector.extract_strided_slice %166 {offsets = [6, 0], sizes = [1, 32], strides = [1, 1]} : vector<9x32xf32> to vector<1x32xf32>
    %174 = vector.extract_strided_slice %166 {offsets = [7, 0], sizes = [1, 32], strides = [1, 1]} : vector<9x32xf32> to vector<1x32xf32>
    %175 = vector.extract_strided_slice %166 {offsets = [8, 0], sizes = [1, 32], strides = [1, 1]} : vector<9x32xf32> to vector<1x32xf32>
    %c1_61 = arith.constant 1 : index
    %c0_62 = arith.constant 0 : index
    %c0_63 = arith.constant 0 : index
    %c0_64 = arith.constant 0 : index
    %176 = vector.load %arg1[%c1_61, %c0_62, %c0_63, %c0_64] : memref<2x4x32x32xf32, #tpu.memory_space<vmem>>, vector<1x1x32x32xf32>
    %177 = vector.shape_cast %176 : vector<1x1x32x32xf32> to vector<32x32xf32>
    %cst_65 = arith.constant dense<0.000000e+00> : vector<16x32xf32>
    %178 = tpu.matmul %164, %177, %cst_65 {dimension_numbers = #tpu.dot_dimension_numbers<[1], [0], [0], [1], [0, 0, 1, 1], [], []>} : vector<16x32xf32>, vector<32x32xf32>, vector<16x32xf32> -> vector<16x32xf32>
    %179 = vector.broadcast %167 : vector<1x32xf32> to vector<16x32xf32>
    %180 = arith.addf %178, %179 : vector<16x32xf32>
    %c1_66 = arith.constant 1 : index
    %c1_67 = arith.constant 1 : index
    %c0_68 = arith.constant 0 : index
    %c0_69 = arith.constant 0 : index
    %181 = vector.load %arg1[%c1_66, %c1_67, %c0_68, %c0_69] : memref<2x4x32x32xf32, #tpu.memory_space<vmem>>, vector<1x1x32x32xf32>
    %182 = vector.shape_cast %181 : vector<1x1x32x32xf32> to vector<32x32xf32>
    %cst_70 = arith.constant dense<0.000000e+00> : vector<16x32xf32>
    %183 = tpu.matmul %164, %182, %cst_70 {dimension_numbers = #tpu.dot_dimension_numbers<[1], [0], [0], [1], [0, 0, 1, 1], [], []>} : vector<16x32xf32>, vector<32x32xf32>, vector<16x32xf32> -> vector<16x32xf32>
    %184 = vector.broadcast %168 : vector<1x32xf32> to vector<16x32xf32>
    %185 = arith.addf %183, %184 : vector<16x32xf32>
    %c1_71 = arith.constant 1 : index
    %c2_72 = arith.constant 2 : index
    %c0_73 = arith.constant 0 : index
    %c0_74 = arith.constant 0 : index
    %186 = vector.load %arg1[%c1_71, %c2_72, %c0_73, %c0_74] : memref<2x4x32x32xf32, #tpu.memory_space<vmem>>, vector<1x1x32x32xf32>
    %187 = vector.shape_cast %186 : vector<1x1x32x32xf32> to vector<32x32xf32>
    %cst_75 = arith.constant dense<0.000000e+00> : vector<16x32xf32>
    %188 = tpu.matmul %164, %187, %cst_75 {dimension_numbers = #tpu.dot_dimension_numbers<[1], [0], [0], [1], [0, 0, 1, 1], [], []>} : vector<16x32xf32>, vector<32x32xf32>, vector<16x32xf32> -> vector<16x32xf32>
    %189 = vector.broadcast %169 : vector<1x32xf32> to vector<16x32xf32>
    %190 = arith.addf %188, %189 : vector<16x32xf32>
    %191 = vector.extract_strided_slice %180 {offsets = [0, 0], sizes = [16, 8], strides = [1, 1]} : vector<16x32xf32> to vector<16x8xf32>
    %192 = vector.shape_cast %191 : vector<16x8xf32> to vector<2x8x8xf32>
    %193 = vector.extract_strided_slice %185 {offsets = [0, 0], sizes = [16, 8], strides = [1, 1]} : vector<16x32xf32> to vector<16x8xf32>
    %194 = vector.shape_cast %193 : vector<16x8xf32> to vector<2x8x8xf32>
    %195 = vector.extract_strided_slice %190 {offsets = [0, 0], sizes = [16, 8], strides = [1, 1]} : vector<16x32xf32> to vector<16x8xf32>
    %196 = vector.shape_cast %195 : vector<16x8xf32> to vector<2x8x8xf32>
    "tpu.trace_start"() <{level = 10 : i32, message = "bqd,bkd->bqk"}> : () -> ()
    %cst_76 = arith.constant dense<0.000000e+00> : vector<2x8x8xf32>
    %197 = tpu.matmul %192, %194, %cst_76 {dimension_numbers = #tpu.dot_dimension_numbers<[2], [2], [1], [1], [0, 0, 0, 1, 1, 1], [0], [0]>} : vector<2x8x8xf32>, vector<2x8x8xf32>, vector<2x8x8xf32> -> vector<2x8x8xf32>
    "tpu.trace_stop"() : () -> ()
    %cst_77 = arith.constant dense<0xFF800000> : vector<2x8xf32>
    %198 = vector.multi_reduction <maximumf>, %197, %cst_77 [2] : vector<2x8x8xf32> to vector<2x8xf32>
    %199 = vector.shape_cast %198 : vector<2x8xf32> to vector<2x8x1xf32>
    %200 = vector.broadcast %199 : vector<2x8x1xf32> to vector<2x8x8xf32>
    %201 = arith.subf %197, %200 : vector<2x8x8xf32>
    %202 = math.exp %201 : vector<2x8x8xf32>
    %cst_78 = arith.constant dense<0.000000e+00> : vector<2x8xf32>
    %203 = vector.multi_reduction <add>, %202, %cst_78 [2] : vector<2x8x8xf32> to vector<2x8xf32>
    %204 = vector.shape_cast %203 : vector<2x8xf32> to vector<2x8x1xf32>
    %205 = vector.broadcast %204 : vector<2x8x1xf32> to vector<2x8x8xf32>
    %206 = arith.divf %202, %205 : vector<2x8x8xf32>
    "tpu.trace_start"() <{level = 10 : i32, message = "bqk,bkd->bqd"}> : () -> ()
    %cst_79 = arith.constant dense<0.000000e+00> : vector<2x8x8xf32>
    %207 = tpu.matmul %206, %196, %cst_79 {dimension_numbers = #tpu.dot_dimension_numbers<[2], [1], [1], [2], [0, 0, 0, 1, 1, 2], [0], [0]>} : vector<2x8x8xf32>, vector<2x8x8xf32>, vector<2x8x8xf32> -> vector<2x8x8xf32>
    "tpu.trace_stop"() : () -> ()
    %208 = vector.shape_cast %207 : vector<2x8x8xf32> to vector<16x8xf32>
    %209 = vector.extract_strided_slice %180 {offsets = [0, 8], sizes = [16, 8], strides = [1, 1]} : vector<16x32xf32> to vector<16x8xf32>
    %210 = vector.shape_cast %209 : vector<16x8xf32> to vector<2x8x8xf32>
    %211 = vector.extract_strided_slice %185 {offsets = [0, 8], sizes = [16, 8], strides = [1, 1]} : vector<16x32xf32> to vector<16x8xf32>
    %212 = vector.shape_cast %211 : vector<16x8xf32> to vector<2x8x8xf32>
    %213 = vector.extract_strided_slice %190 {offsets = [0, 8], sizes = [16, 8], strides = [1, 1]} : vector<16x32xf32> to vector<16x8xf32>
    %214 = vector.shape_cast %213 : vector<16x8xf32> to vector<2x8x8xf32>
    "tpu.trace_start"() <{level = 10 : i32, message = "bqd,bkd->bqk"}> : () -> ()
    %cst_80 = arith.constant dense<0.000000e+00> : vector<2x8x8xf32>
    %215 = tpu.matmul %210, %212, %cst_80 {dimension_numbers = #tpu.dot_dimension_numbers<[2], [2], [1], [1], [0, 0, 0, 1, 1, 1], [0], [0]>} : vector<2x8x8xf32>, vector<2x8x8xf32>, vector<2x8x8xf32> -> vector<2x8x8xf32>
    "tpu.trace_stop"() : () -> ()
    %cst_81 = arith.constant dense<0xFF800000> : vector<2x8xf32>
    %216 = vector.multi_reduction <maximumf>, %215, %cst_81 [2] : vector<2x8x8xf32> to vector<2x8xf32>
    %217 = vector.shape_cast %216 : vector<2x8xf32> to vector<2x8x1xf32>
    %218 = vector.broadcast %217 : vector<2x8x1xf32> to vector<2x8x8xf32>
    %219 = arith.subf %215, %218 : vector<2x8x8xf32>
    %220 = math.exp %219 : vector<2x8x8xf32>
    %cst_82 = arith.constant dense<0.000000e+00> : vector<2x8xf32>
    %221 = vector.multi_reduction <add>, %220, %cst_82 [2] : vector<2x8x8xf32> to vector<2x8xf32>
    %222 = vector.shape_cast %221 : vector<2x8xf32> to vector<2x8x1xf32>
    %223 = vector.broadcast %222 : vector<2x8x1xf32> to vector<2x8x8xf32>
    %224 = arith.divf %220, %223 : vector<2x8x8xf32>
    "tpu.trace_start"() <{level = 10 : i32, message = "bqk,bkd->bqd"}> : () -> ()
    %cst_83 = arith.constant dense<0.000000e+00> : vector<2x8x8xf32>
    %225 = tpu.matmul %224, %214, %cst_83 {dimension_numbers = #tpu.dot_dimension_numbers<[2], [1], [1], [2], [0, 0, 0, 1, 1, 2], [0], [0]>} : vector<2x8x8xf32>, vector<2x8x8xf32>, vector<2x8x8xf32> -> vector<2x8x8xf32>
    "tpu.trace_stop"() : () -> ()
    %226 = vector.shape_cast %225 : vector<2x8x8xf32> to vector<16x8xf32>
    %227 = vector.extract_strided_slice %180 {offsets = [0, 16], sizes = [16, 8], strides = [1, 1]} : vector<16x32xf32> to vector<16x8xf32>
    %228 = vector.shape_cast %227 : vector<16x8xf32> to vector<2x8x8xf32>
    %229 = vector.extract_strided_slice %185 {offsets = [0, 16], sizes = [16, 8], strides = [1, 1]} : vector<16x32xf32> to vector<16x8xf32>
    %230 = vector.shape_cast %229 : vector<16x8xf32> to vector<2x8x8xf32>
    %231 = vector.extract_strided_slice %190 {offsets = [0, 16], sizes = [16, 8], strides = [1, 1]} : vector<16x32xf32> to vector<16x8xf32>
    %232 = vector.shape_cast %231 : vector<16x8xf32> to vector<2x8x8xf32>
    "tpu.trace_start"() <{level = 10 : i32, message = "bqd,bkd->bqk"}> : () -> ()
    %cst_84 = arith.constant dense<0.000000e+00> : vector<2x8x8xf32>
    %233 = tpu.matmul %228, %230, %cst_84 {dimension_numbers = #tpu.dot_dimension_numbers<[2], [2], [1], [1], [0, 0, 0, 1, 1, 1], [0], [0]>} : vector<2x8x8xf32>, vector<2x8x8xf32>, vector<2x8x8xf32> -> vector<2x8x8xf32>
    "tpu.trace_stop"() : () -> ()
    %cst_85 = arith.constant dense<0xFF800000> : vector<2x8xf32>
    %234 = vector.multi_reduction <maximumf>, %233, %cst_85 [2] : vector<2x8x8xf32> to vector<2x8xf32>
    %235 = vector.shape_cast %234 : vector<2x8xf32> to vector<2x8x1xf32>
    %236 = vector.broadcast %235 : vector<2x8x1xf32> to vector<2x8x8xf32>
    %237 = arith.subf %233, %236 : vector<2x8x8xf32>
    %238 = math.exp %237 : vector<2x8x8xf32>
    %cst_86 = arith.constant dense<0.000000e+00> : vector<2x8xf32>
    %239 = vector.multi_reduction <add>, %238, %cst_86 [2] : vector<2x8x8xf32> to vector<2x8xf32>
    %240 = vector.shape_cast %239 : vector<2x8xf32> to vector<2x8x1xf32>
    %241 = vector.broadcast %240 : vector<2x8x1xf32> to vector<2x8x8xf32>
    %242 = arith.divf %238, %241 : vector<2x8x8xf32>
    "tpu.trace_start"() <{level = 10 : i32, message = "bqk,bkd->bqd"}> : () -> ()
    %cst_87 = arith.constant dense<0.000000e+00> : vector<2x8x8xf32>
    %243 = tpu.matmul %242, %232, %cst_87 {dimension_numbers = #tpu.dot_dimension_numbers<[2], [1], [1], [2], [0, 0, 0, 1, 1, 2], [0], [0]>} : vector<2x8x8xf32>, vector<2x8x8xf32>, vector<2x8x8xf32> -> vector<2x8x8xf32>
    "tpu.trace_stop"() : () -> ()
    %244 = vector.shape_cast %243 : vector<2x8x8xf32> to vector<16x8xf32>
    %245 = vector.extract_strided_slice %180 {offsets = [0, 24], sizes = [16, 8], strides = [1, 1]} : vector<16x32xf32> to vector<16x8xf32>
    %246 = vector.shape_cast %245 : vector<16x8xf32> to vector<2x8x8xf32>
    %247 = vector.extract_strided_slice %185 {offsets = [0, 24], sizes = [16, 8], strides = [1, 1]} : vector<16x32xf32> to vector<16x8xf32>
    %248 = vector.shape_cast %247 : vector<16x8xf32> to vector<2x8x8xf32>
    %249 = vector.extract_strided_slice %190 {offsets = [0, 24], sizes = [16, 8], strides = [1, 1]} : vector<16x32xf32> to vector<16x8xf32>
    %250 = vector.shape_cast %249 : vector<16x8xf32> to vector<2x8x8xf32>
    "tpu.trace_start"() <{level = 10 : i32, message = "bqd,bkd->bqk"}> : () -> ()
    %cst_88 = arith.constant dense<0.000000e+00> : vector<2x8x8xf32>
    %251 = tpu.matmul %246, %248, %cst_88 {dimension_numbers = #tpu.dot_dimension_numbers<[2], [2], [1], [1], [0, 0, 0, 1, 1, 1], [0], [0]>} : vector<2x8x8xf32>, vector<2x8x8xf32>, vector<2x8x8xf32> -> vector<2x8x8xf32>
    "tpu.trace_stop"() : () -> ()
    %cst_89 = arith.constant dense<0xFF800000> : vector<2x8xf32>
    %252 = vector.multi_reduction <maximumf>, %251, %cst_89 [2] : vector<2x8x8xf32> to vector<2x8xf32>
    %253 = vector.shape_cast %252 : vector<2x8xf32> to vector<2x8x1xf32>
    %254 = vector.broadcast %253 : vector<2x8x1xf32> to vector<2x8x8xf32>
    %255 = arith.subf %251, %254 : vector<2x8x8xf32>
    %256 = math.exp %255 : vector<2x8x8xf32>
    %cst_90 = arith.constant dense<0.000000e+00> : vector<2x8xf32>
    %257 = vector.multi_reduction <add>, %256, %cst_90 [2] : vector<2x8x8xf32> to vector<2x8xf32>
    %258 = vector.shape_cast %257 : vector<2x8xf32> to vector<2x8x1xf32>
    %259 = vector.broadcast %258 : vector<2x8x1xf32> to vector<2x8x8xf32>
    %260 = arith.divf %256, %259 : vector<2x8x8xf32>
    "tpu.trace_start"() <{level = 10 : i32, message = "bqk,bkd->bqd"}> : () -> ()
    %cst_91 = arith.constant dense<0.000000e+00> : vector<2x8x8xf32>
    %261 = tpu.matmul %260, %250, %cst_91 {dimension_numbers = #tpu.dot_dimension_numbers<[2], [1], [1], [2], [0, 0, 0, 1, 1, 2], [0], [0]>} : vector<2x8x8xf32>, vector<2x8x8xf32>, vector<2x8x8xf32> -> vector<2x8x8xf32>
    "tpu.trace_stop"() : () -> ()
    %262 = vector.shape_cast %261 : vector<2x8x8xf32> to vector<16x8xf32>
    %263 = tpu.concatenate %208, %226, %244, %262 in 1 : vector<16x8xf32>, vector<16x8xf32>, vector<16x8xf32>, vector<16x8xf32> -> vector<16x32xf32>
    %c1_92 = arith.constant 1 : index
    %c3_93 = arith.constant 3 : index
    %c0_94 = arith.constant 0 : index
    %c0_95 = arith.constant 0 : index
    %264 = vector.load %arg1[%c1_92, %c3_93, %c0_94, %c0_95] : memref<2x4x32x32xf32, #tpu.memory_space<vmem>>, vector<1x1x32x32xf32>
    %265 = vector.shape_cast %264 : vector<1x1x32x32xf32> to vector<32x32xf32>
    %cst_96 = arith.constant dense<0.000000e+00> : vector<16x32xf32>
    %266 = tpu.matmul %263, %265, %cst_96 {dimension_numbers = #tpu.dot_dimension_numbers<[1], [0], [0], [1], [0, 0, 1, 1], [], []>} : vector<16x32xf32>, vector<32x32xf32>, vector<16x32xf32> -> vector<16x32xf32>
    %267 = vector.broadcast %170 : vector<1x32xf32> to vector<16x32xf32>
    %268 = arith.addf %266, %267 : vector<16x32xf32>
    %269 = arith.addf %164, %268 : vector<16x32xf32>
    %cst_97 = arith.constant dense<0.000000e+00> : vector<16xf32>
    %270 = vector.multi_reduction <add>, %269, %cst_97 [1] : vector<16x32xf32> to vector<16xf32>
    %271 = vector.shape_cast %270 : vector<16xf32> to vector<16x1xf32>
    %cst_98 = arith.constant 3.200000e+01 : f32
    %272 = vector.broadcast %cst_98 : f32 to vector<16x1xf32>
    %273 = arith.divf %271, %272 : vector<16x1xf32>
    %274 = vector.broadcast %273 : vector<16x1xf32> to vector<16x32xf32>
    %275 = arith.subf %269, %274 : vector<16x32xf32>
    %276 = arith.mulf %275, %275 : vector<16x32xf32>
    %cst_99 = arith.constant dense<0.000000e+00> : vector<16xf32>
    %277 = vector.multi_reduction <add>, %276, %cst_99 [1] : vector<16x32xf32> to vector<16xf32>
    %278 = vector.shape_cast %277 : vector<16xf32> to vector<16x1xf32>
    %cst_100 = arith.constant 3.200000e+01 : f32
    %279 = vector.broadcast %cst_100 : f32 to vector<16x1xf32>
    %280 = arith.divf %278, %279 : vector<16x1xf32>
    %281 = vector.broadcast %273 : vector<16x1xf32> to vector<16x32xf32>
    %282 = arith.subf %269, %281 : vector<16x32xf32>
    %cst_101 = arith.constant 9.99999974E-6 : f32
    %283 = vector.broadcast %cst_101 : f32 to vector<16x1xf32>
    %284 = arith.addf %280, %283 : vector<16x1xf32>
    %285 = math.rsqrt %284 : vector<16x1xf32>
    %286 = vector.broadcast %285 : vector<16x1xf32> to vector<16x32xf32>
    %287 = arith.mulf %282, %286 : vector<16x32xf32>
    %288 = vector.broadcast %171 : vector<1x32xf32> to vector<16x32xf32>
    %289 = arith.mulf %287, %288 : vector<16x32xf32>
    %290 = vector.broadcast %172 : vector<1x32xf32> to vector<16x32xf32>
    %291 = arith.addf %289, %290 : vector<16x32xf32>
    %c1_102 = arith.constant 1 : index
    %c0_103 = arith.constant 0 : index
    %c0_104 = arith.constant 0 : index
    %292 = vector.load %arg2[%c1_102, %c0_103, %c0_104] : memref<2x32x128xf32, #tpu.memory_space<vmem>>, vector<1x32x128xf32>
    %293 = vector.shape_cast %292 : vector<1x32x128xf32> to vector<32x128xf32>
    %cst_105 = arith.constant dense<0.000000e+00> : vector<16x128xf32>
    %294 = tpu.matmul %291, %293, %cst_105 {dimension_numbers = #tpu.dot_dimension_numbers<[1], [0], [0], [1], [0, 0, 1, 1], [], []>} : vector<16x32xf32>, vector<32x128xf32>, vector<16x128xf32> -> vector<16x128xf32>
    %c1_106 = arith.constant 1 : index
    %c0_107 = arith.constant 0 : index
    %c0_108 = arith.constant 0 : index
    %295 = vector.load %arg5[%c1_106, %c0_107, %c0_108] : memref<2x1x128xf32, #tpu.memory_space<vmem>>, vector<1x1x128xf32>
    %296 = vector.shape_cast %295 : vector<1x1x128xf32> to vector<1x128xf32>
    %297 = vector.broadcast %296 : vector<1x128xf32> to vector<16x128xf32>
    %298 = arith.addf %294, %297 : vector<16x128xf32>
    %cst_109 = arith.constant 0.000000e+00 : f32
    %299 = vector.broadcast %cst_109 : f32 to vector<16x128xf32>
    %300 = arith.maximumf %298, %299 : vector<16x128xf32>
    %c1_110 = arith.constant 1 : index
    %c0_111 = arith.constant 0 : index
    %c0_112 = arith.constant 0 : index
    %301 = vector.load %arg3[%c1_110, %c0_111, %c0_112] : memref<2x128x32xf32, #tpu.memory_space<vmem>>, vector<1x128x32xf32>
    %302 = vector.shape_cast %301 : vector<1x128x32xf32> to vector<128x32xf32>
    %cst_113 = arith.constant dense<0.000000e+00> : vector<16x32xf32>
    %303 = tpu.matmul %300, %302, %cst_113 {dimension_numbers = #tpu.dot_dimension_numbers<[1], [0], [0], [1], [0, 0, 1, 1], [], []>} : vector<16x128xf32>, vector<128x32xf32>, vector<16x32xf32> -> vector<16x32xf32>
    %304 = vector.broadcast %173 : vector<1x32xf32> to vector<16x32xf32>
    %305 = arith.addf %303, %304 : vector<16x32xf32>
    %306 = arith.addf %291, %305 : vector<16x32xf32>
    %cst_114 = arith.constant dense<0.000000e+00> : vector<16xf32>
    %307 = vector.multi_reduction <add>, %306, %cst_114 [1] : vector<16x32xf32> to vector<16xf32>
    %308 = vector.shape_cast %307 : vector<16xf32> to vector<16x1xf32>
    %cst_115 = arith.constant 3.200000e+01 : f32
    %309 = vector.broadcast %cst_115 : f32 to vector<16x1xf32>
    %310 = arith.divf %308, %309 : vector<16x1xf32>
    %311 = vector.broadcast %310 : vector<16x1xf32> to vector<16x32xf32>
    %312 = arith.subf %306, %311 : vector<16x32xf32>
    %313 = arith.mulf %312, %312 : vector<16x32xf32>
    %cst_116 = arith.constant dense<0.000000e+00> : vector<16xf32>
    %314 = vector.multi_reduction <add>, %313, %cst_116 [1] : vector<16x32xf32> to vector<16xf32>
    %315 = vector.shape_cast %314 : vector<16xf32> to vector<16x1xf32>
    %cst_117 = arith.constant 3.200000e+01 : f32
    %316 = vector.broadcast %cst_117 : f32 to vector<16x1xf32>
    %317 = arith.divf %315, %316 : vector<16x1xf32>
    %318 = vector.broadcast %310 : vector<16x1xf32> to vector<16x32xf32>
    %319 = arith.subf %306, %318 : vector<16x32xf32>
    %cst_118 = arith.constant 9.99999974E-6 : f32
    %320 = vector.broadcast %cst_118 : f32 to vector<16x1xf32>
    %321 = arith.addf %317, %320 : vector<16x1xf32>
    %322 = math.rsqrt %321 : vector<16x1xf32>
    %323 = vector.broadcast %322 : vector<16x1xf32> to vector<16x32xf32>
    %324 = arith.mulf %319, %323 : vector<16x32xf32>
    %325 = vector.broadcast %174 : vector<1x32xf32> to vector<16x32xf32>
    %326 = arith.mulf %324, %325 : vector<16x32xf32>
    %327 = vector.broadcast %175 : vector<1x32xf32> to vector<16x32xf32>
    %328 = arith.addf %326, %327 : vector<16x32xf32>
    %c0_119 = arith.constant 0 : index
    %c0_120 = arith.constant 0 : index
    %329 = vector.load %arg6[%c0_119, %c0_120] : memref<16x32xf32, #tpu.memory_space<vmem>>, vector<16x32xf32>
    tpu.vector_store %arg6[%c0_119, %c0_120], %328 {strides = array<i32>} : memref<16x32xf32, #tpu.memory_space<vmem>>, vector<16x32xf32>,
    return
  }
}

</mosaic_0001>

<llo_original>
// kernel: transformer_encoder.1
$region0: #{transformer_encoder.1}
  #allocation0 [shape = 'u32[]', space=smem, size = 0x4, offset = 0x4, fixed_abs, tag = 'smem constant byte address 0x4 - core index']
  #allocation1 [shape = 'u32[144,128]{1,0:T(1,128)}', space=vmem, size = 0x12000, scoped, tag = 'internal scratch']
  %s0 = inlined_call_operand.vmem [shape: f32[16,32], index: 0, kind: input, shape index: {}, may-alias: {0,6}]
  %s1 = inlined_call_operand.vmem [shape: f32[2,4,32,32], index: 1, kind: input, shape index: {}]
  %s2 = inlined_call_operand.vmem [shape: f32[2,32,128], index: 2, kind: input, shape index: {}]
  %s3 = inlined_call_operand.vmem [shape: f32[2,128,32], index: 3, kind: input, shape index: {}]
  %s4 = inlined_call_operand.vmem [shape: f32[2,9,32], index: 4, kind: input, shape index: {}]
  %s5 = inlined_call_operand.vmem [shape: f32[2,1,128], index: 5, kind: input, shape index: {}]
  %s6 = inlined_call_operand.vmem [shape: f32[16,32], index: 6, kind: output, shape index: {}, may-alias: {0,6}]
  %s7 = sld [smem:[#allocation0]]
  $region34: #{transformer_encoder.1} parent=0
    _
  %s9 = ssub.s32 1, %s7
  %s10 = scalar_select 0, %s9, %s7
  // Predicated region
  $region2: #{transformer_encoder.1} parent=0 // pred_check
    _
  $region3: #{transformer_encoder.1} parent=0 // pred_check_branch
    %12 = sbr.rel (0) target = $region5
  $region4: #{transformer_encoder.1} parent=0 // pred_region
    _
  $region5: #{transformer_encoder.1} parent=0 // pred_fallthru
    _
  // Predicated region
  $region6: #{transformer_encoder.1} parent=0 // pred_check
    _
  $region7: #{transformer_encoder.1} parent=0 // pred_check_branch
    %14 = sbr.rel (0) target = $region9
  $region8: #{transformer_encoder.1} parent=0 // pred_region
    _
  $region9: #{transformer_encoder.1} parent=0 // pred_fallthru
    _
  // Predicated region
  $region10: #{transformer_encoder.1} parent=0 // pred_check
    _
  $region11: #{transformer_encoder.1} parent=0 // pred_check_branch
    %16 = sbr.rel (0) target = $region13
  $region12: #{transformer_encoder.1} parent=0 // pred_region
    _
  $region13: #{transformer_encoder.1} parent=0 // pred_fallthru
    _
  // Predicated region
  $region14: #{transformer_encoder.1} parent=0 // pred_check
    _
  $region15: #{transformer_encoder.1} parent=0 // pred_check_branch
    %18 = sbr.rel (0) target = $region17
  $region16: #{transformer_encoder.1} parent=0 // pred_region
    _
  $region17: #{transformer_encoder.1} parent=0 // pred_fallthru
    _
  // Predicated region
  $region18: #{transformer_encoder.1} parent=0 // pred_check
    _
  $region19: #{transformer_encoder.1} parent=0 // pred_check_branch
    %20 = sbr.rel (0) target = $region21
  $region20: #{transformer_encoder.1} parent=0 // pred_region
    _
  $region21: #{transformer_encoder.1} parent=0 // pred_fallthru
    _
  // Predicated region
  $region22: #{transformer_encoder.1} parent=0 // pred_check
    _
  $region23: #{transformer_encoder.1} parent=0 // pred_check_branch
    %22 = sbr.rel (0) target = $region25
  $region24: #{transformer_encoder.1} parent=0 // pred_region
    _
  $region25: #{transformer_encoder.1} parent=0 // pred_fallthru
    _
  %v23 = vld [vmem:[%s0] sm:$0xff]
  %v24 = vld [vmem:[%s0 + $0x8] sm:$0xff]
  %v25 = vld [vmem:[%s4] sm:$0xff]
  %v26 = vld [vmem:[%s4 + $0x8] sm:$0x1]
  %v27 = vld [vmem:[%s1] sm:$0xff]
  %v28 = vld [vmem:[%s1 + $0x8] sm:$0xff]
  %v29 = vld [vmem:[%s1 + $0x10] sm:$0xff]
  %v30 = vld [vmem:[%s1 + $0x18] sm:$0xff]
  %v31 = vlaneseq
  %v32 = vshrl.u32 %v31, 7
  %v33 = vsub.s32 0, %v32
  %v34 = vrot.slane %v25, %v33
  %vm35 = vcmask 261120
  %v37 = vsel %vm35, %v23, 0
  %v40 = vsel %vm35, %v24, 0
  %42 = vmatprep.subr.mxu0 0.0
  %43 = vmatpush1.msra.mxu0 %v27
  %44 = vmatprep.subr.mxu0 0.0
  %45 = vmatpush1.msra.mxu0 %v28
  %46 = vmatprep.subr.mxu0 0.0
  %47 = vmatpush1.msra.mxu0 %v29
  %48 = vmatprep.subr.mxu0 0.0
  %49 = vmatpush1.msra.mxu0 %v30
  %50 = vmatprep.subr.mxu0 0.0
  %51 = vmatpush1.msra.mxu0 0.0
  %52 = vmatprep.subr.mxu0 0.0
  %53 = vmatpush1.msra.mxu0 0.0
  %54 = vmatprep.subr.mxu0 0.0
  %55 = vmatpush1.msra.mxu0 0.0
  %56 = vmatprep.subr.mxu0 0.0
  %57 = vmatpush1.msra.mxu0 0.0
  %58 = vmatprep.subr.mxu0 0.0
  %59 = vmatpush1.msra.mxu0 0.0
  %60 = vmatprep.subr.mxu0 0.0
  %61 = vmatpush1.msra.mxu0 0.0
  %62 = vmatprep.subr.mxu0 0.0
  %63 = vmatpush1.msra.mxu0 0.0
  %64 = vmatprep.subr.mxu0 0.0
  %65 = vmatpush1.msra.mxu0 0.0
  %66 = vmatprep.subr.mxu0 0.0
  %67 = vmatpush1.msra.mxu0 0.0
  %68 = vmatprep.subr.mxu0 0.0
  %69 = vmatpush1.msra.mxu0 0.0
  %70 = vmatprep.subr.mxu0 0.0
  %71 = vmatpush1.msra.mxu0 0.0
  %72 = vmatprep.subr.mxu0 0.0
  %73 = vmatpush1.msra.mxu0 0.0
  %74 = vmatprep.subr.mxu0 0.0
  %75 = vmatpush1.msra.mxu0 0.0
  %76 = vmatprep.subr.mxu0 0.0
  %77 = vmatpush1.msra.mxu0 0.0
  %78 = vmatprep.subr.mxu0 0.0
  %79 = vmatpush1.msra.mxu0 0.0
  %80 = vmatprep.subr.mxu0 0.0
  %81 = vmatpush1.msra.mxu0 0.0
  %82 = vmatprep.subr.mxu0 0.0
  %83 = vmatpush1.msra.mxu0 0.0
  %84 = vmatprep.subr.mxu0 0.0
  %85 = vmatpush1.msra.mxu0 0.0
  %86 = vmatprep.subr.mxu0 0.0
  %87 = vmatpush1.msra.mxu0 0.0
  %88 = vmatprep.subr.mxu0 0.0
  %89 = vmatpush1.msra.mxu0 0.0
  %90 = vmatprep.subr.mxu0 0.0
  %91 = vmatpush1.msra.mxu0 0.0
  %92 = vmatprep.subr.mxu0 0.0
  %93 = vmatpush1.msra.mxu0 0.0
  %94 = vmatprep.subr.mxu0 0.0
  %95 = vmatpush1.msra.mxu0 0.0
  %96 = vmatprep.subr.mxu0 0.0
  %97 = vmatpush1.msra.mxu0 0.0
  %98 = vmatprep.subr.mxu0 0.0
  %99 = vmatpush1.msra.mxu0 0.0
  %100 = vmatprep.subr.mxu0 0.0
  %101 = vmatpush1.msra.mxu0 0.0
  %102 = vmatprep.subr.mxu0 0.0
  %103 = vmatpush1.msra.mxu0 0.0
  %104 = vmatprep.subr.mxu0 0.0
  %105 = vmatpush1.msra.mxu0 0.0
  %106 = vmatprep.mubr.f32.mxu0 0.0
  %107 = vmatmul.mubr.f32.gmra.mrb[0].mxu0 %v37
  %v108 = vpop.f32.mrb[0].mxu0
  %v109 = vadd.f32 %v34, %v108
  %v110 = vpop.f32.mrb[0].mxu0
  %111 = vmatprep.mubr.f32.mxu0 0.0
  %112 = vmatmul.mubr.f32.gmra.mrb[0].mxu0 %v40
  %v113 = vpop.f32.mrb[0].mxu0
  %v114 = vadd.f32 %v34, %v113
  %v115 = vpop.f32.mrb[0].mxu0
  %116 = vdwg.mxu0
  %s117 = scalar_lea.vmem %s1, 32
  %v118 = vld [vmem:[%s117] sm:$0xff]
  %v119 = vld [vmem:[%s117 + $0x8] sm:$0xff]
  %v120 = vld [vmem:[%s117 + $0x10] sm:$0xff]
  %v121 = vld [vmem:[%s117 + $0x18] sm:$0xff]
  %v122 = vlaneseq
  %v123 = vshrl.u32 %v122, 7
  %v124 = vsub.s32 1, %v123
  %v125 = vrot.slane %v25, %v124
  %126 = vmatprep.subr.mxu0 0.0
  %127 = vmatpush1.msra.mxu0 %v118
  %128 = vmatprep.subr.mxu0 0.0
  %129 = vmatpush1.msra.mxu0 %v119
  %130 = vmatprep.subr.mxu0 0.0
  %131 = vmatpush1.msra.mxu0 %v120
  %132 = vmatprep.subr.mxu0 0.0
  %133 = vmatpush1.msra.mxu0 %v121
  %134 = vmatprep.subr.mxu0 0.0
  %135 = vmatpush1.msra.mxu0 0.0
  %136 = vmatprep.subr.mxu0 0.0
  %137 = vmatpush1.msra.mxu0 0.0
  %138 = vmatprep.subr.mxu0 0.0
  %139 = vmatpush1.msra.mxu0 0.0
  %140 = vmatprep.subr.mxu0 0.0
  %141 = vmatpush1.msra.mxu0 0.0
  %142 = vmatprep.subr.mxu0 0.0
  %143 = vmatpush1.msra.mxu0 0.0
  %144 = vmatprep.subr.mxu0 0.0
  %145 = vmatpush1.msra.mxu0 0.0
  %146 = vmatprep.subr.mxu0 0.0
  %147 = vmatpush1.msra.mxu0 0.0
  %148 = vmatprep.subr.mxu0 0.0
  %149 = vmatpush1.msra.mxu0 0.0
  %150 = vmatprep.subr.mxu0 0.0
  %151 = vmatpush1.msra.mxu0 0.0
  %152 = vmatprep.subr.mxu0 0.0
  %153 = vmatpush1.msra.mxu0 0.0
  %154 = vmatprep.subr.mxu0 0.0
  %155 = vmatpush1.msra.mxu0 0.0
  %156 = vmatprep.subr.mxu0 0.0
  %157 = vmatpush1.msra.mxu0 0.0
  %158 = vmatprep.subr.mxu0 0.0
  %159 = vmatpush1.msra.mxu0 0.0
  %160 = vmatprep.subr.mxu0 0.0
  %161 = vmatpush1.msra.mxu0 0.0
  %162 = vmatprep.subr.mxu0 0.0
  %163 = vmatpush1.msra.mxu0 0.0
  %164 = vmatprep.subr.mxu0 0.0
  %165 = vmatpush1.msra.mxu0 0.0
  %166 = vmatprep.subr.mxu0 0.0
  %167 = vmatpush1.msra.mxu0 0.0
  %168 = vmatprep.subr.mxu0 0.0
  %169 = vmatpush1.msra.mxu0 0.0
  %170 = vmatprep.subr.mxu0 0.0
  %171 = vmatpush1.msra.mxu0 0.0
  %172 = vmatprep.subr.mxu0 0.0
  %173 = vmatpush1.msra.mxu0 0.0
  %174 = vmatprep.subr.mxu0 0.0
  %175 = vmatpush1.msra.mxu0 0.0
  %176 = vmatprep.subr.mxu0 0.0
  %177 = vmatpush1.msra.mxu0 0.0
  %178 = vmatprep.subr.mxu0 0.0
  %179 = vmatpush1.msra.mxu0 0.0
  %180 = vmatprep.subr.mxu0 0.0
  %181 = vmatpush1.msra.mxu0 0.0
  %182 = vmatprep.subr.mxu0 0.0
  %183 = vmatpush1.msra.mxu0 0.0
  %184 = vmatprep.subr.mxu0 0.0
  %185 = vmatpush1.msra.mxu0 0.0
  %186 = vmatprep.subr.mxu0 0.0
  %187 = vmatpush1.msra.mxu0 0.0
  %188 = vmatprep.subr.mxu0 0.0
  %189 = vmatpush1.msra.mxu0 0.0
  %190 = vmatprep.mubr.f32.mxu0 0.0
  %191 = vmatmul.mubr.f32.gmra.mrb[0].mxu0 %v37
  %v192 = vpop.f32.mrb[0].mxu0
  %v193 = vadd.f32 %v125, %v192
  %v194 = vpop.f32.mrb[0].mxu0
  %195 = vmatprep.mubr.f32.mxu0 0.0
  %196 = vmatmul.mubr.f32.gmra.mrb[0].mxu0 %v40
  %v197 = vpop.f32.mrb[0].mxu0
  %v198 = vadd.f32 %v125, %v197
  %v199 = vpop.f32.mrb[0].mxu0
  %200 = vdwg.mxu0
  %s201 = scalar_lea.vmem %s1, 64
  %v202 = vld [vmem:[%s201] sm:$0xff]
  %v203 = vld [vmem:[%s201 + $0x8] sm:$0xff]
  %v204 = vld [vmem:[%s201 + $0x10] sm:$0xff]
  %v205 = vld [vmem:[%s201 + $0x18] sm:$0xff]
  %v206 = vlaneseq
  %v207 = vshrl.u32 %v206, 7
  %v208 = vsub.s32 2, %v207
  %v209 = vrot.slane %v25, %v208
  %210 = vmatprep.subr.mxu0 0.0
  %211 = vmatpush1.msra.mxu0 %v202
  %212 = vmatprep.subr.mxu0 0.0
  %213 = vmatpush1.msra.mxu0 %v203
  %214 = vmatprep.subr.mxu0 0.0
  %215 = vmatpush1.msra.mxu0 %v204
  %216 = vmatprep.subr.mxu0 0.0
  %217 = vmatpush1.msra.mxu0 %v205
  %218 = vmatprep.subr.mxu0 0.0
  %219 = vmatpush1.msra.mxu0 0.0
  %220 = vmatprep.subr.mxu0 0.0
  %221 = vmatpush1.msra.mxu0 0.0
  %222 = vmatprep.subr.mxu0 0.0
  %223 = vmatpush1.msra.mxu0 0.0
  %224 = vmatprep.subr.mxu0 0.0
  %225 = vmatpush1.msra.mxu0 0.0
  %226 = vmatprep.subr.mxu0 0.0
  %227 = vmatpush1.msra.mxu0 0.0
  %228 = vmatprep.subr.mxu0 0.0
  %229 = vmatpush1.msra.mxu0 0.0
  %230 = vmatprep.subr.mxu0 0.0
  %231 = vmatpush1.msra.mxu0 0.0
  %232 = vmatprep.subr.mxu0 0.0
  %233 = vmatpush1.msra.mxu0 0.0
  %234 = vmatprep.subr.mxu0 0.0
  %235 = vmatpush1.msra.mxu0 0.0
  %236 = vmatprep.subr.mxu0 0.0
  %237 = vmatpush1.msra.mxu0 0.0
  %238 = vmatprep.subr.mxu0 0.0
  %239 = vmatpush1.msra.mxu0 0.0
  %240 = vmatprep.subr.mxu0 0.0
  %241 = vmatpush1.msra.mxu0 0.0
  %242 = vmatprep.subr.mxu0 0.0
  %243 = vmatpush1.msra.mxu0 0.0
  %244 = vmatprep.subr.mxu0 0.0
  %245 = vmatpush1.msra.mxu0 0.0
  %246 = vmatprep.subr.mxu0 0.0
  %247 = vmatpush1.msra.mxu0 0.0
  %248 = vmatprep.subr.mxu0 0.0
  %249 = vmatpush1.msra.mxu0 0.0
  %250 = vmatprep.subr.mxu0 0.0
  %251 = vmatpush1.msra.mxu0 0.0
  %252 = vmatprep.subr.mxu0 0.0
  %253 = vmatpush1.msra.mxu0 0.0
  %254 = vmatprep.subr.mxu0 0.0
  %255 = vmatpush1.msra.mxu0 0.0
  %256 = vmatprep.subr.mxu0 0.0
  %257 = vmatpush1.msra.mxu0 0.0
  %258 = vmatprep.subr.mxu0 0.0
  %259 = vmatpush1.msra.mxu0 0.0
  %260 = vmatprep.subr.mxu0 0.0
  %261 = vmatpush1.msra.mxu0 0.0
  %262 = vmatprep.subr.mxu0 0.0
  %263 = vmatpush1.msra.mxu0 0.0
  %264 = vmatprep.subr.mxu0 0.0
  %265 = vmatpush1.msra.mxu0 0.0
  %266 = vmatprep.subr.mxu0 0.0
  %267 = vmatpush1.msra.mxu0 0.0
  %268 = vmatprep.subr.mxu0 0.0
  %269 = vmatpush1.msra.mxu0 0.0
  %270 = vmatprep.subr.mxu0 0.0
  %271 = vmatpush1.msra.mxu0 0.0
  %272 = vmatprep.subr.mxu0 0.0
  %273 = vmatpush1.msra.mxu0 0.0
  %274 = vmatprep.mubr.f32.mxu0 0.0
  %275 = vmatmul.mubr.f32.gmra.mrb[0].mxu0 %v37
  %v276 = vpop.f32.mrb[0].mxu0
  %v277 = vadd.f32 %v209, %v276
  %v278 = vpop.f32.mrb[0].mxu0
  %279 = vmatprep.mubr.f32.mxu0 0.0
  %280 = vmatmul.mubr.f32.gmra.mrb[0].mxu0 %v40
  %v281 = vpop.f32.mrb[0].mxu0
  %v282 = vadd.f32 %v209, %v281
  %v283 = vpop.f32.mrb[0].mxu0
  %284 = vdwg.mxu0
  %vm285 = vcmask 64512
  %v287 = vsel %vm285, %v109, 0
  %v290 = vsel %vm285, %v193, 0
  %292 = vmatprep.subr.mxu0 0.0
  %293 = vmatpush1.xpose.msra.mxu0 %v290
  %294 = vmatprep.subr.mxu0 0.0
  %295 = vmatpush1.xpose.msra.mxu0 0.0
  %296 = vmatprep.subr.mxu0 0.0
  %297 = vmatpush1.xpose.msra.mxu0 0.0
  %298 = vmatprep.subr.mxu0 0.0
  %299 = vmatpush1.xpose.msra.mxu0 0.0
  %300 = vmatprep.subr.mxu0 0.0
  %301 = vmatpush1.xpose.msra.mxu0 0.0
  %302 = vmatprep.subr.mxu0 0.0
  %303 = vmatpush1.xpose.msra.mxu0 0.0
  %304 = vmatprep.subr.mxu0 0.0
  %305 = vmatpush1.xpose.msra.mxu0 0.0
  %306 = vmatprep.subr.mxu0 0.0
  %307 = vmatpush1.xpose.msra.mxu0 0.0
  %308 = vmatprep.subr.mxu0 0.0
  %309 = vmatpush1.xpose.msra.mxu0 0.0
  %310 = vmatprep.subr.mxu0 0.0
  %311 = vmatpush1.xpose.msra.mxu0 0.0
  %312 = vmatprep.subr.mxu0 0.0
  %313 = vmatpush1.xpose.msra.mxu0 0.0
  %314 = vmatprep.subr.mxu0 0.0
  %315 = vmatpush1.xpose.msra.mxu0 0.0
  %316 = vmatprep.subr.mxu0 0.0
  %317 = vmatpush1.xpose.msra.mxu0 0.0
  %318 = vmatprep.subr.mxu0 0.0
  %319 = vmatpush1.xpose.msra.mxu0 0.0
  %320 = vmatprep.subr.mxu0 0.0
  %321 = vmatpush1.xpose.msra.mxu0 0.0
  %322 = vmatprep.subr.mxu0 0.0
  %323 = vmatpush1.xpose.msra.mxu0 0.0
  %324 = vmatprep.subr.mxu0 0.0
  %325 = vmatpush1.xpose.msra.mxu0 0.0
  %326 = vmatprep.subr.mxu0 0.0
  %327 = vmatpush1.xpose.msra.mxu0 0.0
  %328 = vmatprep.subr.mxu0 0.0
  %329 = vmatpush1.xpose.msra.mxu0 0.0
  %330 = vmatprep.subr.mxu0 0.0
  %331 = vmatpush1.xpose.msra.mxu0 0.0
  %332 = vmatprep.subr.mxu0 0.0
  %333 = vmatpush1.xpose.msra.mxu0 0.0
  %334 = vmatprep.subr.mxu0 0.0
  %335 = vmatpush1.xpose.msra.mxu0 0.0
  %336 = vmatprep.subr.mxu0 0.0
  %337 = vmatpush1.xpose.msra.mxu0 0.0
  %338 = vmatprep.subr.mxu0 0.0
  %339 = vmatpush1.xpose.msra.mxu0 0.0
  %340 = vmatprep.subr.mxu0 0.0
  %341 = vmatpush1.xpose.msra.mxu0 0.0
  %342 = vmatprep.subr.mxu0 0.0
  %343 = vmatpush1.xpose.msra.mxu0 0.0
  %344 = vmatprep.subr.mxu0 0.0
  %345 = vmatpush1.xpose.msra.mxu0 0.0
  %346 = vmatprep.subr.mxu0 0.0
  %347 = vmatpush1.xpose.msra.mxu0 0.0
  %348 = vmatprep.subr.mxu0 0.0
  %349 = vmatpush1.xpose.msra.mxu0 0.0
  %350 = vmatprep.subr.mxu0 0.0
  %351 = vmatpush1.xpose.msra.mxu0 0.0
  %352 = vmatprep.subr.mxu0 0.0
  %353 = vmatpush1.xpose.msra.mxu0 0.0
  %354 = vmatprep.subr.mxu0 0.0
  %355 = vmatpush1.xpose.msra.mxu0 0.0
  %356 = vmatprep.mubr.f32.mxu0 0.0
  %357 = vmatmul.mubr.f32.gmra.mrb[0].mxu0 %v287
  %v358 = vpop.f32.mrb[0].mxu0
  %v359 = vadd.f32 0.0, %v358
  %v360 = vpop.f32.mrb[0].mxu0
  %361 = vdwg.mxu0
  %v363 = vsel %vm285, %v114, 0
  %v366 = vsel %vm285, %v198, 0
  %368 = vmatprep.subr.mxu0 0.0
  %369 = vmatpush1.xpose.msra.mxu0 %v366
  %370 = vmatprep.subr.mxu0 0.0
  %371 = vmatpush1.xpose.msra.mxu0 0.0
  %372 = vmatprep.subr.mxu0 0.0
  %373 = vmatpush1.xpose.msra.mxu0 0.0
  %374 = vmatprep.subr.mxu0 0.0
  %375 = vmatpush1.xpose.msra.mxu0 0.0
  %376 = vmatprep.subr.mxu0 0.0
  %377 = vmatpush1.xpose.msra.mxu0 0.0
  %378 = vmatprep.subr.mxu0 0.0
  %379 = vmatpush1.xpose.msra.mxu0 0.0
  %380 = vmatprep.subr.mxu0 0.0
  %381 = vmatpush1.xpose.msra.mxu0 0.0
  %382 = vmatprep.subr.mxu0 0.0
  %383 = vmatpush1.xpose.msra.mxu0 0.0
  %384 = vmatprep.subr.mxu0 0.0
  %385 = vmatpush1.xpose.msra.mxu0 0.0
  %386 = vmatprep.subr.mxu0 0.0
  %387 = vmatpush1.xpose.msra.mxu0 0.0
  %388 = vmatprep.subr.mxu0 0.0
  %389 = vmatpush1.xpose.msra.mxu0 0.0
  %390 = vmatprep.subr.mxu0 0.0
  %391 = vmatpush1.xpose.msra.mxu0 0.0
  %392 = vmatprep.subr.mxu0 0.0
  %393 = vmatpush1.xpose.msra.mxu0 0.0
  %394 = vmatprep.subr.mxu0 0.0
  %395 = vmatpush1.xpose.msra.mxu0 0.0
  %396 = vmatprep.subr.mxu0 0.0
  %397 = vmatpush1.xpose.msra.mxu0 0.0
  %398 = vmatprep.subr.mxu0 0.0
  %399 = vmatpush1.xpose.msra.mxu0 0.0
  %400 = vmatprep.subr.mxu0 0.0
  %401 = vmatpush1.xpose.msra.mxu0 0.0
  %402 = vmatprep.subr.mxu0 0.0
  %403 = vmatpush1.xpose.msra.mxu0 0.0
  %404 = vmatprep.subr.mxu0 0.0
  %405 = vmatpush1.xpose.msra.mxu0 0.0
  %406 = vmatprep.subr.mxu0 0.0
  %407 = vmatpush1.xpose.msra.mxu0 0.0
  %408 = vmatprep.subr.mxu0 0.0
  %409 = vmatpush1.xpose.msra.mxu0 0.0
  %410 = vmatprep.subr.mxu0 0.0
  %411 = vmatpush1.xpose.msra.mxu0 0.0
  %412 = vmatprep.subr.mxu0 0.0
  %413 = vmatpush1.xpose.msra.mxu0 0.0
  %414 = vmatprep.subr.mxu0 0.0
  %415 = vmatpush1.xpose.msra.mxu0 0.0
  %416 = vmatprep.subr.mxu0 0.0
  %417 = vmatpush1.xpose.msra.mxu0 0.0
  %418 = vmatprep.subr.mxu0 0.0
  %419 = vmatpush1.xpose.msra.mxu0 0.0
  %420 = vmatprep.subr.mxu0 0.0
  %421 = vmatpush1.xpose.msra.mxu0 0.0
  %422 = vmatprep.subr.mxu0 0.0
  %423 = vmatpush1.xpose.msra.mxu0 0.0
  %424 = vmatprep.subr.mxu0 0.0
  %425 = vmatpush1.xpose.msra.mxu0 0.0
  %426 = vmatprep.subr.mxu0 0.0
  %427 = vmatpush1.xpose.msra.mxu0 0.0
  %428 = vmatprep.subr.mxu0 0.0
  %429 = vmatpush1.xpose.msra.mxu0 0.0
  %430 = vmatprep.subr.mxu0 0.0
  %431 = vmatpush1.xpose.msra.mxu0 0.0
  %432 = vmatprep.mubr.f32.mxu0 0.0
  %433 = vmatmul.mubr.f32.gmra.mrb[0].mxu0 %v363
  %v434 = vpop.f32.mrb[0].mxu0
  %v435 = vadd.f32 0.0, %v434
  %v436 = vpop.f32.mrb[0].mxu0
  %437 = vdwg.mxu0
  %v438 = vsel %vm285, %v359, -inf
  %439 = vmax.xlane.f32.xlu0 %v438
  %v440 = vpop.xlane.xlu0 %439
  %v441 = vsel %vm285, %v435, -inf
  %442 = vmax.xlane.f32.xlu0 %v441
  %v443 = vpop.xlane.xlu0 %442
  %v444 = vsub.f32 %v359, %v440
  %v445 = vsub.f32 %v435, %v443
  %v446 = vmul.f32 %v444, 1.442695
  %v447 = vpow.pop %v446
  %v448 = vmul.f32 %v445, 1.442695
  %v449 = vpow.pop %v448
  %v450 = vsel %vm285, %v447, 0.0
  %451 = vadd.xlane.f32.xlu0 %v450
  %v452 = vpop.xlane.xlu0 %451
  %v453 = vsel %vm285, %v449, 0.0
  %454 = vadd.xlane.f32.xlu0 %v453
  %v455 = vpop.xlane.xlu0 %454
  %v456 = vrcp.pop %v452
  %v457 = vmul.f32 %v447, %v456
  %v458 = vrcp.pop %v455
  %v459 = vmul.f32 %v449, %v458
  %v461 = vsel %vm285, %v457, 0
  %463 = vmatprep.subr.mxu0 0.0
  %464 = vmatpush1.msra.mxu0 %v277
  %465 = vmatprep.subr.mxu0 0.0
  %466 = vmatpush1.msra.mxu0 0.0
  %467 = vmatprep.subr.mxu0 0.0
  %468 = vmatpush1.msra.mxu0 0.0
  %469 = vmatprep.subr.mxu0 0.0
  %470 = vmatpush1.msra.mxu0 0.0
  %471 = vmatprep.subr.mxu0 0.0
  %472 = vmatpush1.msra.mxu0 0.0
  %473 = vmatprep.subr.mxu0 0.0
  %474 = vmatpush1.msra.mxu0 0.0
  %475 = vmatprep.subr.mxu0 0.0
  %476 = vmatpush1.msra.mxu0 0.0
  %477 = vmatprep.subr.mxu0 0.0
  %478 = vmatpush1.msra.mxu0 0.0
  %479 = vmatprep.subr.mxu0 0.0
  %480 = vmatpush1.msra.mxu0 0.0
  %481 = vmatprep.subr.mxu0 0.0
  %482 = vmatpush1.msra.mxu0 0.0
  %483 = vmatprep.subr.mxu0 0.0
  %484 = vmatpush1.msra.mxu0 0.0
  %485 = vmatprep.subr.mxu0 0.0
  %486 = vmatpush1.msra.mxu0 0.0
  %487 = vmatprep.subr.mxu0 0.0
  %488 = vmatpush1.msra.mxu0 0.0
  %489 = vmatprep.subr.mxu0 0.0
  %490 = vmatpush1.msra.mxu0 0.0
  %491 = vmatprep.subr.mxu0 0.0
  %492 = vmatpush1.msra.mxu0 0.0
  %493 = vmatprep.subr.mxu0 0.0
  %494 = vmatpush1.msra.mxu0 0.0
  %495 = vmatprep.subr.mxu0 0.0
  %496 = vmatpush1.msra.mxu0 0.0
  %497 = vmatprep.subr.mxu0 0.0
  %498 = vmatpush1.msra.mxu0 0.0
  %499 = vmatprep.subr.mxu0 0.0
  %500 = vmatpush1.msra.mxu0 0.0
  %501 = vmatprep.subr.mxu0 0.0
  %502 = vmatpush1.msra.mxu0 0.0
  %503 = vmatprep.subr.mxu0 0.0
  %504 = vmatpush1.msra.mxu0 0.0
  %505 = vmatprep.subr.mxu0 0.0
  %506 = vmatpush1.msra.mxu0 0.0
  %507 = vmatprep.subr.mxu0 0.0
  %508 = vmatpush1.msra.mxu0 0.0
  %509 = vmatprep.subr.mxu0 0.0
  %510 = vmatpush1.msra.mxu0 0.0
  %511 = vmatprep.subr.mxu0 0.0
  %512 = vmatpush1.msra.mxu0 0.0
  %513 = vmatprep.subr.mxu0 0.0
  %514 = vmatpush1.msra.mxu0 0.0
  %515 = vmatprep.subr.mxu0 0.0
  %516 = vmatpush1.msra.mxu0 0.0
  %517 = vmatprep.subr.mxu0 0.0
  %518 = vmatpush1.msra.mxu0 0.0
  %519 = vmatprep.subr.mxu0 0.0
  %520 = vmatpush1.msra.mxu0 0.0
  %521 = vmatprep.subr.mxu0 0.0
  %522 = vmatpush1.msra.mxu0 0.0
  %523 = vmatprep.subr.mxu0 0.0
  %524 = vmatpush1.msra.mxu0 0.0
  %525 = vmatprep.subr.mxu0 0.0
  %526 = vmatpush1.msra.mxu0 0.0
  %527 = vmatprep.mubr.f32.mxu0 0.0
  %528 = vmatmul.mubr.f32.gmra.mrb[0].mxu0 %v461
  %v529 = vpop.f32.mrb[0].mxu0
  %v530 = vadd.f32 0.0, %v529
  %v531 = vpop.f32.mrb[0].mxu0
  %532 = vdwg.mxu0
  %v534 = vsel %vm285, %v459, 0
  %536 = vmatprep.subr.mxu0 0.0
  %537 = vmatpush1.msra.mxu0 %v282
  %538 = vmatprep.subr.mxu0 0.0
  %539 = vmatpush1.msra.mxu0 0.0
  %540 = vmatprep.subr.mxu0 0.0
  %541 = vmatpush1.msra.mxu0 0.0
  %542 = vmatprep.subr.mxu0 0.0
  %543 = vmatpush1.msra.mxu0 0.0
  %544 = vmatprep.subr.mxu0 0.0
  %545 = vmatpush1.msra.mxu0 0.0
  %546 = vmatprep.subr.mxu0 0.0
  %547 = vmatpush1.msra.mxu0 0.0
  %548 = vmatprep.subr.mxu0 0.0
  %549 = vmatpush1.msra.mxu0 0.0
  %550 = vmatprep.subr.mxu0 0.0
  %551 = vmatpush1.msra.mxu0 0.0
  %552 = vmatprep.subr.mxu0 0.0
  %553 = vmatpush1.msra.mxu0 0.0
  %554 = vmatprep.subr.mxu0 0.0
  %555 = vmatpush1.msra.mxu0 0.0
  %556 = vmatprep.subr.mxu0 0.0
  %557 = vmatpush1.msra.mxu0 0.0
  %558 = vmatprep.subr.mxu0 0.0
  %559 = vmatpush1.msra.mxu0 0.0
  %560 = vmatprep.subr.mxu0 0.0
  %561 = vmatpush1.msra.mxu0 0.0
  %562 = vmatprep.subr.mxu0 0.0
  %563 = vmatpush1.msra.mxu0 0.0
  %564 = vmatprep.subr.mxu0 0.0
  %565 = vmatpush1.msra.mxu0 0.0
  %566 = vmatprep.subr.mxu0 0.0
  %567 = vmatpush1.msra.mxu0 0.0
  %568 = vmatprep.subr.mxu0 0.0
  %569 = vmatpush1.msra.mxu0 0.0
  %570 = vmatprep.subr.mxu0 0.0
  %571 = vmatpush1.msra.mxu0 0.0
  %572 = vmatprep.subr.mxu0 0.0
  %573 = vmatpush1.msra.mxu0 0.0
  %574 = vmatprep.subr.mxu0 0.0
  %575 = vmatpush1.msra.mxu0 0.0
  %576 = vmatprep.subr.mxu0 0.0
  %577 = vmatpush1.msra.mxu0 0.0
  %578 = vmatprep.subr.mxu0 0.0
  %579 = vmatpush1.msra.mxu0 0.0
  %580 = vmatprep.subr.mxu0 0.0
  %581 = vmatpush1.msra.mxu0 0.0
  %582 = vmatprep.subr.mxu0 0.0
  %583 = vmatpush1.msra.mxu0 0.0
  %584 = vmatprep.subr.mxu0 0.0
  %585 = vmatpush1.msra.mxu0 0.0
  %586 = vmatprep.subr.mxu0 0.0
  %587 = vmatpush1.msra.mxu0 0.0
  %588 = vmatprep.subr.mxu0 0.0
  %589 = vmatpush1.msra.mxu0 0.0
  %590 = vmatprep.subr.mxu0 0.0
  %591 = vmatpush1.msra.mxu0 0.0
  %592 = vmatprep.subr.mxu0 0.0
  %593 = vmatpush1.msra.mxu0 0.0
  %594 = vmatprep.subr.mxu0 0.0
  %595 = vmatpush1.msra.mxu0 0.0
  %596 = vmatprep.subr.mxu0 0.0
  %597 = vmatpush1.msra.mxu0 0.0
  %598 = vmatprep.subr.mxu0 0.0
  %599 = vmatpush1.msra.mxu0 0.0
  %600 = vmatprep.mubr.f32.mxu0 0.0
  %601 = vmatmul.mubr.f32.gmra.mrb[0].mxu0 %v534
  %v602 = vpop.f32.mrb[0].mxu0
  %v603 = vadd.f32 0.0, %v602
  %v604 = vpop.f32.mrb[0].mxu0
  %605 = vdwg.mxu0
  %606 = vrot.lane.b32.xlu0 %v109, 120
  %v607 = vpop.permute.xlu0 %606
  %608 = vrot.lane.b32.xlu0 %v193, 120
  %v609 = vpop.permute.xlu0 %608
  %v610 = vsel %vm285, %v607, 0
  %v612 = vsel %vm285, %v609, 0
  %614 = vmatprep.subr.mxu0 0.0
  %615 = vmatpush1.xpose.msra.mxu0 %v612
  %616 = vmatprep.subr.mxu0 0.0
  %617 = vmatpush1.xpose.msra.mxu0 0.0
  %618 = vmatprep.subr.mxu0 0.0
  %619 = vmatpush1.xpose.msra.mxu0 0.0
  %620 = vmatprep.subr.mxu0 0.0
  %621 = vmatpush1.xpose.msra.mxu0 0.0
  %622 = vmatprep.subr.mxu0 0.0
  %623 = vmatpush1.xpose.msra.mxu0 0.0
  %624 = vmatprep.subr.mxu0 0.0
  %625 = vmatpush1.xpose.msra.mxu0 0.0
  %626 = vmatprep.subr.mxu0 0.0
  %627 = vmatpush1.xpose.msra.mxu0 0.0
  %628 = vmatprep.subr.mxu0 0.0
  %629 = vmatpush1.xpose.msra.mxu0 0.0
  %630 = vmatprep.subr.mxu0 0.0
  %631 = vmatpush1.xpose.msra.mxu0 0.0
  %632 = vmatprep.subr.mxu0 0.0
  %633 = vmatpush1.xpose.msra.mxu0 0.0
  %634 = vmatprep.subr.mxu0 0.0
  %635 = vmatpush1.xpose.msra.mxu0 0.0
  %636 = vmatprep.subr.mxu0 0.0
  %637 = vmatpush1.xpose.msra.mxu0 0.0
  %638 = vmatprep.subr.mxu0 0.0
  %639 = vmatpush1.xpose.msra.mxu0 0.0
  %640 = vmatprep.subr.mxu0 0.0
  %641 = vmatpush1.xpose.msra.mxu0 0.0
  %642 = vmatprep.subr.mxu0 0.0
  %643 = vmatpush1.xpose.msra.mxu0 0.0
  %644 = vmatprep.subr.mxu0 0.0
  %645 = vmatpush1.xpose.msra.mxu0 0.0
  %646 = vmatprep.subr.mxu0 0.0
  %647 = vmatpush1.xpose.msra.mxu0 0.0
  %648 = vmatprep.subr.mxu0 0.0
  %649 = vmatpush1.xpose.msra.mxu0 0.0
  %650 = vmatprep.subr.mxu0 0.0
  %651 = vmatpush1.xpose.msra.mxu0 0.0
  %652 = vmatprep.subr.mxu0 0.0
  %653 = vmatpush1.xpose.msra.mxu0 0.0
  %654 = vmatprep.subr.mxu0 0.0
  %655 = vmatpush1.xpose.msra.mxu0 0.0
  %656 = vmatprep.subr.mxu0 0.0
  %657 = vmatpush1.xpose.msra.mxu0 0.0
  %658 = vmatprep.subr.mxu0 0.0
  %659 = vmatpush1.xpose.msra.mxu0 0.0
  %660 = vmatprep.subr.mxu0 0.0
  %661 = vmatpush1.xpose.msra.mxu0 0.0
  %662 = vmatprep.subr.mxu0 0.0
  %663 = vmatpush1.xpose.msra.mxu0 0.0
  %664 = vmatprep.subr.mxu0 0.0
  %665 = vmatpush1.xpose.msra.mxu0 0.0
  %666 = vmatprep.subr.mxu0 0.0
  %667 = vmatpush1.xpose.msra.mxu0 0.0
  %668 = vmatprep.subr.mxu0 0.0
  %669 = vmatpush1.xpose.msra.mxu0 0.0
  %670 = vmatprep.subr.mxu0 0.0
  %671 = vmatpush1.xpose.msra.mxu0 0.0
  %672 = vmatprep.subr.mxu0 0.0
  %673 = vmatpush1.xpose.msra.mxu0 0.0
  %674 = vmatprep.subr.mxu0 0.0
  %675 = vmatpush1.xpose.msra.mxu0 0.0
  %676 = vmatprep.subr.mxu0 0.0
  %677 = vmatpush1.xpose.msra.mxu0 0.0
  %678 = vmatprep.mubr.f32.mxu0 0.0
  %679 = vmatmul.mubr.f32.gmra.mrb[0].mxu0 %v610
  %v680 = vpop.f32.mrb[0].mxu0
  %v681 = vadd.f32 0.0, %v680
  %v682 = vpop.f32.mrb[0].mxu0
  %683 = vdwg.mxu0
  %684 = vrot.lane.b32.xlu0 %v114, 120
  %v685 = vpop.permute.xlu0 %684
  %686 = vrot.lane.b32.xlu0 %v198, 120
  %v687 = vpop.permute.xlu0 %686
  %v688 = vsel %vm285, %v685, 0
  %v690 = vsel %vm285, %v687, 0
  %692 = vmatprep.subr.mxu0 0.0
  %693 = vmatpush1.xpose.msra.mxu0 %v690
  %694 = vmatprep.subr.mxu0 0.0
  %695 = vmatpush1.xpose.msra.mxu0 0.0
  %696 = vmatprep.subr.mxu0 0.0
  %697 = vmatpush1.xpose.msra.mxu0 0.0
  %698 = vmatprep.subr.mxu0 0.0
  %699 = vmatpush1.xpose.msra.mxu0 0.0
  %700 = vmatprep.subr.mxu0 0.0
  %701 = vmatpush1.xpose.msra.mxu0 0.0
  %702 = vmatprep.subr.mxu0 0.0
  %703 = vmatpush1.xpose.msra.mxu0 0.0
  %704 = vmatprep.subr.mxu0 0.0
  %705 = vmatpush1.xpose.msra.mxu0 0.0
  %706 = vmatprep.subr.mxu0 0.0
  %707 = vmatpush1.xpose.msra.mxu0 0.0
  %708 = vmatprep.subr.mxu0 0.0
  %709 = vmatpush1.xpose.msra.mxu0 0.0
  %710 = vmatprep.subr.mxu0 0.0
  %711 = vmatpush1.xpose.msra.mxu0 0.0
  %712 = vmatprep.subr.mxu0 0.0
  %713 = vmatpush1.xpose.msra.mxu0 0.0
  %714 = vmatprep.subr.mxu0 0.0
  %715 = vmatpush1.xpose.msra.mxu0 0.0
  %716 = vmatprep.subr.mxu0 0.0
  %717 = vmatpush1.xpose.msra.mxu0 0.0
  %718 = vmatprep.subr.mxu0 0.0
  %719 = vmatpush1.xpose.msra.mxu0 0.0
  %720 = vmatprep.subr.mxu0 0.0
  %721 = vmatpush1.xpose.msra.mxu0 0.0
  %722 = vmatprep.subr.mxu0 0.0
  %723 = vmatpush1.xpose.msra.mxu0 0.0
  %724 = vmatprep.subr.mxu0 0.0
  %725 = vmatpush1.xpose.msra.mxu0 0.0
  %726 = vmatprep.subr.mxu0 0.0
  %727 = vmatpush1.xpose.msra.mxu0 0.0
  %728 = vmatprep.subr.mxu0 0.0
  %729 = vmatpush1.xpose.msra.mxu0 0.0
  %730 = vmatprep.subr.mxu0 0.0
  %731 = vmatpush1.xpose.msra.mxu0 0.0
  %732 = vmatprep.subr.mxu0 0.0
  %733 = vmatpush1.xpose.msra.mxu0 0.0
  %734 = vmatprep.subr.mxu0 0.0
  %735 = vmatpush1.xpose.msra.mxu0 0.0
  %736 = vmatprep.subr.mxu0 0.0
  %737 = vmatpush1.xpose.msra.mxu0 0.0
  %738 = vmatprep.subr.mxu0 0.0
  %739 = vmatpush1.xpose.msra.mxu0 0.0
  %740 = vmatprep.subr.mxu0 0.0
  %741 = vmatpush1.xpose.msra.mxu0 0.0
  %742 = vmatprep.subr.mxu0 0.0
  %743 = vmatpush1.xpose.msra.mxu0 0.0
  %744 = vmatprep.subr.mxu0 0.0
  %745 = vmatpush1.xpose.msra.mxu0 0.0
  %746 = vmatprep.subr.mxu0 0.0
  %747 = vmatpush1.xpose.msra.mxu0 0.0
  %748 = vmatprep.subr.mxu0 0.0
  %749 = vmatpush1.xpose.msra.mxu0 0.0
  %750 = vmatprep.subr.mxu0 0.0
  %751 = vmatpush1.xpose.msra.mxu0 0.0
  %752 = vmatprep.subr.mxu0 0.0
  %753 = vmatpush1.xpose.msra.mxu0 0.0
  %754 = vmatprep.subr.mxu0 0.0
  %755 = vmatpush1.xpose.msra.mxu0 0.0
  %756 = vmatprep.mubr.f32.mxu0 0.0
  %757 = vmatmul.mubr.f32.gmra.mrb[0].mxu0 %v688
  %v758 = vpop.f32.mrb[0].mxu0
  %v759 = vadd.f32 0.0, %v758
  %v760 = vpop.f32.mrb[0].mxu0
  %761 = vdwg.mxu0
  %v762 = vsel %vm285, %v681, -inf
  %763 = vmax.xlane.f32.xlu0 %v762
  %v764 = vpop.xlane.xlu0 %763
  %v765 = vsel %vm285, %v759, -inf
  %766 = vmax.xlane.f32.xlu0 %v765
  %v767 = vpop.xlane.xlu0 %766
  %v768 = vsub.f32 %v681, %v764
  %v769 = vsub.f32 %v759, %v767
  %v770 = vmul.f32 %v768, 1.442695
  %v771 = vpow.pop %v770
  %v772 = vmul.f32 %v769, 1.442695
  %v773 = vpow.pop %v772
  %v774 = vsel %vm285, %v771, 0.0
  %775 = vadd.xlane.f32.xlu0 %v774
  %v776 = vpop.xlane.xlu0 %775
  %v777 = vsel %vm285, %v773, 0.0
  %778 = vadd.xlane.f32.xlu0 %v777
  %v779 = vpop.xlane.xlu0 %778
  %v780 = vrcp.pop %v776
  %v781 = vmul.f32 %v771, %v780
  %v782 = vrcp.pop %v779
  %v783 = vmul.f32 %v773, %v782
  %785 = vrot.lane.b32.xlu0 %v277, 120
  %v786 = vpop.permute.xlu0 %785
  %v789 = vsel %vm285, %v781, 0
  %791 = vmatprep.subr.mxu0 0.0
  %792 = vmatpush1.msra.mxu0 %v786
  %793 = vmatprep.subr.mxu0 0.0
  %794 = vmatpush1.msra.mxu0 0.0
  %795 = vmatprep.subr.mxu0 0.0
  %796 = vmatpush1.msra.mxu0 0.0
  %797 = vmatprep.subr.mxu0 0.0
  %798 = vmatpush1.msra.mxu0 0.0
  %799 = vmatprep.subr.mxu0 0.0
  %800 = vmatpush1.msra.mxu0 0.0
  %801 = vmatprep.subr.mxu0 0.0
  %802 = vmatpush1.msra.mxu0 0.0
  %803 = vmatprep.subr.mxu0 0.0
  %804 = vmatpush1.msra.mxu0 0.0
  %805 = vmatprep.subr.mxu0 0.0
  %806 = vmatpush1.msra.mxu0 0.0
  %807 = vmatprep.subr.mxu0 0.0
  %808 = vmatpush1.msra.mxu0 0.0
  %809 = vmatprep.subr.mxu0 0.0
  %810 = vmatpush1.msra.mxu0 0.0
  %811 = vmatprep.subr.mxu0 0.0
  %812 = vmatpush1.msra.mxu0 0.0
  %813 = vmatprep.subr.mxu0 0.0
  %814 = vmatpush1.msra.mxu0 0.0
  %815 = vmatprep.subr.mxu0 0.0
  %816 = vmatpush1.msra.mxu0 0.0
  %817 = vmatprep.subr.mxu0 0.0
  %818 = vmatpush1.msra.mxu0 0.0
  %819 = vmatprep.subr.mxu0 0.0
  %820 = vmatpush1.msra.mxu0 0.0
  %821 = vmatprep.subr.mxu0 0.0
  %822 = vmatpush1.msra.mxu0 0.0
  %823 = vmatprep.subr.mxu0 0.0
  %824 = vmatpush1.msra.mxu0 0.0
  %825 = vmatprep.subr.mxu0 0.0
  %826 = vmatpush1.msra.mxu0 0.0
  %827 = vmatprep.subr.mxu0 0.0
  %828 = vmatpush1.msra.mxu0 0.0
  %829 = vmatprep.subr.mxu0 0.0
  %830 = vmatpush1.msra.mxu0 0.0
  %831 = vmatprep.subr.mxu0 0.0
  %832 = vmatpush1.msra.mxu0 0.0
  %833 = vmatprep.subr.mxu0 0.0
  %834 = vmatpush1.msra.mxu0 0.0
  %835 = vmatprep.subr.mxu0 0.0
  %836 = vmatpush1.msra.mxu0 0.0
  %837 = vmatprep.subr.mxu0 0.0
  %838 = vmatpush1.msra.mxu0 0.0
  %839 = vmatprep.subr.mxu0 0.0
  %840 = vmatpush1.msra.mxu0 0.0
  %841 = vmatprep.subr.mxu0 0.0
  %842 = vmatpush1.msra.mxu0 0.0
  %843 = vmatprep.subr.mxu0 0.0
  %844 = vmatpush1.msra.mxu0 0.0
  %845 = vmatprep.subr.mxu0 0.0
  %846 = vmatpush1.msra.mxu0 0.0
  %847 = vmatprep.subr.mxu0 0.0
  %848 = vmatpush1.msra.mxu0 0.0
  %849 = vmatprep.subr.mxu0 0.0
  %850 = vmatpush1.msra.mxu0 0.0
  %851 = vmatprep.subr.mxu0 0.0
  %852 = vmatpush1.msra.mxu0 0.0
  %853 = vmatprep.subr.mxu0 0.0
  %854 = vmatpush1.msra.mxu0 0.0
  %855 = vmatprep.mubr.f32.mxu0 0.0
  %856 = vmatmul.mubr.f32.gmra.mrb[0].mxu0 %v789
  %v857 = vpop.f32.mrb[0].mxu0
  %v858 = vadd.f32 0.0, %v857
  %v859 = vpop.f32.mrb[0].mxu0
  %860 = vdwg.mxu0
  %862 = vrot.lane.b32.xlu0 %v282, 120
  %v863 = vpop.permute.xlu0 %862
  %v866 = vsel %vm285, %v783, 0
  %868 = vmatprep.subr.mxu0 0.0
  %869 = vmatpush1.msra.mxu0 %v863
  %870 = vmatprep.subr.mxu0 0.0
  %871 = vmatpush1.msra.mxu0 0.0
  %872 = vmatprep.subr.mxu0 0.0
  %873 = vmatpush1.msra.mxu0 0.0
  %874 = vmatprep.subr.mxu0 0.0
  %875 = vmatpush1.msra.mxu0 0.0
  %876 = vmatprep.subr.mxu0 0.0
  %877 = vmatpush1.msra.mxu0 0.0
  %878 = vmatprep.subr.mxu0 0.0
  %879 = vmatpush1.msra.mxu0 0.0
  %880 = vmatprep.subr.mxu0 0.0
  %881 = vmatpush1.msra.mxu0 0.0
  %882 = vmatprep.subr.mxu0 0.0
  %883 = vmatpush1.msra.mxu0 0.0
  %884 = vmatprep.subr.mxu0 0.0
  %885 = vmatpush1.msra.mxu0 0.0
  %886 = vmatprep.subr.mxu0 0.0
  %887 = vmatpush1.msra.mxu0 0.0
  %888 = vmatprep.subr.mxu0 0.0
  %889 = vmatpush1.msra.mxu0 0.0
  %890 = vmatprep.subr.mxu0 0.0
  %891 = vmatpush1.msra.mxu0 0.0
  %892 = vmatprep.subr.mxu0 0.0
  %893 = vmatpush1.msra.mxu0 0.0
  %894 = vmatprep.subr.mxu0 0.0
  %895 = vmatpush1.msra.mxu0 0.0
  %896 = vmatprep.subr.mxu0 0.0
  %897 = vmatpush1.msra.mxu0 0.0
  %898 = vmatprep.subr.mxu0 0.0
  %899 = vmatpush1.msra.mxu0 0.0
  %900 = vmatprep.subr.mxu0 0.0
  %901 = vmatpush1.msra.mxu0 0.0
  %902 = vmatprep.subr.mxu0 0.0
  %903 = vmatpush1.msra.mxu0 0.0
  %904 = vmatprep.subr.mxu0 0.0
  %905 = vmatpush1.msra.mxu0 0.0
  %906 = vmatprep.subr.mxu0 0.0
  %907 = vmatpush1.msra.mxu0 0.0
  %908 = vmatprep.subr.mxu0 0.0
  %909 = vmatpush1.msra.mxu0 0.0
  %910 = vmatprep.subr.mxu0 0.0
  %911 = vmatpush1.msra.mxu0 0.0
  %912 = vmatprep.subr.mxu0 0.0
  %913 = vmatpush1.msra.mxu0 0.0
  %914 = vmatprep.subr.mxu0 0.0
  %915 = vmatpush1.msra.mxu0 0.0
  %916 = vmatprep.subr.mxu0 0.0
  %917 = vmatpush1.msra.mxu0 0.0
  %918 = vmatprep.subr.mxu0 0.0
  %919 = vmatpush1.msra.mxu0 0.0
  %920 = vmatprep.subr.mxu0 0.0
  %921 = vmatpush1.msra.mxu0 0.0
  %922 = vmatprep.subr.mxu0 0.0
  %923 = vmatpush1.msra.mxu0 0.0
  %924 = vmatprep.subr.mxu0 0.0
  %925 = vmatpush1.msra.mxu0 0.0
  %926 = vmatprep.subr.mxu0 0.0
  %927 = vmatpush1.msra.mxu0 0.0
  %928 = vmatprep.subr.mxu0 0.0
  %929 = vmatpush1.msra.mxu0 0.0
  %930 = vmatprep.subr.mxu0 0.0
  %931 = vmatpush1.msra.mxu0 0.0
  %932 = vmatprep.mubr.f32.mxu0 0.0
  %933 = vmatmul.mubr.f32.gmra.mrb[0].mxu0 %v866
  %v934 = vpop.f32.mrb[0].mxu0
  %v935 = vadd.f32 0.0, %v934
  %v936 = vpop.f32.mrb[0].mxu0
  %937 = vdwg.mxu0
  %938 = vrot.lane.b32.xlu0 %v109, 112
  %v939 = vpop.permute.xlu0 %938
  %940 = vrot.lane.b32.xlu0 %v193, 112
  %v941 = vpop.permute.xlu0 %940
  %v942 = vsel %vm285, %v939, 0
  %v944 = vsel %vm285, %v941, 0
  %946 = vmatprep.subr.mxu0 0.0
  %947 = vmatpush1.xpose.msra.mxu0 %v944
  %948 = vmatprep.subr.mxu0 0.0
  %949 = vmatpush1.xpose.msra.mxu0 0.0
  %950 = vmatprep.subr.mxu0 0.0
  %951 = vmatpush1.xpose.msra.mxu0 0.0
  %952 = vmatprep.subr.mxu0 0.0
  %953 = vmatpush1.xpose.msra.mxu0 0.0
  %954 = vmatprep.subr.mxu0 0.0
  %955 = vmatpush1.xpose.msra.mxu0 0.0
  %956 = vmatprep.subr.mxu0 0.0
  %957 = vmatpush1.xpose.msra.mxu0 0.0
  %958 = vmatprep.subr.mxu0 0.0
  %959 = vmatpush1.xpose.msra.mxu0 0.0
  %960 = vmatprep.subr.mxu0 0.0
  %961 = vmatpush1.xpose.msra.mxu0 0.0
  %962 = vmatprep.subr.mxu0 0.0
  %963 = vmatpush1.xpose.msra.mxu0 0.0
  %964 = vmatprep.subr.mxu0 0.0
  %965 = vmatpush1.xpose.msra.mxu0 0.0
  %966 = vmatprep.subr.mxu0 0.0
  %967 = vmatpush1.xpose.msra.mxu0 0.0
  %968 = vmatprep.subr.mxu0 0.0
  %969 = vmatpush1.xpose.msra.mxu0 0.0
  %970 = vmatprep.subr.mxu0 0.0
  %971 = vmatpush1.xpose.msra.mxu0 0.0
  %972 = vmatprep.subr.mxu0 0.0
  %973 = vmatpush1.xpose.msra.mxu0 0.0
  %974 = vmatprep.subr.mxu0 0.0
  %975 = vmatpush1.xpose.msra.mxu0 0.0
  %976 = vmatprep.subr.mxu0 0.0
  %977 = vmatpush1.xpose.msra.mxu0 0.0
  %978 = vmatprep.subr.mxu0 0.0
  %979 = vmatpush1.xpose.msra.mxu0 0.0
  %980 = vmatprep.subr.mxu0 0.0
  %981 = vmatpush1.xpose.msra.mxu0 0.0
  %982 = vmatprep.subr.mxu0 0.0
  %983 = vmatpush1.xpose.msra.mxu0 0.0
  %984 = vmatprep.subr.mxu0 0.0
  %985 = vmatpush1.xpose.msra.mxu0 0.0
  %986 = vmatprep.subr.mxu0 0.0
  %987 = vmatpush1.xpose.msra.mxu0 0.0
  %988 = vmatprep.subr.mxu0 0.0
  %989 = vmatpush1.xpose.msra.mxu0 0.0
  %990 = vmatprep.subr.mxu0 0.0
  %991 = vmatpush1.xpose.msra.mxu0 0.0
  %992 = vmatprep.subr.mxu0 0.0
  %993 = vmatpush1.xpose.msra.mxu0 0.0
  %994 = vmatprep.subr.mxu0 0.0
  %995 = vmatpush1.xpose.msra.mxu0 0.0
  %996 = vmatprep.subr.mxu0 0.0
  %997 = vmatpush1.xpose.msra.mxu0 0.0
  %998 = vmatprep.subr.mxu0 0.0
  %999 = vmatpush1.xpose.msra.mxu0 0.0
  %1000 = vmatprep.subr.mxu0 0.0
  %1001 = vmatpush1.xpose.msra.mxu0 0.0
  %1002 = vmatprep.subr.mxu0 0.0
  %1003 = vmatpush1.xpose.msra.mxu0 0.0
  %1004 = vmatprep.subr.mxu0 0.0
  %1005 = vmatpush1.xpose.msra.mxu0 0.0
  %1006 = vmatprep.subr.mxu0 0.0
  %1007 = vmatpush1.xpose.msra.mxu0 0.0
  %1008 = vmatprep.subr.mxu0 0.0
  %1009 = vmatpush1.xpose.msra.mxu0 0.0
  %1010 = vmatprep.mubr.f32.mxu0 0.0
  %1011 = vmatmul.mubr.f32.gmra.mrb[0].mxu0 %v942
  %v1012 = vpop.f32.mrb[0].mxu0
  %v1013 = vadd.f32 0.0, %v1012
  %v1014 = vpop.f32.mrb[0].mxu0
  %1015 = vdwg.mxu0
  %1016 = vrot.lane.b32.xlu0 %v114, 112
  %v1017 = vpop.permute.xlu0 %1016
  %1018 = vrot.lane.b32.xlu0 %v198, 112
  %v1019 = vpop.permute.xlu0 %1018
  %v1020 = vsel %vm285, %v1017, 0
  %v1022 = vsel %vm285, %v1019, 0
  %1024 = vmatprep.subr.mxu0 0.0
  %1025 = vmatpush1.xpose.msra.mxu0 %v1022
  %1026 = vmatprep.subr.mxu0 0.0
  %1027 = vmatpush1.xpose.msra.mxu0 0.0
  %1028 = vmatprep.subr.mxu0 0.0
  %1029 = vmatpush1.xpose.msra.mxu0 0.0
  %1030 = vmatprep.subr.mxu0 0.0
  %1031 = vmatpush1.xpose.msra.mxu0 0.0
  %1032 = vmatprep.subr.mxu0 0.0
  %1033 = vmatpush1.xpose.msra.mxu0 0.0
  %1034 = vmatprep.subr.mxu0 0.0
  %1035 = vmatpush1.xpose.msra.mxu0 0.0
  %1036 = vmatprep.subr.mxu0 0.0
  %1037 = vmatpush1.xpose.msra.mxu0 0.0
  %1038 = vmatprep.subr.mxu0 0.0
  %1039 = vmatpush1.xpose.msra.mxu0 0.0
  %1040 = vmatprep.subr.mxu0 0.0
  %1041 = vmatpush1.xpose.msra.mxu0 0.0
  %1042 = vmatprep.subr.mxu0 0.0
  %1043 = vmatpush1.xpose.msra.mxu0 0.0
  %1044 = vmatprep.subr.mxu0 0.0
  %1045 = vmatpush1.xpose.msra.mxu0 0.0
  %1046 = vmatprep.subr.mxu0 0.0
  %1047 = vmatpush1.xpose.msra.mxu0 0.0
  %1048 = vmatprep.subr.mxu0 0.0
  %1049 = vmatpush1.xpose.msra.mxu0 0.0
  %1050 = vmatprep.subr.mxu0 0.0
  %1051 = vmatpush1.xpose.msra.mxu0 0.0
  %1052 = vmatprep.subr.mxu0 0.0
  %1053 = vmatpush1.xpose.msra.mxu0 0.0
  %1054 = vmatprep.subr.mxu0 0.0
  %1055 = vmatpush1.xpose.msra.mxu0 0.0
  %1056 = vmatprep.subr.mxu0 0.0
  %1057 = vmatpush1.xpose.msra.mxu0 0.0
  %1058 = vmatprep.subr.mxu0 0.0
  %1059 = vmatpush1.xpose.msra.mxu0 0.0
  %1060 = vmatprep.subr.mxu0 0.0
  %1061 = vmatpush1.xpose.msra.mxu0 0.0
  %1062 = vmatprep.subr.mxu0 0.0
  %1063 = vmatpush1.xpose.msra.mxu0 0.0
  %1064 = vmatprep.subr.mxu0 0.0
  %1065 = vmatpush1.xpose.msra.mxu0 0.0
  %1066 = vmatprep.subr.mxu0 0.0
  %1067 = vmatpush1.xpose.msra.mxu0 0.0
  %1068 = vmatprep.subr.mxu0 0.0
  %1069 = vmatpush1.xpose.msra.mxu0 0.0
  %1070 = vmatprep.subr.mxu0 0.0
  %1071 = vmatpush1.xpose.msra.mxu0 0.0
  %1072 = vmatprep.subr.mxu0 0.0
  %1073 = vmatpush1.xpose.msra.mxu0 0.0
  %1074 = vmatprep.subr.mxu0 0.0
  %1075 = vmatpush1.xpose.msra.mxu0 0.0
  %1076 = vmatprep.subr.mxu0 0.0
  %1077 = vmatpush1.xpose.msra.mxu0 0.0
  %1078 = vmatprep.subr.mxu0 0.0
  %1079 = vmatpush1.xpose.msra.mxu0 0.0
  %1080 = vmatprep.subr.mxu0 0.0
  %1081 = vmatpush1.xpose.msra.mxu0 0.0
  %1082 = vmatprep.subr.mxu0 0.0
  %1083 = vmatpush1.xpose.msra.mxu0 0.0
  %1084 = vmatprep.subr.mxu0 0.0
  %1085 = vmatpush1.xpose.msra.mxu0 0.0
  %1086 = vmatprep.subr.mxu0 0.0
  %1087 = vmatpush1.xpose.msra.mxu0 0.0
  %1088 = vmatprep.mubr.f32.mxu0 0.0
  %1089 = vmatmul.mubr.f32.gmra.mrb[0].mxu0 %v1020
  %v1090 = vpop.f32.mrb[0].mxu0
  %v1091 = vadd.f32 0.0, %v1090
  %v1092 = vpop.f32.mrb[0].mxu0
  %1093 = vdwg.mxu0
  %v1094 = vsel %vm285, %v1013, -inf
  %1095 = vmax.xlane.f32.xlu0 %v1094
  %v1096 = vpop.xlane.xlu0 %1095
  %v1097 = vsel %vm285, %v1091, -inf
  %1098 = vmax.xlane.f32.xlu0 %v1097
  %v1099 = vpop.xlane.xlu0 %1098
  %v1100 = vsub.f32 %v1013, %v1096
  %v1101 = vsub.f32 %v1091, %v1099
  %v1102 = vmul.f32 %v1100, 1.442695
  %v1103 = vpow.pop %v1102
  %v1104 = vmul.f32 %v1101, 1.442695
  %v1105 = vpow.pop %v1104
  %v1106 = vsel %vm285, %v1103, 0.0
  %1107 = vadd.xlane.f32.xlu0 %v1106
  %v1108 = vpop.xlane.xlu0 %1107
  %v1109 = vsel %vm285, %v1105, 0.0
  %1110 = vadd.xlane.f32.xlu0 %v1109
  %v1111 = vpop.xlane.xlu0 %1110
  %v1112 = vrcp.pop %v1108
  %v1113 = vmul.f32 %v1103, %v1112
  %v1114 = vrcp.pop %v1111
  %v1115 = vmul.f32 %v1105, %v1114
  %1116 = vrot.lane.b32.xlu0 %v277, 112
  %v1117 = vpop.permute.xlu0 %1116
  %v1120 = vsel %vm285, %v1113, 0
  %1122 = vmatprep.subr.mxu0 0.0
  %1123 = vmatpush1.msra.mxu0 %v1117
  %1124 = vmatprep.subr.mxu0 0.0
  %1125 = vmatpush1.msra.mxu0 0.0
  %1126 = vmatprep.subr.mxu0 0.0
  %1127 = vmatpush1.msra.mxu0 0.0
  %1128 = vmatprep.subr.mxu0 0.0
  %1129 = vmatpush1.msra.mxu0 0.0
  %1130 = vmatprep.subr.mxu0 0.0
  %1131 = vmatpush1.msra.mxu0 0.0
  %1132 = vmatprep.subr.mxu0 0.0
  %1133 = vmatpush1.msra.mxu0 0.0
  %1134 = vmatprep.subr.mxu0 0.0
  %1135 = vmatpush1.msra.mxu0 0.0
  %1136 = vmatprep.subr.mxu0 0.0
  %1137 = vmatpush1.msra.mxu0 0.0
  %1138 = vmatprep.subr.mxu0 0.0
  %1139 = vmatpush1.msra.mxu0 0.0
  %1140 = vmatprep.subr.mxu0 0.0
  %1141 = vmatpush1.msra.mxu0 0.0
  %1142 = vmatprep.subr.mxu0 0.0
  %1143 = vmatpush1.msra.mxu0 0.0
  %1144 = vmatprep.subr.mxu0 0.0
  %1145 = vmatpush1.msra.mxu0 0.0
  %1146 = vmatprep.subr.mxu0 0.0
  %1147 = vmatpush1.msra.mxu0 0.0
  %1148 = vmatprep.subr.mxu0 0.0
  %1149 = vmatpush1.msra.mxu0 0.0
  %1150 = vmatprep.subr.mxu0 0.0
  %1151 = vmatpush1.msra.mxu0 0.0
  %1152 = vmatprep.subr.mxu0 0.0
  %1153 = vmatpush1.msra.mxu0 0.0
  %1154 = vmatprep.subr.mxu0 0.0
  %1155 = vmatpush1.msra.mxu0 0.0
  %1156 = vmatprep.subr.mxu0 0.0
  %1157 = vmatpush1.msra.mxu0 0.0
  %1158 = vmatprep.subr.mxu0 0.0
  %1159 = vmatpush1.msra.mxu0 0.0
  %1160 = vmatprep.subr.mxu0 0.0
  %1161 = vmatpush1.msra.mxu0 0.0
  %1162 = vmatprep.subr.mxu0 0.0
  %1163 = vmatpush1.msra.mxu0 0.0
  %1164 = vmatprep.subr.mxu0 0.0
  %1165 = vmatpush1.msra.mxu0 0.0
  %1166 = vmatprep.subr.mxu0 0.0
  %1167 = vmatpush1.msra.mxu0 0.0
  %1168 = vmatprep.subr.mxu0 0.0
  %1169 = vmatpush1.msra.mxu0 0.0
  %1170 = vmatprep.subr.mxu0 0.0
  %1171 = vmatpush1.msra.mxu0 0.0
  %1172 = vmatprep.subr.mxu0 0.0
  %1173 = vmatpush1.msra.mxu0 0.0
  %1174 = vmatprep.subr.mxu0 0.0
  %1175 = vmatpush1.msra.mxu0 0.0
  %1176 = vmatprep.subr.mxu0 0.0
  %1177 = vmatpush1.msra.mxu0 0.0
  %1178 = vmatprep.subr.mxu0 0.0
  %1179 = vmatpush1.msra.mxu0 0.0
  %1180 = vmatprep.subr.mxu0 0.0
  %1181 = vmatpush1.msra.mxu0 0.0
  %1182 = vmatprep.subr.mxu0 0.0
  %1183 = vmatpush1.msra.mxu0 0.0
  %1184 = vmatprep.subr.mxu0 0.0
  %1185 = vmatpush1.msra.mxu0 0.0
  %1186 = vmatprep.mubr.f32.mxu0 0.0
  %1187 = vmatmul.mubr.f32.gmra.mrb[0].mxu0 %v1120
  %v1188 = vpop.f32.mrb[0].mxu0
  %v1189 = vadd.f32 0.0, %v1188
  %v1190 = vpop.f32.mrb[0].mxu0
  %1191 = vdwg.mxu0
  %1192 = vrot.lane.b32.xlu0 %v282, 112
  %v1193 = vpop.permute.xlu0 %1192
  %v1196 = vsel %vm285, %v1115, 0
  %1198 = vmatprep.subr.mxu0 0.0
  %1199 = vmatpush1.msra.mxu0 %v1193
  %1200 = vmatprep.subr.mxu0 0.0
  %1201 = vmatpush1.msra.mxu0 0.0
  %1202 = vmatprep.subr.mxu0 0.0
  %1203 = vmatpush1.msra.mxu0 0.0
  %1204 = vmatprep.subr.mxu0 0.0
  %1205 = vmatpush1.msra.mxu0 0.0
  %1206 = vmatprep.subr.mxu0 0.0
  %1207 = vmatpush1.msra.mxu0 0.0
  %1208 = vmatprep.subr.mxu0 0.0
  %1209 = vmatpush1.msra.mxu0 0.0
  %1210 = vmatprep.subr.mxu0 0.0
  %1211 = vmatpush1.msra.mxu0 0.0
  %1212 = vmatprep.subr.mxu0 0.0
  %1213 = vmatpush1.msra.mxu0 0.0
  %1214 = vmatprep.subr.mxu0 0.0
  %1215 = vmatpush1.msra.mxu0 0.0
  %1216 = vmatprep.subr.mxu0 0.0
  %1217 = vmatpush1.msra.mxu0 0.0
  %1218 = vmatprep.subr.mxu0 0.0
  %1219 = vmatpush1.msra.mxu0 0.0
  %1220 = vmatprep.subr.mxu0 0.0
  %1221 = vmatpush1.msra.mxu0 0.0
  %1222 = vmatprep.subr.mxu0 0.0
  %1223 = vmatpush1.msra.mxu0 0.0
  %1224 = vmatprep.subr.mxu0 0.0
  %1225 = vmatpush1.msra.mxu0 0.0
  %1226 = vmatprep.subr.mxu0 0.0
  %1227 = vmatpush1.msra.mxu0 0.0
  %1228 = vmatprep.subr.mxu0 0.0
  %1229 = vmatpush1.msra.mxu0 0.0
  %1230 = vmatprep.subr.mxu0 0.0
  %1231 = vmatpush1.msra.mxu0 0.0
  %1232 = vmatprep.subr.mxu0 0.0
  %1233 = vmatpush1.msra.mxu0 0.0
  %1234 = vmatprep.subr.mxu0 0.0
  %1235 = vmatpush1.msra.mxu0 0.0
  %1236 = vmatprep.subr.mxu0 0.0
  %1237 = vmatpush1.msra.mxu0 0.0
  %1238 = vmatprep.subr.mxu0 0.0
  %1239 = vmatpush1.msra.mxu0 0.0
  %1240 = vmatprep.subr.mxu0 0.0
  %1241 = vmatpush1.msra.mxu0 0.0
  %1242 = vmatprep.subr.mxu0 0.0
  %1243 = vmatpush1.msra.mxu0 0.0
  %1244 = vmatprep.subr.mxu0 0.0
  %1245 = vmatpush1.msra.mxu0 0.0
  %1246 = vmatprep.subr.mxu0 0.0
  %1247 = vmatpush1.msra.mxu0 0.0
  %1248 = vmatprep.subr.mxu0 0.0
  %1249 = vmatpush1.msra.mxu0 0.0
  %1250 = vmatprep.subr.mxu0 0.0
  %1251 = vmatpush1.msra.mxu0 0.0
  %1252 = vmatprep.subr.mxu0 0.0
  %1253 = vmatpush1.msra.mxu0 0.0
  %1254 = vmatprep.subr.mxu0 0.0
  %1255 = vmatpush1.msra.mxu0 0.0
  %1256 = vmatprep.subr.mxu0 0.0
  %1257 = vmatpush1.msra.mxu0 0.0
  %1258 = vmatprep.subr.mxu0 0.0
  %1259 = vmatpush1.msra.mxu0 0.0
  %1260 = vmatprep.subr.mxu0 0.0
  %1261 = vmatpush1.msra.mxu0 0.0
  %1262 = vmatprep.mubr.f32.mxu0 0.0
  %1263 = vmatmul.mubr.f32.gmra.mrb[0].mxu0 %v1196
  %v1264 = vpop.f32.mrb[0].mxu0
  %v1265 = vadd.f32 0.0, %v1264
  %v1266 = vpop.f32.mrb[0].mxu0
  %1267 = vdwg.mxu0
  %1268 = vrot.lane.b32.xlu0 %v109, 104
  %v1269 = vpop.permute.xlu0 %1268
  %1270 = vrot.lane.b32.xlu0 %v193, 104
  %v1271 = vpop.permute.xlu0 %1270
  %v1272 = vsel %vm285, %v1269, 0
  %v1274 = vsel %vm285, %v1271, 0
  %1276 = vmatprep.subr.mxu0 0.0
  %1277 = vmatpush1.xpose.msra.mxu0 %v1274
  %1278 = vmatprep.subr.mxu0 0.0
  %1279 = vmatpush1.xpose.msra.mxu0 0.0
  %1280 = vmatprep.subr.mxu0 0.0
  %1281 = vmatpush1.xpose.msra.mxu0 0.0
  %1282 = vmatprep.subr.mxu0 0.0
  %1283 = vmatpush1.xpose.msra.mxu0 0.0
  %1284 = vmatprep.subr.mxu0 0.0
  %1285 = vmatpush1.xpose.msra.mxu0 0.0
  %1286 = vmatprep.subr.mxu0 0.0
  %1287 = vmatpush1.xpose.msra.mxu0 0.0
  %1288 = vmatprep.subr.mxu0 0.0
  %1289 = vmatpush1.xpose.msra.mxu0 0.0
  %1290 = vmatprep.subr.mxu0 0.0
  %1291 = vmatpush1.xpose.msra.mxu0 0.0
  %1292 = vmatprep.subr.mxu0 0.0
  %1293 = vmatpush1.xpose.msra.mxu0 0.0
  %1294 = vmatprep.subr.mxu0 0.0
  %1295 = vmatpush1.xpose.msra.mxu0 0.0
  %1296 = vmatprep.subr.mxu0 0.0
  %1297 = vmatpush1.xpose.msra.mxu0 0.0
  %1298 = vmatprep.subr.mxu0 0.0
  %1299 = vmatpush1.xpose.msra.mxu0 0.0
  %1300 = vmatprep.subr.mxu0 0.0
  %1301 = vmatpush1.xpose.msra.mxu0 0.0
  %1302 = vmatprep.subr.mxu0 0.0
  %1303 = vmatpush1.xpose.msra.mxu0 0.0
  %1304 = vmatprep.subr.mxu0 0.0
  %1305 = vmatpush1.xpose.msra.mxu0 0.0
  %1306 = vmatprep.subr.mxu0 0.0
  %1307 = vmatpush1.xpose.msra.mxu0 0.0
  %1308 = vmatprep.subr.mxu0 0.0
  %1309 = vmatpush1.xpose.msra.mxu0 0.0
  %1310 = vmatprep.subr.mxu0 0.0
  %1311 = vmatpush1.xpose.msra.mxu0 0.0
  %1312 = vmatprep.subr.mxu0 0.0
  %1313 = vmatpush1.xpose.msra.mxu0 0.0
  %1314 = vmatprep.subr.mxu0 0.0
  %1315 = vmatpush1.xpose.msra.mxu0 0.0
  %1316 = vmatprep.subr.mxu0 0.0
  %1317 = vmatpush1.xpose.msra.mxu0 0.0
  %1318 = vmatprep.subr.mxu0 0.0
  %1319 = vmatpush1.xpose.msra.mxu0 0.0
  %1320 = vmatprep.subr.mxu0 0.0
  %1321 = vmatpush1.xpose.msra.mxu0 0.0
  %1322 = vmatprep.subr.mxu0 0.0
  %1323 = vmatpush1.xpose.msra.mxu0 0.0
  %1324 = vmatprep.subr.mxu0 0.0
  %1325 = vmatpush1.xpose.msra.mxu0 0.0
  %1326 = vmatprep.subr.mxu0 0.0
  %1327 = vmatpush1.xpose.msra.mxu0 0.0
  %1328 = vmatprep.subr.mxu0 0.0
  %1329 = vmatpush1.xpose.msra.mxu0 0.0
  %1330 = vmatprep.subr.mxu0 0.0
  %1331 = vmatpush1.xpose.msra.mxu0 0.0
  %1332 = vmatprep.subr.mxu0 0.0
  %1333 = vmatpush1.xpose.msra.mxu0 0.0
  %1334 = vmatprep.subr.mxu0 0.0
  %1335 = vmatpush1.xpose.msra.mxu0 0.0
  %1336 = vmatprep.subr.mxu0 0.0
  %1337 = vmatpush1.xpose.msra.mxu0 0.0
  %1338 = vmatprep.subr.mxu0 0.0
  %1339 = vmatpush1.xpose.msra.mxu0 0.0
  %1340 = vmatprep.mubr.f32.mxu0 0.0
  %1341 = vmatmul.mubr.f32.gmra.mrb[0].mxu0 %v1272
  %v1342 = vpop.f32.mrb[0].mxu0
  %v1343 = vadd.f32 0.0, %v1342
  %v1344 = vpop.f32.mrb[0].mxu0
  %1345 = vdwg.mxu0
  %1346 = vrot.lane.b32.xlu0 %v114, 104
  %v1347 = vpop.permute.xlu0 %1346
  %1348 = vrot.lane.b32.xlu0 %v198, 104
  %v1349 = vpop.permute.xlu0 %1348
  %v1350 = vsel %vm285, %v1347, 0
  %v1352 = vsel %vm285, %v1349, 0
  %1354 = vmatprep.subr.mxu0 0.0
  %1355 = vmatpush1.xpose.msra.mxu0 %v1352
  %1356 = vmatprep.subr.mxu0 0.0
  %1357 = vmatpush1.xpose.msra.mxu0 0.0
  %1358 = vmatprep.subr.mxu0 0.0
  %1359 = vmatpush1.xpose.msra.mxu0 0.0
  %1360 = vmatprep.subr.mxu0 0.0
  %1361 = vmatpush1.xpose.msra.mxu0 0.0
  %1362 = vmatprep.subr.mxu0 0.0
  %1363 = vmatpush1.xpose.msra.mxu0 0.0
  %1364 = vmatprep.subr.mxu0 0.0
  %1365 = vmatpush1.xpose.msra.mxu0 0.0
  %1366 = vmatprep.subr.mxu0 0.0
  %1367 = vmatpush1.xpose.msra.mxu0 0.0
  %1368 = vmatprep.subr.mxu0 0.0
  %1369 = vmatpush1.xpose.msra.mxu0 0.0
  %1370 = vmatprep.subr.mxu0 0.0
  %1371 = vmatpush1.xpose.msra.mxu0 0.0
  %1372 = vmatprep.subr.mxu0 0.0
  %1373 = vmatpush1.xpose.msra.mxu0 0.0
  %1374 = vmatprep.subr.mxu0 0.0
  %1375 = vmatpush1.xpose.msra.mxu0 0.0
  %1376 = vmatprep.subr.mxu0 0.0
  %1377 = vmatpush1.xpose.msra.mxu0 0.0
  %1378 = vmatprep.subr.mxu0 0.0
  %1379 = vmatpush1.xpose.msra.mxu0 0.0
  %1380 = vmatprep.subr.mxu0 0.0
  %1381 = vmatpush1.xpose.msra.mxu0 0.0
  %1382 = vmatprep.subr.mxu0 0.0
  %1383 = vmatpush1.xpose.msra.mxu0 0.0
  %1384 = vmatprep.subr.mxu0 0.0
  %1385 = vmatpush1.xpose.msra.mxu0 0.0
  %1386 = vmatprep.subr.mxu0 0.0
  %1387 = vmatpush1.xpose.msra.mxu0 0.0
  %1388 = vmatprep.subr.mxu0 0.0
  %1389 = vmatpush1.xpose.msra.mxu0 0.0
  %1390 = vmatprep.subr.mxu0 0.0
  %1391 = vmatpush1.xpose.msra.mxu0 0.0
  %1392 = vmatprep.subr.mxu0 0.0
  %1393 = vmatpush1.xpose.msra.mxu0 0.0
  %1394 = vmatprep.subr.mxu0 0.0
  %1395 = vmatpush1.xpose.msra.mxu0 0.0
  %1396 = vmatprep.subr.mxu0 0.0
  %1397 = vmatpush1.xpose.msra.mxu0 0.0
  %1398 = vmatprep.subr.mxu0 0.0
  %1399 = vmatpush1.xpose.msra.mxu0 0.0
  %1400 = vmatprep.subr.mxu0 0.0
  %1401 = vmatpush1.xpose.msra.mxu0 0.0
  %1402 = vmatprep.subr.mxu0 0.0
  %1403 = vmatpush1.xpose.msra.mxu0 0.0
  %1404 = vmatprep.subr.mxu0 0.0
  %1405 = vmatpush1.xpose.msra.mxu0 0.0
  %1406 = vmatprep.subr.mxu0 0.0
  %1407 = vmatpush1.xpose.msra.mxu0 0.0
  %1408 = vmatprep.subr.mxu0 0.0
  %1409 = vmatpush1.xpose.msra.mxu0 0.0
  %1410 = vmatprep.subr.mxu0 0.0
  %1411 = vmatpush1.xpose.msra.mxu0 0.0
  %1412 = vmatprep.subr.mxu0 0.0
  %1413 = vmatpush1.xpose.msra.mxu0 0.0
  %1414 = vmatprep.subr.mxu0 0.0
  %1415 = vmatpush1.xpose.msra.mxu0 0.0
  %1416 = vmatprep.subr.mxu0 0.0
  %1417 = vmatpush1.xpose.msra.mxu0 0.0
  %1418 = vmatprep.mubr.f32.mxu0 0.0
  %1419 = vmatmul.mubr.f32.gmra.mrb[0].mxu0 %v1350
  %v1420 = vpop.f32.mrb[0].mxu0
  %v1421 = vadd.f32 0.0, %v1420
  %v1422 = vpop.f32.mrb[0].mxu0
  %1423 = vdwg.mxu0
  %v1424 = vsel %vm285, %v1343, -inf
  %1425 = vmax.xlane.f32.xlu0 %v1424
  %v1426 = vpop.xlane.xlu0 %1425
  %v1427 = vsel %vm285, %v1421, -inf
  %1428 = vmax.xlane.f32.xlu0 %v1427
  %v1429 = vpop.xlane.xlu0 %1428
  %v1430 = vsub.f32 %v1343, %v1426
  %v1431 = vsub.f32 %v1421, %v1429
  %v1432 = vmul.f32 %v1430, 1.442695
  %v1433 = vpow.pop %v1432
  %v1434 = vmul.f32 %v1431, 1.442695
  %v1435 = vpow.pop %v1434
  %v1436 = vsel %vm285, %v1433, 0.0
  %1437 = vadd.xlane.f32.xlu0 %v1436
  %v1438 = vpop.xlane.xlu0 %1437
  %v1439 = vsel %vm285, %v1435, 0.0
  %1440 = vadd.xlane.f32.xlu0 %v1439
  %v1441 = vpop.xlane.xlu0 %1440
  %v1442 = vrcp.pop %v1438
  %v1443 = vmul.f32 %v1433, %v1442
  %v1444 = vrcp.pop %v1441
  %v1445 = vmul.f32 %v1435, %v1444
  %1446 = vrot.lane.b32.xlu0 %v277, 104
  %v1447 = vpop.permute.xlu0 %1446
  %v1450 = vsel %vm285, %v1443, 0
  %1452 = vmatprep.subr.mxu0 0.0
  %1453 = vmatpush1.msra.mxu0 %v1447
  %1454 = vmatprep.subr.mxu0 0.0
  %1455 = vmatpush1.msra.mxu0 0.0
  %1456 = vmatprep.subr.mxu0 0.0
  %1457 = vmatpush1.msra.mxu0 0.0
  %1458 = vmatprep.subr.mxu0 0.0
  %1459 = vmatpush1.msra.mxu0 0.0
  %1460 = vmatprep.subr.mxu0 0.0
  %1461 = vmatpush1.msra.mxu0 0.0
  %1462 = vmatprep.subr.mxu0 0.0
  %1463 = vmatpush1.msra.mxu0 0.0
  %1464 = vmatprep.subr.mxu0 0.0
  %1465 = vmatpush1.msra.mxu0 0.0
  %1466 = vmatprep.subr.mxu0 0.0
  %1467 = vmatpush1.msra.mxu0 0.0
  %1468 = vmatprep.subr.mxu0 0.0
  %1469 = vmatpush1.msra.mxu0 0.0
  %1470 = vmatprep.subr.mxu0 0.0
  %1471 = vmatpush1.msra.mxu0 0.0
  %1472 = vmatprep.subr.mxu0 0.0
  %1473 = vmatpush1.msra.mxu0 0.0
  %1474 = vmatprep.subr.mxu0 0.0
  %1475 = vmatpush1.msra.mxu0 0.0
  %1476 = vmatprep.subr.mxu0 0.0
  %1477 = vmatpush1.msra.mxu0 0.0
  %1478 = vmatprep.subr.mxu0 0.0
  %1479 = vmatpush1.msra.mxu0 0.0
  %1480 = vmatprep.subr.mxu0 0.0
  %1481 = vmatpush1.msra.mxu0 0.0
  %1482 = vmatprep.subr.mxu0 0.0
  %1483 = vmatpush1.msra.mxu0 0.0
  %1484 = vmatprep.subr.mxu0 0.0
  %1485 = vmatpush1.msra.mxu0 0.0
  %1486 = vmatprep.subr.mxu0 0.0
  %1487 = vmatpush1.msra.mxu0 0.0
  %1488 = vmatprep.subr.mxu0 0.0
  %1489 = vmatpush1.msra.mxu0 0.0
  %1490 = vmatprep.subr.mxu0 0.0
  %1491 = vmatpush1.msra.mxu0 0.0
  %1492 = vmatprep.subr.mxu0 0.0
  %1493 = vmatpush1.msra.mxu0 0.0
  %1494 = vmatprep.subr.mxu0 0.0
  %1495 = vmatpush1.msra.mxu0 0.0
  %1496 = vmatprep.subr.mxu0 0.0
  %1497 = vmatpush1.msra.mxu0 0.0
  %1498 = vmatprep.subr.mxu0 0.0
  %1499 = vmatpush1.msra.mxu0 0.0
  %1500 = vmatprep.subr.mxu0 0.0
  %1501 = vmatpush1.msra.mxu0 0.0
  %1502 = vmatprep.subr.mxu0 0.0
  %1503 = vmatpush1.msra.mxu0 0.0
  %1504 = vmatprep.subr.mxu0 0.0
  %1505 = vmatpush1.msra.mxu0 0.0
  %1506 = vmatprep.subr.mxu0 0.0
  %1507 = vmatpush1.msra.mxu0 0.0
  %1508 = vmatprep.subr.mxu0 0.0
  %1509 = vmatpush1.msra.mxu0 0.0
  %1510 = vmatprep.subr.mxu0 0.0
  %1511 = vmatpush1.msra.mxu0 0.0
  %1512 = vmatprep.subr.mxu0 0.0
  %1513 = vmatpush1.msra.mxu0 0.0
  %1514 = vmatprep.subr.mxu0 0.0
  %1515 = vmatpush1.msra.mxu0 0.0
  %1516 = vmatprep.mubr.f32.mxu0 0.0
  %1517 = vmatmul.mubr.f32.gmra.mrb[0].mxu0 %v1450
  %v1518 = vpop.f32.mrb[0].mxu0
  %v1519 = vadd.f32 0.0, %v1518
  %v1520 = vpop.f32.mrb[0].mxu0
  %1521 = vdwg.mxu0
  %1522 = vrot.lane.b32.xlu0 %v282, 104
  %v1523 = vpop.permute.xlu0 %1522
  %v1526 = vsel %vm285, %v1445, 0
  %1528 = vmatprep.subr.mxu0 0.0
  %1529 = vmatpush1.msra.mxu0 %v1523
  %1530 = vmatprep.subr.mxu0 0.0
  %1531 = vmatpush1.msra.mxu0 0.0
  %1532 = vmatprep.subr.mxu0 0.0
  %1533 = vmatpush1.msra.mxu0 0.0
  %1534 = vmatprep.subr.mxu0 0.0
  %1535 = vmatpush1.msra.mxu0 0.0
  %1536 = vmatprep.subr.mxu0 0.0
  %1537 = vmatpush1.msra.mxu0 0.0
  %1538 = vmatprep.subr.mxu0 0.0
  %1539 = vmatpush1.msra.mxu0 0.0
  %1540 = vmatprep.subr.mxu0 0.0
  %1541 = vmatpush1.msra.mxu0 0.0
  %1542 = vmatprep.subr.mxu0 0.0
  %1543 = vmatpush1.msra.mxu0 0.0
  %1544 = vmatprep.subr.mxu0 0.0
  %1545 = vmatpush1.msra.mxu0 0.0
  %1546 = vmatprep.subr.mxu0 0.0
  %1547 = vmatpush1.msra.mxu0 0.0
  %1548 = vmatprep.subr.mxu0 0.0
  %1549 = vmatpush1.msra.mxu0 0.0
  %1550 = vmatprep.subr.mxu0 0.0
  %1551 = vmatpush1.msra.mxu0 0.0
  %1552 = vmatprep.subr.mxu0 0.0
  %1553 = vmatpush1.msra.mxu0 0.0
  %1554 = vmatprep.subr.mxu0 0.0
  %1555 = vmatpush1.msra.mxu0 0.0
  %1556 = vmatprep.subr.mxu0 0.0
  %1557 = vmatpush1.msra.mxu0 0.0
  %1558 = vmatprep.subr.mxu0 0.0
  %1559 = vmatpush1.msra.mxu0 0.0
  %1560 = vmatprep.subr.mxu0 0.0
  %1561 = vmatpush1.msra.mxu0 0.0
  %1562 = vmatprep.subr.mxu0 0.0
  %1563 = vmatpush1.msra.mxu0 0.0
  %1564 = vmatprep.subr.mxu0 0.0
  %1565 = vmatpush1.msra.mxu0 0.0
  %1566 = vmatprep.subr.mxu0 0.0
  %1567 = vmatpush1.msra.mxu0 0.0
  %1568 = vmatprep.subr.mxu0 0.0
  %1569 = vmatpush1.msra.mxu0 0.0
  %1570 = vmatprep.subr.mxu0 0.0
  %1571 = vmatpush1.msra.mxu0 0.0
  %1572 = vmatprep.subr.mxu0 0.0
  %1573 = vmatpush1.msra.mxu0 0.0
  %1574 = vmatprep.subr.mxu0 0.0
  %1575 = vmatpush1.msra.mxu0 0.0
  %1576 = vmatprep.subr.mxu0 0.0
  %1577 = vmatpush1.msra.mxu0 0.0
  %1578 = vmatprep.subr.mxu0 0.0
  %1579 = vmatpush1.msra.mxu0 0.0
  %1580 = vmatprep.subr.mxu0 0.0
  %1581 = vmatpush1.msra.mxu0 0.0
  %1582 = vmatprep.subr.mxu0 0.0
  %1583 = vmatpush1.msra.mxu0 0.0
  %1584 = vmatprep.subr.mxu0 0.0
  %1585 = vmatpush1.msra.mxu0 0.0
  %1586 = vmatprep.subr.mxu0 0.0
  %1587 = vmatpush1.msra.mxu0 0.0
  %1588 = vmatprep.subr.mxu0 0.0
  %1589 = vmatpush1.msra.mxu0 0.0
  %1590 = vmatprep.subr.mxu0 0.0
  %1591 = vmatpush1.msra.mxu0 0.0
  %1592 = vmatprep.mubr.f32.mxu0 0.0
  %1593 = vmatmul.mubr.f32.gmra.mrb[0].mxu0 %v1526
  %v1594 = vpop.f32.mrb[0].mxu0
  %v1595 = vadd.f32 0.0, %v1594
  %v1596 = vpop.f32.mrb[0].mxu0
  %1597 = vdwg.mxu0
  %1600 = vrot.lane.b32.xlu0 %v858, 8
  %v1601 = vpop.permute.xlu0 %1600
  %1602 = vrot.lane.b32.xlu0 %v935, 8
  %v1603 = vpop.permute.xlu0 %1602
  %1608 = vrot.lane.b32.xlu0 %v1189, 16
  %v1609 = vpop.permute.xlu0 %1608
  %1610 = vrot.lane.b32.xlu0 %v1265, 16
  %v1611 = vpop.permute.xlu0 %1610
  %1616 = vrot.lane.b32.xlu0 %v1519, 24
  %v1617 = vpop.permute.xlu0 %1616
  %1618 = vrot.lane.b32.xlu0 %v1595, 24
  %v1619 = vpop.permute.xlu0 %1618
  %v1622 = vsel %vm285, %v530, %v1601
  %v1623 = vsel %vm285, %v603, %v1603
  %vm1624 = vcmask 130048
  %v1625 = vsel %vm1624, %v1622, %v1609
  %v1626 = vsel %vm1624, %v1623, %v1611
  %vm1627 = vcmask 195584
  %v1628 = vsel %vm1627, %v1625, %v1617
  %v1629 = vsel %vm1627, %v1626, %v1619
  %s1630 = scalar_lea.vmem %s1, 96
  %v1631 = vld [vmem:[%s1630] sm:$0xff]
  %v1632 = vld [vmem:[%s1630 + $0x8] sm:$0xff]
  %v1633 = vld [vmem:[%s1630 + $0x10] sm:$0xff]
  %v1634 = vld [vmem:[%s1630 + $0x18] sm:$0xff]
  %v1635 = vlaneseq
  %v1636 = vshrl.u32 %v1635, 7
  %v1637 = vsub.s32 3, %v1636
  %v1638 = vrot.slane %v25, %v1637
  %v1640 = vsel %vm35, %v1628, 0
  %v1643 = vsel %vm35, %v1629, 0
  %1645 = vmatprep.subr.mxu0 0.0
  %1646 = vmatpush1.msra.mxu0 %v1631
  %1647 = vmatprep.subr.mxu0 0.0
  %1648 = vmatpush1.msra.mxu0 %v1632
  %1649 = vmatprep.subr.mxu0 0.0
  %1650 = vmatpush1.msra.mxu0 %v1633
  %1651 = vmatprep.subr.mxu0 0.0
  %1652 = vmatpush1.msra.mxu0 %v1634
  %1653 = vmatprep.subr.mxu0 0.0
  %1654 = vmatpush1.msra.mxu0 0.0
  %1655 = vmatprep.subr.mxu0 0.0
  %1656 = vmatpush1.msra.mxu0 0.0
  %1657 = vmatprep.subr.mxu0 0.0
  %1658 = vmatpush1.msra.mxu0 0.0
  %1659 = vmatprep.subr.mxu0 0.0
  %1660 = vmatpush1.msra.mxu0 0.0
  %1661 = vmatprep.subr.mxu0 0.0
  %1662 = vmatpush1.msra.mxu0 0.0
  %1663 = vmatprep.subr.mxu0 0.0
  %1664 = vmatpush1.msra.mxu0 0.0
  %1665 = vmatprep.subr.mxu0 0.0
  %1666 = vmatpush1.msra.mxu0 0.0
  %1667 = vmatprep.subr.mxu0 0.0
  %1668 = vmatpush1.msra.mxu0 0.0
  %1669 = vmatprep.subr.mxu0 0.0
  %1670 = vmatpush1.msra.mxu0 0.0
  %1671 = vmatprep.subr.mxu0 0.0
  %1672 = vmatpush1.msra.mxu0 0.0
  %1673 = vmatprep.subr.mxu0 0.0
  %1674 = vmatpush1.msra.mxu0 0.0
  %1675 = vmatprep.subr.mxu0 0.0
  %1676 = vmatpush1.msra.mxu0 0.0
  %1677 = vmatprep.subr.mxu0 0.0
  %1678 = vmatpush1.msra.mxu0 0.0
  %1679 = vmatprep.subr.mxu0 0.0
  %1680 = vmatpush1.msra.mxu0 0.0
  %1681 = vmatprep.subr.mxu0 0.0
  %1682 = vmatpush1.msra.mxu0 0.0
  %1683 = vmatprep.subr.mxu0 0.0
  %1684 = vmatpush1.msra.mxu0 0.0
  %1685 = vmatprep.subr.mxu0 0.0
  %1686 = vmatpush1.msra.mxu0 0.0
  %1687 = vmatprep.subr.mxu0 0.0
  %1688 = vmatpush1.msra.mxu0 0.0
  %1689 = vmatprep.subr.mxu0 0.0
  %1690 = vmatpush1.msra.mxu0 0.0
  %1691 = vmatprep.subr.mxu0 0.0
  %1692 = vmatpush1.msra.mxu0 0.0
  %1693 = vmatprep.subr.mxu0 0.0
  %1694 = vmatpush1.msra.mxu0 0.0
  %1695 = vmatprep.subr.mxu0 0.0
  %1696 = vmatpush1.msra.mxu0 0.0
  %1697 = vmatprep.subr.mxu0 0.0
  %1698 = vmatpush1.msra.mxu0 0.0
  %1699 = vmatprep.subr.mxu0 0.0
  %1700 = vmatpush1.msra.mxu0 0.0
  %1701 = vmatprep.subr.mxu0 0.0
  %1702 = vmatpush1.msra.mxu0 0.0
  %1703 = vmatprep.subr.mxu0 0.0
  %1704 = vmatpush1.msra.mxu0 0.0
  %1705 = vmatprep.subr.mxu0 0.0
  %1706 = vmatpush1.msra.mxu0 0.0
  %1707 = vmatprep.subr.mxu0 0.0
  %1708 = vmatpush1.msra.mxu0 0.0
  %1709 = vmatprep.mubr.f32.mxu0 0.0
  %1710 = vmatmul.mubr.f32.gmra.mrb[0].mxu0 %v1640
  %v1711 = vpop.f32.mrb[0].mxu0
  %v1712 = vadd.f32 %v1638, %v1711
  %v1713 = vpop.f32.mrb[0].mxu0
  %1714 = vmatprep.mubr.f32.mxu0 0.0
  %1715 = vmatmul.mubr.f32.gmra.mrb[0].mxu0 %v1643
  %v1716 = vpop.f32.mrb[0].mxu0
  %v1717 = vadd.f32 %v1638, %v1716
  %v1718 = vpop.f32.mrb[0].mxu0
  %1719 = vdwg.mxu0
  %v1720 = vadd.f32 %v23, %v1712
  %v1721 = vadd.f32 %v24, %v1717
  %v1722 = vsel %vm35, %v1720, 0.0
  %1723 = vadd.xlane.f32.xlu0 %v1722
  %v1724 = vpop.xlane.xlu0 %1723
  %v1725 = vsel %vm35, %v1721, 0.0
  %1726 = vadd.xlane.f32.xlu0 %v1725
  %v1727 = vpop.xlane.xlu0 %1726
  %v1728 = vrcp.pop 32.0
  %v1729 = vmul.f32 %v1724, %v1728
  %v1730 = vmul.f32 %v1727, %v1728
  %v1731 = vsub.f32 %v1720, %v1729
  %v1732 = vsub.f32 %v1721, %v1730
  %v1733 = vmul.f32 %v1731, %v1731
  %v1734 = vmul.f32 %v1732, %v1732
  %v1735 = vsel %vm35, %v1733, 0.0
  %1736 = vadd.xlane.f32.xlu0 %v1735
  %v1737 = vpop.xlane.xlu0 %1736
  %v1738 = vsel %vm35, %v1734, 0.0
  %1739 = vadd.xlane.f32.xlu0 %v1738
  %v1740 = vpop.xlane.xlu0 %1739
  %v1741 = vmul.f32 %v1737, %v1728
  %v1742 = vmul.f32 %v1740, %v1728
  %v1743 = vadd.f32 %v1741, 1e-05
  %v1744 = vadd.f32 %v1742, 1e-05
  %v1745 = vrsqrt.pop %v1743
  %v1746 = vrsqrt.pop %v1744
  %v1747 = vmul.f32 %v1731, %v1745
  %v1748 = vmul.f32 %v1732, %v1746
  %v1749 = vlaneseq
  %v1750 = vshrl.u32 %v1749, 7
  %v1751 = vsub.s32 4, %v1750
  %v1752 = vrot.slane %v25, %v1751
  %v1753 = vmul.f32 %v1747, %v1752
  %v1754 = vmul.f32 %v1748, %v1752
  %v1755 = vlaneseq
  %v1756 = vshrl.u32 %v1755, 7
  %v1757 = vsub.s32 5, %v1756
  %v1758 = vrot.slane %v25, %v1757
  %v1759 = vadd.f32 %v1753, %v1758
  %v1760 = vadd.f32 %v1754, %v1758
  %v1761 = vld [vmem:[%s2] sm:$0xff]
  %v1762 = vld [vmem:[%s2 + $0x8] sm:$0xff]
  %v1763 = vld [vmem:[%s2 + $0x10] sm:$0xff]
  %v1764 = vld [vmem:[%s2 + $0x18] sm:$0xff]
  %v1765 = vld [vmem:[%s5] sm:$0x1]
  %v1767 = vlaneseq
  %v1768 = vshrl.u32 %v1767, 7
  %v1769 = vsub.s32 0, %v1768
  %v1770 = vrot.slane %v1765, %v1769
  %v1773 = vsel %vm35, %v1759, 0
  %v1776 = vsel %vm35, %v1760, 0
  %1778 = vmatprep.subr.mxu0 0.0
  %1779 = vmatpush1.msra.mxu0 %v1761
  %1780 = vmatprep.subr.mxu0 0.0
  %1781 = vmatpush1.msra.mxu0 %v1762
  %1782 = vmatprep.subr.mxu0 0.0
  %1783 = vmatpush1.msra.mxu0 %v1763
  %1784 = vmatprep.subr.mxu0 0.0
  %1785 = vmatpush1.msra.mxu0 %v1764
  %1786 = vmatprep.subr.mxu0 0.0
  %1787 = vmatpush1.msra.mxu0 0.0
  %1788 = vmatprep.subr.mxu0 0.0
  %1789 = vmatpush1.msra.mxu0 0.0
  %1790 = vmatprep.subr.mxu0 0.0
  %1791 = vmatpush1.msra.mxu0 0.0
  %1792 = vmatprep.subr.mxu0 0.0
  %1793 = vmatpush1.msra.mxu0 0.0
  %1794 = vmatprep.subr.mxu0 0.0
  %1795 = vmatpush1.msra.mxu0 0.0
  %1796 = vmatprep.subr.mxu0 0.0
  %1797 = vmatpush1.msra.mxu0 0.0
  %1798 = vmatprep.subr.mxu0 0.0
  %1799 = vmatpush1.msra.mxu0 0.0
  %1800 = vmatprep.subr.mxu0 0.0
  %1801 = vmatpush1.msra.mxu0 0.0
  %1802 = vmatprep.subr.mxu0 0.0
  %1803 = vmatpush1.msra.mxu0 0.0
  %1804 = vmatprep.subr.mxu0 0.0
  %1805 = vmatpush1.msra.mxu0 0.0
  %1806 = vmatprep.subr.mxu0 0.0
  %1807 = vmatpush1.msra.mxu0 0.0
  %1808 = vmatprep.subr.mxu0 0.0
  %1809 = vmatpush1.msra.mxu0 0.0
  %1810 = vmatprep.subr.mxu0 0.0
  %1811 = vmatpush1.msra.mxu0 0.0
  %1812 = vmatprep.subr.mxu0 0.0
  %1813 = vmatpush1.msra.mxu0 0.0
  %1814 = vmatprep.subr.mxu0 0.0
  %1815 = vmatpush1.msra.mxu0 0.0
  %1816 = vmatprep.subr.mxu0 0.0
  %1817 = vmatpush1.msra.mxu0 0.0
  %1818 = vmatprep.subr.mxu0 0.0
  %1819 = vmatpush1.msra.mxu0 0.0
  %1820 = vmatprep.subr.mxu0 0.0
  %1821 = vmatpush1.msra.mxu0 0.0
  %1822 = vmatprep.subr.mxu0 0.0
  %1823 = vmatpush1.msra.mxu0 0.0
  %1824 = vmatprep.subr.mxu0 0.0
  %1825 = vmatpush1.msra.mxu0 0.0
  %1826 = vmatprep.subr.mxu0 0.0
  %1827 = vmatpush1.msra.mxu0 0.0
  %1828 = vmatprep.subr.mxu0 0.0
  %1829 = vmatpush1.msra.mxu0 0.0
  %1830 = vmatprep.subr.mxu0 0.0
  %1831 = vmatpush1.msra.mxu0 0.0
  %1832 = vmatprep.subr.mxu0 0.0
  %1833 = vmatpush1.msra.mxu0 0.0
  %1834 = vmatprep.subr.mxu0 0.0
  %1835 = vmatpush1.msra.mxu0 0.0
  %1836 = vmatprep.subr.mxu0 0.0
  %1837 = vmatpush1.msra.mxu0 0.0
  %1838 = vmatprep.subr.mxu0 0.0
  %1839 = vmatpush1.msra.mxu0 0.0
  %1840 = vmatprep.subr.mxu0 0.0
  %1841 = vmatpush1.msra.mxu0 0.0
  %1842 = vmatprep.mubr.f32.mxu0 0.0
  %1843 = vmatmul.mubr.f32.gmra.mrb[0].mxu0 %v1773
  %v1844 = vpop.f32.mrb[0].mxu0
  %v1845 = vadd.f32 %v1770, %v1844
  %v1846 = vpop.f32.mrb[0].mxu0
  %1847 = vmatprep.mubr.f32.mxu0 0.0
  %1848 = vmatmul.mubr.f32.gmra.mrb[0].mxu0 %v1776
  %v1849 = vpop.f32.mrb[0].mxu0
  %v1850 = vadd.f32 %v1770, %v1849
  %v1851 = vpop.f32.mrb[0].mxu0
  %1852 = vdwg.mxu0
  %v1853 = vmax.f32 %v1845, 0.0
  %v1854 = vmax.f32 %v1850, 0.0
  %v1855 = vld [vmem:[%s3] sm:$0xff]
  %v1856 = vld [vmem:[%s3 + $0x8] sm:$0xff]
  %v1857 = vld [vmem:[%s3 + $0x10] sm:$0xff]
  %v1858 = vld [vmem:[%s3 + $0x18] sm:$0xff]
  %v1859 = vld [vmem:[%s3 + $0x20] sm:$0xff]
  %v1860 = vld [vmem:[%s3 + $0x28] sm:$0xff]
  %v1861 = vld [vmem:[%s3 + $0x30] sm:$0xff]
  %v1862 = vld [vmem:[%s3 + $0x38] sm:$0xff]
  %v1863 = vld [vmem:[%s3 + $0x40] sm:$0xff]
  %v1864 = vld [vmem:[%s3 + $0x48] sm:$0xff]
  %v1865 = vld [vmem:[%s3 + $0x50] sm:$0xff]
  %v1866 = vld [vmem:[%s3 + $0x58] sm:$0xff]
  %v1867 = vld [vmem:[%s3 + $0x60] sm:$0xff]
  %v1868 = vld [vmem:[%s3 + $0x68] sm:$0xff]
  %v1869 = vld [vmem:[%s3 + $0x70] sm:$0xff]
  %v1870 = vld [vmem:[%s3 + $0x78] sm:$0xff]
  %v1871 = vlaneseq
  %v1872 = vshrl.u32 %v1871, 7
  %v1873 = vsub.s32 6, %v1872
  %v1874 = vrot.slane %v25, %v1873
  %1875 = vmatprep.subr.mxu0 0.0
  %1876 = vmatpush1.msra.mxu0 %v1855
  %1877 = vmatprep.subr.mxu0 0.0
  %1878 = vmatpush1.msra.mxu0 %v1856
  %1879 = vmatprep.subr.mxu0 0.0
  %1880 = vmatpush1.msra.mxu0 %v1857
  %1881 = vmatprep.subr.mxu0 0.0
  %1882 = vmatpush1.msra.mxu0 %v1858
  %1883 = vmatprep.subr.mxu0 0.0
  %1884 = vmatpush1.msra.mxu0 %v1859
  %1885 = vmatprep.subr.mxu0 0.0
  %1886 = vmatpush1.msra.mxu0 %v1860
  %1887 = vmatprep.subr.mxu0 0.0
  %1888 = vmatpush1.msra.mxu0 %v1861
  %1889 = vmatprep.subr.mxu0 0.0
  %1890 = vmatpush1.msra.mxu0 %v1862
  %1891 = vmatprep.subr.mxu0 0.0
  %1892 = vmatpush1.msra.mxu0 %v1863
  %1893 = vmatprep.subr.mxu0 0.0
  %1894 = vmatpush1.msra.mxu0 %v1864
  %1895 = vmatprep.subr.mxu0 0.0
  %1896 = vmatpush1.msra.mxu0 %v1865
  %1897 = vmatprep.subr.mxu0 0.0
  %1898 = vmatpush1.msra.mxu0 %v1866
  %1899 = vmatprep.subr.mxu0 0.0
  %1900 = vmatpush1.msra.mxu0 %v1867
  %1901 = vmatprep.subr.mxu0 0.0
  %1902 = vmatpush1.msra.mxu0 %v1868
  %1903 = vmatprep.subr.mxu0 0.0
  %1904 = vmatpush1.msra.mxu0 %v1869
  %1905 = vmatprep.subr.mxu0 0.0
  %1906 = vmatpush1.msra.mxu0 %v1870
  %1907 = vmatprep.subr.mxu0 0.0
  %1908 = vmatpush1.msra.mxu0 0.0
  %1909 = vmatprep.subr.mxu0 0.0
  %1910 = vmatpush1.msra.mxu0 0.0
  %1911 = vmatprep.subr.mxu0 0.0
  %1912 = vmatpush1.msra.mxu0 0.0
  %1913 = vmatprep.subr.mxu0 0.0
  %1914 = vmatpush1.msra.mxu0 0.0
  %1915 = vmatprep.subr.mxu0 0.0
  %1916 = vmatpush1.msra.mxu0 0.0
  %1917 = vmatprep.subr.mxu0 0.0
  %1918 = vmatpush1.msra.mxu0 0.0
  %1919 = vmatprep.subr.mxu0 0.0
  %1920 = vmatpush1.msra.mxu0 0.0
  %1921 = vmatprep.subr.mxu0 0.0
  %1922 = vmatpush1.msra.mxu0 0.0
  %1923 = vmatprep.subr.mxu0 0.0
  %1924 = vmatpush1.msra.mxu0 0.0
  %1925 = vmatprep.subr.mxu0 0.0
  %1926 = vmatpush1.msra.mxu0 0.0
  %1927 = vmatprep.subr.mxu0 0.0
  %1928 = vmatpush1.msra.mxu0 0.0
  %1929 = vmatprep.subr.mxu0 0.0
  %1930 = vmatpush1.msra.mxu0 0.0
  %1931 = vmatprep.subr.mxu0 0.0
  %1932 = vmatpush1.msra.mxu0 0.0
  %1933 = vmatprep.subr.mxu0 0.0
  %1934 = vmatpush1.msra.mxu0 0.0
  %1935 = vmatprep.subr.mxu0 0.0
  %1936 = vmatpush1.msra.mxu0 0.0
  %1937 = vmatprep.subr.mxu0 0.0
  %1938 = vmatpush1.msra.mxu0 0.0
  %1939 = vmatprep.mubr.f32.mxu0 0.0
  %1940 = vmatmul.mubr.f32.gmra.mrb[0].mxu0 %v1853
  %v1941 = vpop.f32.mrb[0].mxu0
  %v1942 = vadd.f32 %v1874, %v1941
  %v1943 = vpop.f32.mrb[0].mxu0
  %1944 = vmatprep.mubr.f32.mxu0 0.0
  %1945 = vmatmul.mubr.f32.gmra.mrb[0].mxu0 %v1854
  %v1946 = vpop.f32.mrb[0].mxu0
  %v1947 = vadd.f32 %v1874, %v1946
  %v1948 = vpop.f32.mrb[0].mxu0
  %1949 = vdwg.mxu0
  %v1950 = vadd.f32 %v1759, %v1942
  %v1951 = vadd.f32 %v1760, %v1947
  %v1952 = vsel %vm35, %v1950, 0.0
  %1953 = vadd.xlane.f32.xlu0 %v1952
  %v1954 = vpop.xlane.xlu0 %1953
  %v1955 = vsel %vm35, %v1951, 0.0
  %1956 = vadd.xlane.f32.xlu0 %v1955
  %v1957 = vpop.xlane.xlu0 %1956
  %v1958 = vmul.f32 %v1954, %v1728
  %v1959 = vmul.f32 %v1957, %v1728
  %v1960 = vsub.f32 %v1950, %v1958
  %v1961 = vsub.f32 %v1951, %v1959
  %v1962 = vmul.f32 %v1960, %v1960
  %v1963 = vmul.f32 %v1961, %v1961
  %v1964 = vsel %vm35, %v1962, 0.0
  %1965 = vadd.xlane.f32.xlu0 %v1964
  %v1966 = vpop.xlane.xlu0 %1965
  %v1967 = vsel %vm35, %v1963, 0.0
  %1968 = vadd.xlane.f32.xlu0 %v1967
  %v1969 = vpop.xlane.xlu0 %1968
  %v1970 = vmul.f32 %v1966, %v1728
  %v1971 = vmul.f32 %v1969, %v1728
  %v1972 = vadd.f32 %v1970, 1e-05
  %v1973 = vadd.f32 %v1971, 1e-05
  %v1974 = vrsqrt.pop %v1972
  %v1975 = vrsqrt.pop %v1973
  %v1976 = vmul.f32 %v1960, %v1974
  %v1977 = vmul.f32 %v1961, %v1975
  %v1978 = vlaneseq
  %v1979 = vshrl.u32 %v1978, 7
  %v1980 = vsub.s32 7, %v1979
  %v1981 = vrot.slane %v25, %v1980
  %v1982 = vmul.f32 %v1976, %v1981
  %v1983 = vmul.f32 %v1977, %v1981
  %v1984 = vlaneseq
  %v1985 = vshrl.u32 %v1984, 7
  %v1986 = vsub.s32 0, %v1985
  %v1987 = vrot.slane %v26, %v1986
  %v1988 = vadd.f32 %v1982, %v1987
  %v1989 = vadd.f32 %v1983, %v1987
  %s1990 = scalar_lea.vmem %s4, 16
  %v1991 = vld [vmem:[%s1990] sm:$0xff]
  %v1992 = vld [vmem:[%s1990 + $0x8] sm:$0x1]
  %s1993 = scalar_lea.vmem %s1, 128
  %v1994 = vld [vmem:[%s1993] sm:$0xff]
  %v1995 = vld [vmem:[%s1993 + $0x8] sm:$0xff]
  %v1996 = vld [vmem:[%s1993 + $0x10] sm:$0xff]
  %v1997 = vld [vmem:[%s1993 + $0x18] sm:$0xff]
  %v1998 = vlaneseq
  %v1999 = vshrl.u32 %v1998, 7
  %v2000 = vsub.s32 0, %v1999
  %v2001 = vrot.slane %v1991, %v2000
  %v2003 = vsel %vm35, %v1988, 0
  %v2006 = vsel %vm35, %v1989, 0
  %2008 = vmatprep.subr.mxu0 0.0
  %2009 = vmatpush1.msra.mxu0 %v1994
  %2010 = vmatprep.subr.mxu0 0.0
  %2011 = vmatpush1.msra.mxu0 %v1995
  %2012 = vmatprep.subr.mxu0 0.0
  %2013 = vmatpush1.msra.mxu0 %v1996
  %2014 = vmatprep.subr.mxu0 0.0
  %2015 = vmatpush1.msra.mxu0 %v1997
  %2016 = vmatprep.subr.mxu0 0.0
  %2017 = vmatpush1.msra.mxu0 0.0
  %2018 = vmatprep.subr.mxu0 0.0
  %2019 = vmatpush1.msra.mxu0 0.0
  %2020 = vmatprep.subr.mxu0 0.0
  %2021 = vmatpush1.msra.mxu0 0.0
  %2022 = vmatprep.subr.mxu0 0.0
  %2023 = vmatpush1.msra.mxu0 0.0
  %2024 = vmatprep.subr.mxu0 0.0
  %2025 = vmatpush1.msra.mxu0 0.0
  %2026 = vmatprep.subr.mxu0 0.0
  %2027 = vmatpush1.msra.mxu0 0.0
  %2028 = vmatprep.subr.mxu0 0.0
  %2029 = vmatpush1.msra.mxu0 0.0
  %2030 = vmatprep.subr.mxu0 0.0
  %2031 = vmatpush1.msra.mxu0 0.0
  %2032 = vmatprep.subr.mxu0 0.0
  %2033 = vmatpush1.msra.mxu0 0.0
  %2034 = vmatprep.subr.mxu0 0.0
  %2035 = vmatpush1.msra.mxu0 0.0
  %2036 = vmatprep.subr.mxu0 0.0
  %2037 = vmatpush1.msra.mxu0 0.0
  %2038 = vmatprep.subr.mxu0 0.0
  %2039 = vmatpush1.msra.mxu0 0.0
  %2040 = vmatprep.subr.mxu0 0.0
  %2041 = vmatpush1.msra.mxu0 0.0
  %2042 = vmatprep.subr.mxu0 0.0
  %2043 = vmatpush1.msra.mxu0 0.0
  %2044 = vmatprep.subr.mxu0 0.0
  %2045 = vmatpush1.msra.mxu0 0.0
  %2046 = vmatprep.subr.mxu0 0.0
  %2047 = vmatpush1.msra.mxu0 0.0
  %2048 = vmatprep.subr.mxu0 0.0
  %2049 = vmatpush1.msra.mxu0 0.0
  %2050 = vmatprep.subr.mxu0 0.0
  %2051 = vmatpush1.msra.mxu0 0.0
  %2052 = vmatprep.subr.mxu0 0.0
  %2053 = vmatpush1.msra.mxu0 0.0
  %2054 = vmatprep.subr.mxu0 0.0
  %2055 = vmatpush1.msra.mxu0 0.0
  %2056 = vmatprep.subr.mxu0 0.0
  %2057 = vmatpush1.msra.mxu0 0.0
  %2058 = vmatprep.subr.mxu0 0.0
  %2059 = vmatpush1.msra.mxu0 0.0
  %2060 = vmatprep.subr.mxu0 0.0
  %2061 = vmatpush1.msra.mxu0 0.0
  %2062 = vmatprep.subr.mxu0 0.0
  %2063 = vmatpush1.msra.mxu0 0.0
  %2064 = vmatprep.subr.mxu0 0.0
  %2065 = vmatpush1.msra.mxu0 0.0
  %2066 = vmatprep.subr.mxu0 0.0
  %2067 = vmatpush1.msra.mxu0 0.0
  %2068 = vmatprep.subr.mxu0 0.0
  %2069 = vmatpush1.msra.mxu0 0.0
  %2070 = vmatprep.subr.mxu0 0.0
  %2071 = vmatpush1.msra.mxu0 0.0
  %2072 = vmatprep.mubr.f32.mxu0 0.0
  %2073 = vmatmul.mubr.f32.gmra.mrb[0].mxu0 %v2003
  %v2074 = vpop.f32.mrb[0].mxu0
  %v2075 = vadd.f32 %v2001, %v2074
  %v2076 = vpop.f32.mrb[0].mxu0
  %2077 = vmatprep.mubr.f32.mxu0 0.0
  %2078 = vmatmul.mubr.f32.gmra.mrb[0].mxu0 %v2006
  %v2079 = vpop.f32.mrb[0].mxu0
  %v2080 = vadd.f32 %v2001, %v2079
  %v2081 = vpop.f32.mrb[0].mxu0
  %2082 = vdwg.mxu0
  %s2083 = scalar_lea.vmem %s1, 160
  %v2084 = vld [vmem:[%s2083] sm:$0xff]
  %v2085 = vld [vmem:[%s2083 + $0x8] sm:$0xff]
  %v2086 = vld [vmem:[%s2083 + $0x10] sm:$0xff]
  %v2087 = vld [vmem:[%s2083 + $0x18] sm:$0xff]
  %v2088 = vlaneseq
  %v2089 = vshrl.u32 %v2088, 7
  %v2090 = vsub.s32 1, %v2089
  %v2091 = vrot.slane %v1991, %v2090
  %2092 = vmatprep.subr.mxu0 0.0
  %2093 = vmatpush1.msra.mxu0 %v2084
  %2094 = vmatprep.subr.mxu0 0.0
  %2095 = vmatpush1.msra.mxu0 %v2085
  %2096 = vmatprep.subr.mxu0 0.0
  %2097 = vmatpush1.msra.mxu0 %v2086
  %2098 = vmatprep.subr.mxu0 0.0
  %2099 = vmatpush1.msra.mxu0 %v2087
  %2100 = vmatprep.subr.mxu0 0.0
  %2101 = vmatpush1.msra.mxu0 0.0
  %2102 = vmatprep.subr.mxu0 0.0
  %2103 = vmatpush1.msra.mxu0 0.0
  %2104 = vmatprep.subr.mxu0 0.0
  %2105 = vmatpush1.msra.mxu0 0.0
  %2106 = vmatprep.subr.mxu0 0.0
  %2107 = vmatpush1.msra.mxu0 0.0
  %2108 = vmatprep.subr.mxu0 0.0
  %2109 = vmatpush1.msra.mxu0 0.0
  %2110 = vmatprep.subr.mxu0 0.0
  %2111 = vmatpush1.msra.mxu0 0.0
  %2112 = vmatprep.subr.mxu0 0.0
  %2113 = vmatpush1.msra.mxu0 0.0
  %2114 = vmatprep.subr.mxu0 0.0
  %2115 = vmatpush1.msra.mxu0 0.0
  %2116 = vmatprep.subr.mxu0 0.0
  %2117 = vmatpush1.msra.mxu0 0.0
  %2118 = vmatprep.subr.mxu0 0.0
  %2119 = vmatpush1.msra.mxu0 0.0
  %2120 = vmatprep.subr.mxu0 0.0
  %2121 = vmatpush1.msra.mxu0 0.0
  %2122 = vmatprep.subr.mxu0 0.0
  %2123 = vmatpush1.msra.mxu0 0.0
  %2124 = vmatprep.subr.mxu0 0.0
  %2125 = vmatpush1.msra.mxu0 0.0
  %2126 = vmatprep.subr.mxu0 0.0
  %2127 = vmatpush1.msra.mxu0 0.0
  %2128 = vmatprep.subr.mxu0 0.0
  %2129 = vmatpush1.msra.mxu0 0.0
  %2130 = vmatprep.subr.mxu0 0.0
  %2131 = vmatpush1.msra.mxu0 0.0
  %2132 = vmatprep.subr.mxu0 0.0
  %2133 = vmatpush1.msra.mxu0 0.0
  %2134 = vmatprep.subr.mxu0 0.0
  %2135 = vmatpush1.msra.mxu0 0.0
  %2136 = vmatprep.subr.mxu0 0.0
  %2137 = vmatpush1.msra.mxu0 0.0
  %2138 = vmatprep.subr.mxu0 0.0
  %2139 = vmatpush1.msra.mxu0 0.0
  %2140 = vmatprep.subr.mxu0 0.0
  %2141 = vmatpush1.msra.mxu0 0.0
  %2142 = vmatprep.subr.mxu0 0.0
  %2143 = vmatpush1.msra.mxu0 0.0
  %2144 = vmatprep.subr.mxu0 0.0
  %2145 = vmatpush1.msra.mxu0 0.0
  %2146 = vmatprep.subr.mxu0 0.0
  %2147 = vmatpush1.msra.mxu0 0.0
  %2148 = vmatprep.subr.mxu0 0.0
  %2149 = vmatpush1.msra.mxu0 0.0
  %2150 = vmatprep.subr.mxu0 0.0
  %2151 = vmatpush1.msra.mxu0 0.0
  %2152 = vmatprep.subr.mxu0 0.0
  %2153 = vmatpush1.msra.mxu0 0.0
  %2154 = vmatprep.subr.mxu0 0.0
  %2155 = vmatpush1.msra.mxu0 0.0
  %2156 = vmatprep.mubr.f32.mxu0 0.0
  %2157 = vmatmul.mubr.f32.gmra.mrb[0].mxu0 %v2003
  %v2158 = vpop.f32.mrb[0].mxu0
  %v2159 = vadd.f32 %v2091, %v2158
  %v2160 = vpop.f32.mrb[0].mxu0
  %2161 = vmatprep.mubr.f32.mxu0 0.0
  %2162 = vmatmul.mubr.f32.gmra.mrb[0].mxu0 %v2006
  %v2163 = vpop.f32.mrb[0].mxu0
  %v2164 = vadd.f32 %v2091, %v2163
  %v2165 = vpop.f32.mrb[0].mxu0
  %2166 = vdwg.mxu0
  %s2167 = scalar_lea.vmem %s1, 192
  %v2168 = vld [vmem:[%s2167] sm:$0xff]
  %v2169 = vld [vmem:[%s2167 + $0x8] sm:$0xff]
  %v2170 = vld [vmem:[%s2167 + $0x10] sm:$0xff]
  %v2171 = vld [vmem:[%s2167 + $0x18] sm:$0xff]
  %v2172 = vlaneseq
  %v2173 = vshrl.u32 %v2172, 7
  %v2174 = vsub.s32 2, %v2173
  %v2175 = vrot.slane %v1991, %v2174
  %2176 = vmatprep.subr.mxu0 0.0
  %2177 = vmatpush1.msra.mxu0 %v2168
  %2178 = vmatprep.subr.mxu0 0.0
  %2179 = vmatpush1.msra.mxu0 %v2169
  %2180 = vmatprep.subr.mxu0 0.0
  %2181 = vmatpush1.msra.mxu0 %v2170
  %2182 = vmatprep.subr.mxu0 0.0
  %2183 = vmatpush1.msra.mxu0 %v2171
  %2184 = vmatprep.subr.mxu0 0.0
  %2185 = vmatpush1.msra.mxu0 0.0
  %2186 = vmatprep.subr.mxu0 0.0
  %2187 = vmatpush1.msra.mxu0 0.0
  %2188 = vmatprep.subr.mxu0 0.0
  %2189 = vmatpush1.msra.mxu0 0.0
  %2190 = vmatprep.subr.mxu0 0.0
  %2191 = vmatpush1.msra.mxu0 0.0
  %2192 = vmatprep.subr.mxu0 0.0
  %2193 = vmatpush1.msra.mxu0 0.0
  %2194 = vmatprep.subr.mxu0 0.0
  %2195 = vmatpush1.msra.mxu0 0.0
  %2196 = vmatprep.subr.mxu0 0.0
  %2197 = vmatpush1.msra.mxu0 0.0
  %2198 = vmatprep.subr.mxu0 0.0
  %2199 = vmatpush1.msra.mxu0 0.0
  %2200 = vmatprep.subr.mxu0 0.0
  %2201 = vmatpush1.msra.mxu0 0.0
  %2202 = vmatprep.subr.mxu0 0.0
  %2203 = vmatpush1.msra.mxu0 0.0
  %2204 = vmatprep.subr.mxu0 0.0
  %2205 = vmatpush1.msra.mxu0 0.0
  %2206 = vmatprep.subr.mxu0 0.0
  %2207 = vmatpush1.msra.mxu0 0.0
  %2208 = vmatprep.subr.mxu0 0.0
  %2209 = vmatpush1.msra.mxu0 0.0
  %2210 = vmatprep.subr.mxu0 0.0
  %2211 = vmatpush1.msra.mxu0 0.0
  %2212 = vmatprep.subr.mxu0 0.0
  %2213 = vmatpush1.msra.mxu0 0.0
  %2214 = vmatprep.subr.mxu0 0.0
  %2215 = vmatpush1.msra.mxu0 0.0
  %2216 = vmatprep.subr.mxu0 0.0
  %2217 = vmatpush1.msra.mxu0 0.0
  %2218 = vmatprep.subr.mxu0 0.0
  %2219 = vmatpush1.msra.mxu0 0.0
  %2220 = vmatprep.subr.mxu0 0.0
  %2221 = vmatpush1.msra.mxu0 0.0
  %2222 = vmatprep.subr.mxu0 0.0
  %2223 = vmatpush1.msra.mxu0 0.0
  %2224 = vmatprep.subr.mxu0 0.0
  %2225 = vmatpush1.msra.mxu0 0.0
  %2226 = vmatprep.subr.mxu0 0.0
  %2227 = vmatpush1.msra.mxu0 0.0
  %2228 = vmatprep.subr.mxu0 0.0
  %2229 = vmatpush1.msra.mxu0 0.0
  %2230 = vmatprep.subr.mxu0 0.0
  %2231 = vmatpush1.msra.mxu0 0.0
  %2232 = vmatprep.subr.mxu0 0.0
  %2233 = vmatpush1.msra.mxu0 0.0
  %2234 = vmatprep.subr.mxu0 0.0
  %2235 = vmatpush1.msra.mxu0 0.0
  %2236 = vmatprep.subr.mxu0 0.0
  %2237 = vmatpush1.msra.mxu0 0.0
  %2238 = vmatprep.subr.mxu0 0.0
  %2239 = vmatpush1.msra.mxu0 0.0
  %2240 = vmatprep.mubr.f32.mxu0 0.0
  %2241 = vmatmul.mubr.f32.gmra.mrb[0].mxu0 %v2003
  %v2242 = vpop.f32.mrb[0].mxu0
  %v2243 = vadd.f32 %v2175, %v2242
  %v2244 = vpop.f32.mrb[0].mxu0
  %2245 = vmatprep.mubr.f32.mxu0 0.0
  %2246 = vmatmul.mubr.f32.gmra.mrb[0].mxu0 %v2006
  %v2247 = vpop.f32.mrb[0].mxu0
  %v2248 = vadd.f32 %v2175, %v2247
  %v2249 = vpop.f32.mrb[0].mxu0
  %2250 = vdwg.mxu0
  %v2252 = vsel %vm285, %v2075, 0
  %v2255 = vsel %vm285, %v2159, 0
  %2257 = vmatprep.subr.mxu0 0.0
  %2258 = vmatpush1.xpose.msra.mxu0 %v2255
  %2259 = vmatprep.subr.mxu0 0.0
  %2260 = vmatpush1.xpose.msra.mxu0 0.0
  %2261 = vmatprep.subr.mxu0 0.0
  %2262 = vmatpush1.xpose.msra.mxu0 0.0
  %2263 = vmatprep.subr.mxu0 0.0
  %2264 = vmatpush1.xpose.msra.mxu0 0.0
  %2265 = vmatprep.subr.mxu0 0.0
  %2266 = vmatpush1.xpose.msra.mxu0 0.0
  %2267 = vmatprep.subr.mxu0 0.0
  %2268 = vmatpush1.xpose.msra.mxu0 0.0
  %2269 = vmatprep.subr.mxu0 0.0
  %2270 = vmatpush1.xpose.msra.mxu0 0.0
  %2271 = vmatprep.subr.mxu0 0.0
  %2272 = vmatpush1.xpose.msra.mxu0 0.0
  %2273 = vmatprep.subr.mxu0 0.0
  %2274 = vmatpush1.xpose.msra.mxu0 0.0
  %2275 = vmatprep.subr.mxu0 0.0
  %2276 = vmatpush1.xpose.msra.mxu0 0.0
  %2277 = vmatprep.subr.mxu0 0.0
  %2278 = vmatpush1.xpose.msra.mxu0 0.0
  %2279 = vmatprep.subr.mxu0 0.0
  %2280 = vmatpush1.xpose.msra.mxu0 0.0
  %2281 = vmatprep.subr.mxu0 0.0
  %2282 = vmatpush1.xpose.msra.mxu0 0.0
  %2283 = vmatprep.subr.mxu0 0.0
  %2284 = vmatpush1.xpose.msra.mxu0 0.0
  %2285 = vmatprep.subr.mxu0 0.0
  %2286 = vmatpush1.xpose.msra.mxu0 0.0
  %2287 = vmatprep.subr.mxu0 0.0
  %2288 = vmatpush1.xpose.msra.mxu0 0.0
  %2289 = vmatprep.subr.mxu0 0.0
  %2290 = vmatpush1.xpose.msra.mxu0 0.0
  %2291 = vmatprep.subr.mxu0 0.0
  %2292 = vmatpush1.xpose.msra.mxu0 0.0
  %2293 = vmatprep.subr.mxu0 0.0
  %2294 = vmatpush1.xpose.msra.mxu0 0.0
  %2295 = vmatprep.subr.mxu0 0.0
  %2296 = vmatpush1.xpose.msra.mxu0 0.0
  %2297 = vmatprep.subr.mxu0 0.0
  %2298 = vmatpush1.xpose.msra.mxu0 0.0
  %2299 = vmatprep.subr.mxu0 0.0
  %2300 = vmatpush1.xpose.msra.mxu0 0.0
  %2301 = vmatprep.subr.mxu0 0.0
  %2302 = vmatpush1.xpose.msra.mxu0 0.0
  %2303 = vmatprep.subr.mxu0 0.0
  %2304 = vmatpush1.xpose.msra.mxu0 0.0
  %2305 = vmatprep.subr.mxu0 0.0
  %2306 = vmatpush1.xpose.msra.mxu0 0.0
  %2307 = vmatprep.subr.mxu0 0.0
  %2308 = vmatpush1.xpose.msra.mxu0 0.0
  %2309 = vmatprep.subr.mxu0 0.0
  %2310 = vmatpush1.xpose.msra.mxu0 0.0
  %2311 = vmatprep.subr.mxu0 0.0
  %2312 = vmatpush1.xpose.msra.mxu0 0.0
  %2313 = vmatprep.subr.mxu0 0.0
  %2314 = vmatpush1.xpose.msra.mxu0 0.0
  %2315 = vmatprep.subr.mxu0 0.0
  %2316 = vmatpush1.xpose.msra.mxu0 0.0
  %2317 = vmatprep.subr.mxu0 0.0
  %2318 = vmatpush1.xpose.msra.mxu0 0.0
  %2319 = vmatprep.subr.mxu0 0.0
  %2320 = vmatpush1.xpose.msra.mxu0 0.0
  %2321 = vmatprep.mubr.f32.mxu0 0.0
  %2322 = vmatmul.mubr.f32.gmra.mrb[0].mxu0 %v2252
  %v2323 = vpop.f32.mrb[0].mxu0
  %v2324 = vadd.f32 0.0, %v2323
  %v2325 = vpop.f32.mrb[0].mxu0
  %2326 = vdwg.mxu0
  %v2328 = vsel %vm285, %v2080, 0
  %v2331 = vsel %vm285, %v2164, 0
  %2333 = vmatprep.subr.mxu0 0.0
  %2334 = vmatpush1.xpose.msra.mxu0 %v2331
  %2335 = vmatprep.subr.mxu0 0.0
  %2336 = vmatpush1.xpose.msra.mxu0 0.0
  %2337 = vmatprep.subr.mxu0 0.0
  %2338 = vmatpush1.xpose.msra.mxu0 0.0
  %2339 = vmatprep.subr.mxu0 0.0
  %2340 = vmatpush1.xpose.msra.mxu0 0.0
  %2341 = vmatprep.subr.mxu0 0.0
  %2342 = vmatpush1.xpose.msra.mxu0 0.0
  %2343 = vmatprep.subr.mxu0 0.0
  %2344 = vmatpush1.xpose.msra.mxu0 0.0
  %2345 = vmatprep.subr.mxu0 0.0
  %2346 = vmatpush1.xpose.msra.mxu0 0.0
  %2347 = vmatprep.subr.mxu0 0.0
  %2348 = vmatpush1.xpose.msra.mxu0 0.0
  %2349 = vmatprep.subr.mxu0 0.0
  %2350 = vmatpush1.xpose.msra.mxu0 0.0
  %2351 = vmatprep.subr.mxu0 0.0
  %2352 = vmatpush1.xpose.msra.mxu0 0.0
  %2353 = vmatprep.subr.mxu0 0.0
  %2354 = vmatpush1.xpose.msra.mxu0 0.0
  %2355 = vmatprep.subr.mxu0 0.0
  %2356 = vmatpush1.xpose.msra.mxu0 0.0
  %2357 = vmatprep.subr.mxu0 0.0
  %2358 = vmatpush1.xpose.msra.mxu0 0.0
  %2359 = vmatprep.subr.mxu0 0.0
  %2360 = vmatpush1.xpose.msra.mxu0 0.0
  %2361 = vmatprep.subr.mxu0 0.0
  %2362 = vmatpush1.xpose.msra.mxu0 0.0
  %2363 = vmatprep.subr.mxu0 0.0
  %2364 = vmatpush1.xpose.msra.mxu0 0.0
  %2365 = vmatprep.subr.mxu0 0.0
  %2366 = vmatpush1.xpose.msra.mxu0 0.0
  %2367 = vmatprep.subr.mxu0 0.0
  %2368 = vmatpush1.xpose.msra.mxu0 0.0
  %2369 = vmatprep.subr.mxu0 0.0
  %2370 = vmatpush1.xpose.msra.mxu0 0.0
  %2371 = vmatprep.subr.mxu0 0.0
  %2372 = vmatpush1.xpose.msra.mxu0 0.0
  %2373 = vmatprep.subr.mxu0 0.0
  %2374 = vmatpush1.xpose.msra.mxu0 0.0
  %2375 = vmatprep.subr.mxu0 0.0
  %2376 = vmatpush1.xpose.msra.mxu0 0.0
  %2377 = vmatprep.subr.mxu0 0.0
  %2378 = vmatpush1.xpose.msra.mxu0 0.0
  %2379 = vmatprep.subr.mxu0 0.0
  %2380 = vmatpush1.xpose.msra.mxu0 0.0
  %2381 = vmatprep.subr.mxu0 0.0
  %2382 = vmatpush1.xpose.msra.mxu0 0.0
  %2383 = vmatprep.subr.mxu0 0.0
  %2384 = vmatpush1.xpose.msra.mxu0 0.0
  %2385 = vmatprep.subr.mxu0 0.0
  %2386 = vmatpush1.xpose.msra.mxu0 0.0
  %2387 = vmatprep.subr.mxu0 0.0
  %2388 = vmatpush1.xpose.msra.mxu0 0.0
  %2389 = vmatprep.subr.mxu0 0.0
  %2390 = vmatpush1.xpose.msra.mxu0 0.0
  %2391 = vmatprep.subr.mxu0 0.0
  %2392 = vmatpush1.xpose.msra.mxu0 0.0
  %2393 = vmatprep.subr.mxu0 0.0
  %2394 = vmatpush1.xpose.msra.mxu0 0.0
  %2395 = vmatprep.subr.mxu0 0.0
  %2396 = vmatpush1.xpose.msra.mxu0 0.0
  %2397 = vmatprep.mubr.f32.mxu0 0.0
  %2398 = vmatmul.mubr.f32.gmra.mrb[0].mxu0 %v2328
  %v2399 = vpop.f32.mrb[0].mxu0
  %v2400 = vadd.f32 0.0, %v2399
  %v2401 = vpop.f32.mrb[0].mxu0
  %2402 = vdwg.mxu0
  %v2403 = vsel %vm285, %v2324, -inf
  %2404 = vmax.xlane.f32.xlu0 %v2403
  %v2405 = vpop.xlane.xlu0 %2404
  %v2406 = vsel %vm285, %v2400, -inf
  %2407 = vmax.xlane.f32.xlu0 %v2406
  %v2408 = vpop.xlane.xlu0 %2407
  %v2409 = vsub.f32 %v2324, %v2405
  %v2410 = vsub.f32 %v2400, %v2408
  %v2411 = vmul.f32 %v2409, 1.442695
  %v2412 = vpow.pop %v2411
  %v2413 = vmul.f32 %v2410, 1.442695
  %v2414 = vpow.pop %v2413
  %v2415 = vsel %vm285, %v2412, 0.0
  %2416 = vadd.xlane.f32.xlu0 %v2415
  %v2417 = vpop.xlane.xlu0 %2416
  %v2418 = vsel %vm285, %v2414, 0.0
  %2419 = vadd.xlane.f32.xlu0 %v2418
  %v2420 = vpop.xlane.xlu0 %2419
  %v2421 = vrcp.pop %v2417
  %v2422 = vmul.f32 %v2412, %v2421
  %v2423 = vrcp.pop %v2420
  %v2424 = vmul.f32 %v2414, %v2423
  %v2426 = vsel %vm285, %v2422, 0
  %2428 = vmatprep.subr.mxu0 0.0
  %2429 = vmatpush1.msra.mxu0 %v2243
  %2430 = vmatprep.subr.mxu0 0.0
  %2431 = vmatpush1.msra.mxu0 0.0
  %2432 = vmatprep.subr.mxu0 0.0
  %2433 = vmatpush1.msra.mxu0 0.0
  %2434 = vmatprep.subr.mxu0 0.0
  %2435 = vmatpush1.msra.mxu0 0.0
  %2436 = vmatprep.subr.mxu0 0.0
  %2437 = vmatpush1.msra.mxu0 0.0
  %2438 = vmatprep.subr.mxu0 0.0
  %2439 = vmatpush1.msra.mxu0 0.0
  %2440 = vmatprep.subr.mxu0 0.0
  %2441 = vmatpush1.msra.mxu0 0.0
  %2442 = vmatprep.subr.mxu0 0.0
  %2443 = vmatpush1.msra.mxu0 0.0
  %2444 = vmatprep.subr.mxu0 0.0
  %2445 = vmatpush1.msra.mxu0 0.0
  %2446 = vmatprep.subr.mxu0 0.0
  %2447 = vmatpush1.msra.mxu0 0.0
  %2448 = vmatprep.subr.mxu0 0.0
  %2449 = vmatpush1.msra.mxu0 0.0
  %2450 = vmatprep.subr.mxu0 0.0
  %2451 = vmatpush1.msra.mxu0 0.0
  %2452 = vmatprep.subr.mxu0 0.0
  %2453 = vmatpush1.msra.mxu0 0.0
  %2454 = vmatprep.subr.mxu0 0.0
  %2455 = vmatpush1.msra.mxu0 0.0
  %2456 = vmatprep.subr.mxu0 0.0
  %2457 = vmatpush1.msra.mxu0 0.0
  %2458 = vmatprep.subr.mxu0 0.0
  %2459 = vmatpush1.msra.mxu0 0.0
  %2460 = vmatprep.subr.mxu0 0.0
  %2461 = vmatpush1.msra.mxu0 0.0
  %2462 = vmatprep.subr.mxu0 0.0
  %2463 = vmatpush1.msra.mxu0 0.0
  %2464 = vmatprep.subr.mxu0 0.0
  %2465 = vmatpush1.msra.mxu0 0.0
  %2466 = vmatprep.subr.mxu0 0.0
  %2467 = vmatpush1.msra.mxu0 0.0
  %2468 = vmatprep.subr.mxu0 0.0
  %2469 = vmatpush1.msra.mxu0 0.0
  %2470 = vmatprep.subr.mxu0 0.0
  %2471 = vmatpush1.msra.mxu0 0.0
  %2472 = vmatprep.subr.mxu0 0.0
  %2473 = vmatpush1.msra.mxu0 0.0
  %2474 = vmatprep.subr.mxu0 0.0
  %2475 = vmatpush1.msra.mxu0 0.0
  %2476 = vmatprep.subr.mxu0 0.0
  %2477 = vmatpush1.msra.mxu0 0.0
  %2478 = vmatprep.subr.mxu0 0.0
  %2479 = vmatpush1.msra.mxu0 0.0
  %2480 = vmatprep.subr.mxu0 0.0
  %2481 = vmatpush1.msra.mxu0 0.0
  %2482 = vmatprep.subr.mxu0 0.0
  %2483 = vmatpush1.msra.mxu0 0.0
  %2484 = vmatprep.subr.mxu0 0.0
  %2485 = vmatpush1.msra.mxu0 0.0
  %2486 = vmatprep.subr.mxu0 0.0
  %2487 = vmatpush1.msra.mxu0 0.0
  %2488 = vmatprep.subr.mxu0 0.0
  %2489 = vmatpush1.msra.mxu0 0.0
  %2490 = vmatprep.subr.mxu0 0.0
  %2491 = vmatpush1.msra.mxu0 0.0
  %2492 = vmatprep.mubr.f32.mxu0 0.0
  %2493 = vmatmul.mubr.f32.gmra.mrb[0].mxu0 %v2426
  %v2494 = vpop.f32.mrb[0].mxu0
  %v2495 = vadd.f32 0.0, %v2494
  %v2496 = vpop.f32.mrb[0].mxu0
  %2497 = vdwg.mxu0
  %v2499 = vsel %vm285, %v2424, 0
  %2501 = vmatprep.subr.mxu0 0.0
  %2502 = vmatpush1.msra.mxu0 %v2248
  %2503 = vmatprep.subr.mxu0 0.0
  %2504 = vmatpush1.msra.mxu0 0.0
  %2505 = vmatprep.subr.mxu0 0.0
  %2506 = vmatpush1.msra.mxu0 0.0
  %2507 = vmatprep.subr.mxu0 0.0
  %2508 = vmatpush1.msra.mxu0 0.0
  %2509 = vmatprep.subr.mxu0 0.0
  %2510 = vmatpush1.msra.mxu0 0.0
  %2511 = vmatprep.subr.mxu0 0.0
  %2512 = vmatpush1.msra.mxu0 0.0
  %2513 = vmatprep.subr.mxu0 0.0
  %2514 = vmatpush1.msra.mxu0 0.0
  %2515 = vmatprep.subr.mxu0 0.0
  %2516 = vmatpush1.msra.mxu0 0.0
  %2517 = vmatprep.subr.mxu0 0.0
  %2518 = vmatpush1.msra.mxu0 0.0
  %2519 = vmatprep.subr.mxu0 0.0
  %2520 = vmatpush1.msra.mxu0 0.0
  %2521 = vmatprep.subr.mxu0 0.0
  %2522 = vmatpush1.msra.mxu0 0.0
  %2523 = vmatprep.subr.mxu0 0.0
  %2524 = vmatpush1.msra.mxu0 0.0
  %2525 = vmatprep.subr.mxu0 0.0
  %2526 = vmatpush1.msra.mxu0 0.0
  %2527 = vmatprep.subr.mxu0 0.0
  %2528 = vmatpush1.msra.mxu0 0.0
  %2529 = vmatprep.subr.mxu0 0.0
  %2530 = vmatpush1.msra.mxu0 0.0
  %2531 = vmatprep.subr.mxu0 0.0
  %2532 = vmatpush1.msra.mxu0 0.0
  %2533 = vmatprep.subr.mxu0 0.0
  %2534 = vmatpush1.msra.mxu0 0.0
  %2535 = vmatprep.subr.mxu0 0.0
  %2536 = vmatpush1.msra.mxu0 0.0
  %2537 = vmatprep.subr.mxu0 0.0
  %2538 = vmatpush1.msra.mxu0 0.0
  %2539 = vmatprep.subr.mxu0 0.0
  %2540 = vmatpush1.msra.mxu0 0.0
  %2541 = vmatprep.subr.mxu0 0.0
  %2542 = vmatpush1.msra.mxu0 0.0
  %2543 = vmatprep.subr.mxu0 0.0
  %2544 = vmatpush1.msra.mxu0 0.0
  %2545 = vmatprep.subr.mxu0 0.0
  %2546 = vmatpush1.msra.mxu0 0.0
  %2547 = vmatprep.subr.mxu0 0.0
  %2548 = vmatpush1.msra.mxu0 0.0
  %2549 = vmatprep.subr.mxu0 0.0
  %2550 = vmatpush1.msra.mxu0 0.0
  %2551 = vmatprep.subr.mxu0 0.0
  %2552 = vmatpush1.msra.mxu0 0.0
  %2553 = vmatprep.subr.mxu0 0.0
  %2554 = vmatpush1.msra.mxu0 0.0
  %2555 = vmatprep.subr.mxu0 0.0
  %2556 = vmatpush1.msra.mxu0 0.0
  %2557 = vmatprep.subr.mxu0 0.0
  %2558 = vmatpush1.msra.mxu0 0.0
  %2559 = vmatprep.subr.mxu0 0.0
  %2560 = vmatpush1.msra.mxu0 0.0
  %2561 = vmatprep.subr.mxu0 0.0
  %2562 = vmatpush1.msra.mxu0 0.0
  %2563 = vmatprep.subr.mxu0 0.0
  %2564 = vmatpush1.msra.mxu0 0.0
  %2565 = vmatprep.mubr.f32.mxu0 0.0
  %2566 = vmatmul.mubr.f32.gmra.mrb[0].mxu0 %v2499
  %v2567 = vpop.f32.mrb[0].mxu0
  %v2568 = vadd.f32 0.0, %v2567
  %v2569 = vpop.f32.mrb[0].mxu0
  %2570 = vdwg.mxu0
  %2571 = vrot.lane.b32.xlu0 %v2075, 120
  %v2572 = vpop.permute.xlu0 %2571
  %2573 = vrot.lane.b32.xlu0 %v2159, 120
  %v2574 = vpop.permute.xlu0 %2573
  %v2575 = vsel %vm285, %v2572, 0
  %v2577 = vsel %vm285, %v2574, 0
  %2579 = vmatprep.subr.mxu0 0.0
  %2580 = vmatpush1.xpose.msra.mxu0 %v2577
  %2581 = vmatprep.subr.mxu0 0.0
  %2582 = vmatpush1.xpose.msra.mxu0 0.0
  %2583 = vmatprep.subr.mxu0 0.0
  %2584 = vmatpush1.xpose.msra.mxu0 0.0
  %2585 = vmatprep.subr.mxu0 0.0
  %2586 = vmatpush1.xpose.msra.mxu0 0.0
  %2587 = vmatprep.subr.mxu0 0.0
  %2588 = vmatpush1.xpose.msra.mxu0 0.0
  %2589 = vmatprep.subr.mxu0 0.0
  %2590 = vmatpush1.xpose.msra.mxu0 0.0
  %2591 = vmatprep.subr.mxu0 0.0
  %2592 = vmatpush1.xpose.msra.mxu0 0.0
  %2593 = vmatprep.subr.mxu0 0.0
  %2594 = vmatpush1.xpose.msra.mxu0 0.0
  %2595 = vmatprep.subr.mxu0 0.0
  %2596 = vmatpush1.xpose.msra.mxu0 0.0
  %2597 = vmatprep.subr.mxu0 0.0
  %2598 = vmatpush1.xpose.msra.mxu0 0.0
  %2599 = vmatprep.subr.mxu0 0.0
  %2600 = vmatpush1.xpose.msra.mxu0 0.0
  %2601 = vmatprep.subr.mxu0 0.0
  %2602 = vmatpush1.xpose.msra.mxu0 0.0
  %2603 = vmatprep.subr.mxu0 0.0
  %2604 = vmatpush1.xpose.msra.mxu0 0.0
  %2605 = vmatprep.subr.mxu0 0.0
  %2606 = vmatpush1.xpose.msra.mxu0 0.0
  %2607 = vmatprep.subr.mxu0 0.0
  %2608 = vmatpush1.xpose.msra.mxu0 0.0
  %2609 = vmatprep.subr.mxu0 0.0
  %2610 = vmatpush1.xpose.msra.mxu0 0.0
  %2611 = vmatprep.subr.mxu0 0.0
  %2612 = vmatpush1.xpose.msra.mxu0 0.0
  %2613 = vmatprep.subr.mxu0 0.0
  %2614 = vmatpush1.xpose.msra.mxu0 0.0
  %2615 = vmatprep.subr.mxu0 0.0
  %2616 = vmatpush1.xpose.msra.mxu0 0.0
  %2617 = vmatprep.subr.mxu0 0.0
  %2618 = vmatpush1.xpose.msra.mxu0 0.0
  %2619 = vmatprep.subr.mxu0 0.0
  %2620 = vmatpush1.xpose.msra.mxu0 0.0
  %2621 = vmatprep.subr.mxu0 0.0
  %2622 = vmatpush1.xpose.msra.mxu0 0.0
  %2623 = vmatprep.subr.mxu0 0.0
  %2624 = vmatpush1.xpose.msra.mxu0 0.0
  %2625 = vmatprep.subr.mxu0 0.0
  %2626 = vmatpush1.xpose.msra.mxu0 0.0
  %2627 = vmatprep.subr.mxu0 0.0
  %2628 = vmatpush1.xpose.msra.mxu0 0.0
  %2629 = vmatprep.subr.mxu0 0.0
  %2630 = vmatpush1.xpose.msra.mxu0 0.0
  %2631 = vmatprep.subr.mxu0 0.0
  %2632 = vmatpush1.xpose.msra.mxu0 0.0
  %2633 = vmatprep.subr.mxu0 0.0
  %2634 = vmatpush1.xpose.msra.mxu0 0.0
  %2635 = vmatprep.subr.mxu0 0.0
  %2636 = vmatpush1.xpose.msra.mxu0 0.0
  %2637 = vmatprep.subr.mxu0 0.0
  %2638 = vmatpush1.xpose.msra.mxu0 0.0
  %2639 = vmatprep.subr.mxu0 0.0
  %2640 = vmatpush1.xpose.msra.mxu0 0.0
  %2641 = vmatprep.subr.mxu0 0.0
  %2642 = vmatpush1.xpose.msra.mxu0 0.0
  %2643 = vmatprep.mubr.f32.mxu0 0.0
  %2644 = vmatmul.mubr.f32.gmra.mrb[0].mxu0 %v2575
  %v2645 = vpop.f32.mrb[0].mxu0
  %v2646 = vadd.f32 0.0, %v2645
  %v2647 = vpop.f32.mrb[0].mxu0
  %2648 = vdwg.mxu0
  %2649 = vrot.lane.b32.xlu0 %v2080, 120
  %v2650 = vpop.permute.xlu0 %2649
  %2651 = vrot.lane.b32.xlu0 %v2164, 120
  %v2652 = vpop.permute.xlu0 %2651
  %v2653 = vsel %vm285, %v2650, 0
  %v2655 = vsel %vm285, %v2652, 0
  %2657 = vmatprep.subr.mxu0 0.0
  %2658 = vmatpush1.xpose.msra.mxu0 %v2655
  %2659 = vmatprep.subr.mxu0 0.0
  %2660 = vmatpush1.xpose.msra.mxu0 0.0
  %2661 = vmatprep.subr.mxu0 0.0
  %2662 = vmatpush1.xpose.msra.mxu0 0.0
  %2663 = vmatprep.subr.mxu0 0.0
  %2664 = vmatpush1.xpose.msra.mxu0 0.0
  %2665 = vmatprep.subr.mxu0 0.0
  %2666 = vmatpush1.xpose.msra.mxu0 0.0
  %2667 = vmatprep.subr.mxu0 0.0
  %2668 = vmatpush1.xpose.msra.mxu0 0.0
  %2669 = vmatprep.subr.mxu0 0.0
  %2670 = vmatpush1.xpose.msra.mxu0 0.0
  %2671 = vmatprep.subr.mxu0 0.0
  %2672 = vmatpush1.xpose.msra.mxu0 0.0
  %2673 = vmatprep.subr.mxu0 0.0
  %2674 = vmatpush1.xpose.msra.mxu0 0.0
  %2675 = vmatprep.subr.mxu0 0.0
  %2676 = vmatpush1.xpose.msra.mxu0 0.0
  %2677 = vmatprep.subr.mxu0 0.0
  %2678 = vmatpush1.xpose.msra.mxu0 0.0
  %2679 = vmatprep.subr.mxu0 0.0
  %2680 = vmatpush1.xpose.msra.mxu0 0.0
  %2681 = vmatprep.subr.mxu0 0.0
  %2682 = vmatpush1.xpose.msra.mxu0 0.0
  %2683 = vmatprep.subr.mxu0 0.0
  %2684 = vmatpush1.xpose.msra.mxu0 0.0
  %2685 = vmatprep.subr.mxu0 0.0
  %2686 = vmatpush1.xpose.msra.mxu0 0.0
  %2687 = vmatprep.subr.mxu0 0.0
  %2688 = vmatpush1.xpose.msra.mxu0 0.0
  %2689 = vmatprep.subr.mxu0 0.0
  %2690 = vmatpush1.xpose.msra.mxu0 0.0
  %2691 = vmatprep.subr.mxu0 0.0
  %2692 = vmatpush1.xpose.msra.mxu0 0.0
  %2693 = vmatprep.subr.mxu0 0.0
  %2694 = vmatpush1.xpose.msra.mxu0 0.0
  %2695 = vmatprep.subr.mxu0 0.0
  %2696 = vmatpush1.xpose.msra.mxu0 0.0
  %2697 = vmatprep.subr.mxu0 0.0
  %2698 = vmatpush1.xpose.msra.mxu0 0.0
  %2699 = vmatprep.subr.mxu0 0.0
  %2700 = vmatpush1.xpose.msra.mxu0 0.0
  %2701 = vmatprep.subr.mxu0 0.0
  %2702 = vmatpush1.xpose.msra.mxu0 0.0
  %2703 = vmatprep.subr.mxu0 0.0
  %2704 = vmatpush1.xpose.msra.mxu0 0.0
  %2705 = vmatprep.subr.mxu0 0.0
  %2706 = vmatpush1.xpose.msra.mxu0 0.0
  %2707 = vmatprep.subr.mxu0 0.0
  %2708 = vmatpush1.xpose.msra.mxu0 0.0
  %2709 = vmatprep.subr.mxu0 0.0
  %2710 = vmatpush1.xpose.msra.mxu0 0.0
  %2711 = vmatprep.subr.mxu0 0.0
  %2712 = vmatpush1.xpose.msra.mxu0 0.0
  %2713 = vmatprep.subr.mxu0 0.0
  %2714 = vmatpush1.xpose.msra.mxu0 0.0
  %2715 = vmatprep.subr.mxu0 0.0
  %2716 = vmatpush1.xpose.msra.mxu0 0.0
  %2717 = vmatprep.subr.mxu0 0.0
  %2718 = vmatpush1.xpose.msra.mxu0 0.0
  %2719 = vmatprep.subr.mxu0 0.0
  %2720 = vmatpush1.xpose.msra.mxu0 0.0
  %2721 = vmatprep.mubr.f32.mxu0 0.0
  %2722 = vmatmul.mubr.f32.gmra.mrb[0].mxu0 %v2653
  %v2723 = vpop.f32.mrb[0].mxu0
  %v2724 = vadd.f32 0.0, %v2723
  %v2725 = vpop.f32.mrb[0].mxu0
  %2726 = vdwg.mxu0
  %v2727 = vsel %vm285, %v2646, -inf
  %2728 = vmax.xlane.f32.xlu0 %v2727
  %v2729 = vpop.xlane.xlu0 %2728
  %v2730 = vsel %vm285, %v2724, -inf
  %2731 = vmax.xlane.f32.xlu0 %v2730
  %v2732 = vpop.xlane.xlu0 %2731
  %v2733 = vsub.f32 %v2646, %v2729
  %v2734 = vsub.f32 %v2724, %v2732
  %v2735 = vmul.f32 %v2733, 1.442695
  %v2736 = vpow.pop %v2735
  %v2737 = vmul.f32 %v2734, 1.442695
  %v2738 = vpow.pop %v2737
  %v2739 = vsel %vm285, %v2736, 0.0
  %2740 = vadd.xlane.f32.xlu0 %v2739
  %v2741 = vpop.xlane.xlu0 %2740
  %v2742 = vsel %vm285, %v2738, 0.0
  %2743 = vadd.xlane.f32.xlu0 %v2742
  %v2744 = vpop.xlane.xlu0 %2743
  %v2745 = vrcp.pop %v2741
  %v2746 = vmul.f32 %v2736, %v2745
  %v2747 = vrcp.pop %v2744
  %v2748 = vmul.f32 %v2738, %v2747
  %2750 = vrot.lane.b32.xlu0 %v2243, 120
  %v2751 = vpop.permute.xlu0 %2750
  %v2754 = vsel %vm285, %v2746, 0
  %2756 = vmatprep.subr.mxu0 0.0
  %2757 = vmatpush1.msra.mxu0 %v2751
  %2758 = vmatprep.subr.mxu0 0.0
  %2759 = vmatpush1.msra.mxu0 0.0
  %2760 = vmatprep.subr.mxu0 0.0
  %2761 = vmatpush1.msra.mxu0 0.0
  %2762 = vmatprep.subr.mxu0 0.0
  %2763 = vmatpush1.msra.mxu0 0.0
  %2764 = vmatprep.subr.mxu0 0.0
  %2765 = vmatpush1.msra.mxu0 0.0
  %2766 = vmatprep.subr.mxu0 0.0
  %2767 = vmatpush1.msra.mxu0 0.0
  %2768 = vmatprep.subr.mxu0 0.0
  %2769 = vmatpush1.msra.mxu0 0.0
  %2770 = vmatprep.subr.mxu0 0.0
  %2771 = vmatpush1.msra.mxu0 0.0
  %2772 = vmatprep.subr.mxu0 0.0
  %2773 = vmatpush1.msra.mxu0 0.0
  %2774 = vmatprep.subr.mxu0 0.0
  %2775 = vmatpush1.msra.mxu0 0.0
  %2776 = vmatprep.subr.mxu0 0.0
  %2777 = vmatpush1.msra.mxu0 0.0
  %2778 = vmatprep.subr.mxu0 0.0
  %2779 = vmatpush1.msra.mxu0 0.0
  %2780 = vmatprep.subr.mxu0 0.0
  %2781 = vmatpush1.msra.mxu0 0.0
  %2782 = vmatprep.subr.mxu0 0.0
  %2783 = vmatpush1.msra.mxu0 0.0
  %2784 = vmatprep.subr.mxu0 0.0
  %2785 = vmatpush1.msra.mxu0 0.0
  %2786 = vmatprep.subr.mxu0 0.0
  %2787 = vmatpush1.msra.mxu0 0.0
  %2788 = vmatprep.subr.mxu0 0.0
  %2789 = vmatpush1.msra.mxu0 0.0
  %2790 = vmatprep.subr.mxu0 0.0
  %2791 = vmatpush1.msra.mxu0 0.0
  %2792 = vmatprep.subr.mxu0 0.0
  %2793 = vmatpush1.msra.mxu0 0.0
  %2794 = vmatprep.subr.mxu0 0.0
  %2795 = vmatpush1.msra.mxu0 0.0
  %2796 = vmatprep.subr.mxu0 0.0
  %2797 = vmatpush1.msra.mxu0 0.0
  %2798 = vmatprep.subr.mxu0 0.0
  %2799 = vmatpush1.msra.mxu0 0.0
  %2800 = vmatprep.subr.mxu0 0.0
  %2801 = vmatpush1.msra.mxu0 0.0
  %2802 = vmatprep.subr.mxu0 0.0
  %2803 = vmatpush1.msra.mxu0 0.0
  %2804 = vmatprep.subr.mxu0 0.0
  %2805 = vmatpush1.msra.mxu0 0.0
  %2806 = vmatprep.subr.mxu0 0.0
  %2807 = vmatpush1.msra.mxu0 0.0
  %2808 = vmatprep.subr.mxu0 0.0
  %2809 = vmatpush1.msra.mxu0 0.0
  %2810 = vmatprep.subr.mxu0 0.0
  %2811 = vmatpush1.msra.mxu0 0.0
  %2812 = vmatprep.subr.mxu0 0.0
  %2813 = vmatpush1.msra.mxu0 0.0
  %2814 = vmatprep.subr.mxu0 0.0
  %2815 = vmatpush1.msra.mxu0 0.0
  %2816 = vmatprep.subr.mxu0 0.0
  %2817 = vmatpush1.msra.mxu0 0.0
  %2818 = vmatprep.subr.mxu0 0.0
  %2819 = vmatpush1.msra.mxu0 0.0
  %2820 = vmatprep.mubr.f32.mxu0 0.0
  %2821 = vmatmul.mubr.f32.gmra.mrb[0].mxu0 %v2754
  %v2822 = vpop.f32.mrb[0].mxu0
  %v2823 = vadd.f32 0.0, %v2822
  %v2824 = vpop.f32.mrb[0].mxu0
  %2825 = vdwg.mxu0
  %2827 = vrot.lane.b32.xlu0 %v2248, 120
  %v2828 = vpop.permute.xlu0 %2827
  %v2831 = vsel %vm285, %v2748, 0
  %2833 = vmatprep.subr.mxu0 0.0
  %2834 = vmatpush1.msra.mxu0 %v2828
  %2835 = vmatprep.subr.mxu0 0.0
  %2836 = vmatpush1.msra.mxu0 0.0
  %2837 = vmatprep.subr.mxu0 0.0
  %2838 = vmatpush1.msra.mxu0 0.0
  %2839 = vmatprep.subr.mxu0 0.0
  %2840 = vmatpush1.msra.mxu0 0.0
  %2841 = vmatprep.subr.mxu0 0.0
  %2842 = vmatpush1.msra.mxu0 0.0
  %2843 = vmatprep.subr.mxu0 0.0
  %2844 = vmatpush1.msra.mxu0 0.0
  %2845 = vmatprep.subr.mxu0 0.0
  %2846 = vmatpush1.msra.mxu0 0.0
  %2847 = vmatprep.subr.mxu0 0.0
  %2848 = vmatpush1.msra.mxu0 0.0
  %2849 = vmatprep.subr.mxu0 0.0
  %2850 = vmatpush1.msra.mxu0 0.0
  %2851 = vmatprep.subr.mxu0 0.0
  %2852 = vmatpush1.msra.mxu0 0.0
  %2853 = vmatprep.subr.mxu0 0.0
  %2854 = vmatpush1.msra.mxu0 0.0
  %2855 = vmatprep.subr.mxu0 0.0
  %2856 = vmatpush1.msra.mxu0 0.0
  %2857 = vmatprep.subr.mxu0 0.0
  %2858 = vmatpush1.msra.mxu0 0.0
  %2859 = vmatprep.subr.mxu0 0.0
  %2860 = vmatpush1.msra.mxu0 0.0
  %2861 = vmatprep.subr.mxu0 0.0
  %2862 = vmatpush1.msra.mxu0 0.0
  %2863 = vmatprep.subr.mxu0 0.0
  %2864 = vmatpush1.msra.mxu0 0.0
  %2865 = vmatprep.subr.mxu0 0.0
  %2866 = vmatpush1.msra.mxu0 0.0
  %2867 = vmatprep.subr.mxu0 0.0
  %2868 = vmatpush1.msra.mxu0 0.0
  %2869 = vmatprep.subr.mxu0 0.0
  %2870 = vmatpush1.msra.mxu0 0.0
  %2871 = vmatprep.subr.mxu0 0.0
  %2872 = vmatpush1.msra.mxu0 0.0
  %2873 = vmatprep.subr.mxu0 0.0
  %2874 = vmatpush1.msra.mxu0 0.0
  %2875 = vmatprep.subr.mxu0 0.0
  %2876 = vmatpush1.msra.mxu0 0.0
  %2877 = vmatprep.subr.mxu0 0.0
  %2878 = vmatpush1.msra.mxu0 0.0
  %2879 = vmatprep.subr.mxu0 0.0
  %2880 = vmatpush1.msra.mxu0 0.0
  %2881 = vmatprep.subr.mxu0 0.0
  %2882 = vmatpush1.msra.mxu0 0.0
  %2883 = vmatprep.subr.mxu0 0.0
  %2884 = vmatpush1.msra.mxu0 0.0
  %2885 = vmatprep.subr.mxu0 0.0
  %2886 = vmatpush1.msra.mxu0 0.0
  %2887 = vmatprep.subr.mxu0 0.0
  %2888 = vmatpush1.msra.mxu0 0.0
  %2889 = vmatprep.subr.mxu0 0.0
  %2890 = vmatpush1.msra.mxu0 0.0
  %2891 = vmatprep.subr.mxu0 0.0
  %2892 = vmatpush1.msra.mxu0 0.0
  %2893 = vmatprep.subr.mxu0 0.0
  %2894 = vmatpush1.msra.mxu0 0.0
  %2895 = vmatprep.subr.mxu0 0.0
  %2896 = vmatpush1.msra.mxu0 0.0
  %2897 = vmatprep.mubr.f32.mxu0 0.0
  %2898 = vmatmul.mubr.f32.gmra.mrb[0].mxu0 %v2831
  %v2899 = vpop.f32.mrb[0].mxu0
  %v2900 = vadd.f32 0.0, %v2899
  %v2901 = vpop.f32.mrb[0].mxu0
  %2902 = vdwg.mxu0
  %2903 = vrot.lane.b32.xlu0 %v2075, 112
  %v2904 = vpop.permute.xlu0 %2903
  %2905 = vrot.lane.b32.xlu0 %v2159, 112
  %v2906 = vpop.permute.xlu0 %2905
  %v2907 = vsel %vm285, %v2904, 0
  %v2909 = vsel %vm285, %v2906, 0
  %2911 = vmatprep.subr.mxu0 0.0
  %2912 = vmatpush1.xpose.msra.mxu0 %v2909
  %2913 = vmatprep.subr.mxu0 0.0
  %2914 = vmatpush1.xpose.msra.mxu0 0.0
  %2915 = vmatprep.subr.mxu0 0.0
  %2916 = vmatpush1.xpose.msra.mxu0 0.0
  %2917 = vmatprep.subr.mxu0 0.0
  %2918 = vmatpush1.xpose.msra.mxu0 0.0
  %2919 = vmatprep.subr.mxu0 0.0
  %2920 = vmatpush1.xpose.msra.mxu0 0.0
  %2921 = vmatprep.subr.mxu0 0.0
  %2922 = vmatpush1.xpose.msra.mxu0 0.0
  %2923 = vmatprep.subr.mxu0 0.0
  %2924 = vmatpush1.xpose.msra.mxu0 0.0
  %2925 = vmatprep.subr.mxu0 0.0
  %2926 = vmatpush1.xpose.msra.mxu0 0.0
  %2927 = vmatprep.subr.mxu0 0.0
  %2928 = vmatpush1.xpose.msra.mxu0 0.0
  %2929 = vmatprep.subr.mxu0 0.0
  %2930 = vmatpush1.xpose.msra.mxu0 0.0
  %2931 = vmatprep.subr.mxu0 0.0
  %2932 = vmatpush1.xpose.msra.mxu0 0.0
  %2933 = vmatprep.subr.mxu0 0.0
  %2934 = vmatpush1.xpose.msra.mxu0 0.0
  %2935 = vmatprep.subr.mxu0 0.0
  %2936 = vmatpush1.xpose.msra.mxu0 0.0
  %2937 = vmatprep.subr.mxu0 0.0
  %2938 = vmatpush1.xpose.msra.mxu0 0.0
  %2939 = vmatprep.subr.mxu0 0.0
  %2940 = vmatpush1.xpose.msra.mxu0 0.0
  %2941 = vmatprep.subr.mxu0 0.0
  %2942 = vmatpush1.xpose.msra.mxu0 0.0
  %2943 = vmatprep.subr.mxu0 0.0
  %2944 = vmatpush1.xpose.msra.mxu0 0.0
  %2945 = vmatprep.subr.mxu0 0.0
  %2946 = vmatpush1.xpose.msra.mxu0 0.0
  %2947 = vmatprep.subr.mxu0 0.0
  %2948 = vmatpush1.xpose.msra.mxu0 0.0
  %2949 = vmatprep.subr.mxu0 0.0
  %2950 = vmatpush1.xpose.msra.mxu0 0.0
  %2951 = vmatprep.subr.mxu0 0.0
  %2952 = vmatpush1.xpose.msra.mxu0 0.0
  %2953 = vmatprep.subr.mxu0 0.0
  %2954 = vmatpush1.xpose.msra.mxu0 0.0
  %2955 = vmatprep.subr.mxu0 0.0
  %2956 = vmatpush1.xpose.msra.mxu0 0.0
  %2957 = vmatprep.subr.mxu0 0.0
  %2958 = vmatpush1.xpose.msra.mxu0 0.0
  %2959 = vmatprep.subr.mxu0 0.0
  %2960 = vmatpush1.xpose.msra.mxu0 0.0
  %2961 = vmatprep.subr.mxu0 0.0
  %2962 = vmatpush1.xpose.msra.mxu0 0.0
  %2963 = vmatprep.subr.mxu0 0.0
  %2964 = vmatpush1.xpose.msra.mxu0 0.0
  %2965 = vmatprep.subr.mxu0 0.0
  %2966 = vmatpush1.xpose.msra.mxu0 0.0
  %2967 = vmatprep.subr.mxu0 0.0
  %2968 = vmatpush1.xpose.msra.mxu0 0.0
  %2969 = vmatprep.subr.mxu0 0.0
  %2970 = vmatpush1.xpose.msra.mxu0 0.0
  %2971 = vmatprep.subr.mxu0 0.0
  %2972 = vmatpush1.xpose.msra.mxu0 0.0
  %2973 = vmatprep.subr.mxu0 0.0
  %2974 = vmatpush1.xpose.msra.mxu0 0.0
  %2975 = vmatprep.mubr.f32.mxu0 0.0
  %2976 = vmatmul.mubr.f32.gmra.mrb[0].mxu0 %v2907
  %v2977 = vpop.f32.mrb[0].mxu0
  %v2978 = vadd.f32 0.0, %v2977
  %v2979 = vpop.f32.mrb[0].mxu0
  %2980 = vdwg.mxu0
  %2981 = vrot.lane.b32.xlu0 %v2080, 112
  %v2982 = vpop.permute.xlu0 %2981
  %2983 = vrot.lane.b32.xlu0 %v2164, 112
  %v2984 = vpop.permute.xlu0 %2983
  %v2985 = vsel %vm285, %v2982, 0
  %v2987 = vsel %vm285, %v2984, 0
  %2989 = vmatprep.subr.mxu0 0.0
  %2990 = vmatpush1.xpose.msra.mxu0 %v2987
  %2991 = vmatprep.subr.mxu0 0.0
  %2992 = vmatpush1.xpose.msra.mxu0 0.0
  %2993 = vmatprep.subr.mxu0 0.0
  %2994 = vmatpush1.xpose.msra.mxu0 0.0
  %2995 = vmatprep.subr.mxu0 0.0
  %2996 = vmatpush1.xpose.msra.mxu0 0.0
  %2997 = vmatprep.subr.mxu0 0.0
  %2998 = vmatpush1.xpose.msra.mxu0 0.0
  %2999 = vmatprep.subr.mxu0 0.0
  %3000 = vmatpush1.xpose.msra.mxu0 0.0
  %3001 = vmatprep.subr.mxu0 0.0
  %3002 = vmatpush1.xpose.msra.mxu0 0.0
  %3003 = vmatprep.subr.mxu0 0.0
  %3004 = vmatpush1.xpose.msra.mxu0 0.0
  %3005 = vmatprep.subr.mxu0 0.0
  %3006 = vmatpush1.xpose.msra.mxu0 0.0
  %3007 = vmatprep.subr.mxu0 0.0
  %3008 = vmatpush1.xpose.msra.mxu0 0.0
  %3009 = vmatprep.subr.mxu0 0.0
  %3010 = vmatpush1.xpose.msra.mxu0 0.0
  %3011 = vmatprep.subr.mxu0 0.0
  %3012 = vmatpush1.xpose.msra.mxu0 0.0
  %3013 = vmatprep.subr.mxu0 0.0
  %3014 = vmatpush1.xpose.msra.mxu0 0.0
  %3015 = vmatprep.subr.mxu0 0.0
  %3016 = vmatpush1.xpose.msra.mxu0 0.0
  %3017 = vmatprep.subr.mxu0 0.0
  %3018 = vmatpush1.xpose.msra.mxu0 0.0
  %3019 = vmatprep.subr.mxu0 0.0
  %3020 = vmatpush1.xpose.msra.mxu0 0.0
  %3021 = vmatprep.subr.mxu0 0.0
  %3022 = vmatpush1.xpose.msra.mxu0 0.0
  %3023 = vmatprep.subr.mxu0 0.0
  %3024 = vmatpush1.xpose.msra.mxu0 0.0
  %3025 = vmatprep.subr.mxu0 0.0
  %3026 = vmatpush1.xpose.msra.mxu0 0.0
  %3027 = vmatprep.subr.mxu0 0.0
  %3028 = vmatpush1.xpose.msra.mxu0 0.0
  %3029 = vmatprep.subr.mxu0 0.0
  %3030 = vmatpush1.xpose.msra.mxu0 0.0
  %3031 = vmatprep.subr.mxu0 0.0
  %3032 = vmatpush1.xpose.msra.mxu0 0.0
  %3033 = vmatprep.subr.mxu0 0.0
  %3034 = vmatpush1.xpose.msra.mxu0 0.0
  %3035 = vmatprep.subr.mxu0 0.0
  %3036 = vmatpush1.xpose.msra.mxu0 0.0
  %3037 = vmatprep.subr.mxu0 0.0
  %3038 = vmatpush1.xpose.msra.mxu0 0.0
  %3039 = vmatprep.subr.mxu0 0.0
  %3040 = vmatpush1.xpose.msra.mxu0 0.0
  %3041 = vmatprep.subr.mxu0 0.0
  %3042 = vmatpush1.xpose.msra.mxu0 0.0
  %3043 = vmatprep.subr.mxu0 0.0
  %3044 = vmatpush1.xpose.msra.mxu0 0.0
  %3045 = vmatprep.subr.mxu0 0.0
  %3046 = vmatpush1.xpose.msra.mxu0 0.0
  %3047 = vmatprep.subr.mxu0 0.0
  %3048 = vmatpush1.xpose.msra.mxu0 0.0
  %3049 = vmatprep.subr.mxu0 0.0
  %3050 = vmatpush1.xpose.msra.mxu0 0.0
  %3051 = vmatprep.subr.mxu0 0.0
  %3052 = vmatpush1.xpose.msra.mxu0 0.0
  %3053 = vmatprep.mubr.f32.mxu0 0.0
  %3054 = vmatmul.mubr.f32.gmra.mrb[0].mxu0 %v2985
  %v3055 = vpop.f32.mrb[0].mxu0
  %v3056 = vadd.f32 0.0, %v3055
  %v3057 = vpop.f32.mrb[0].mxu0
  %3058 = vdwg.mxu0
  %v3059 = vsel %vm285, %v2978, -inf
  %3060 = vmax.xlane.f32.xlu0 %v3059
  %v3061 = vpop.xlane.xlu0 %3060
  %v3062 = vsel %vm285, %v3056, -inf
  %3063 = vmax.xlane.f32.xlu0 %v3062
  %v3064 = vpop.xlane.xlu0 %3063
  %v3065 = vsub.f32 %v2978, %v3061
  %v3066 = vsub.f32 %v3056, %v3064
  %v3067 = vmul.f32 %v3065, 1.442695
  %v3068 = vpow.pop %v3067
  %v3069 = vmul.f32 %v3066, 1.442695
  %v3070 = vpow.pop %v3069
  %v3071 = vsel %vm285, %v3068, 0.0
  %3072 = vadd.xlane.f32.xlu0 %v3071
  %v3073 = vpop.xlane.xlu0 %3072
  %v3074 = vsel %vm285, %v3070, 0.0
  %3075 = vadd.xlane.f32.xlu0 %v3074
  %v3076 = vpop.xlane.xlu0 %3075
  %v3077 = vrcp.pop %v3073
  %v3078 = vmul.f32 %v3068, %v3077
  %v3079 = vrcp.pop %v3076
  %v3080 = vmul.f32 %v3070, %v3079
  %3081 = vrot.lane.b32.xlu0 %v2243, 112
  %v3082 = vpop.permute.xlu0 %3081
  %v3085 = vsel %vm285, %v3078, 0
  %3087 = vmatprep.subr.mxu0 0.0
  %3088 = vmatpush1.msra.mxu0 %v3082
  %3089 = vmatprep.subr.mxu0 0.0
  %3090 = vmatpush1.msra.mxu0 0.0
  %3091 = vmatprep.subr.mxu0 0.0
  %3092 = vmatpush1.msra.mxu0 0.0
  %3093 = vmatprep.subr.mxu0 0.0
  %3094 = vmatpush1.msra.mxu0 0.0
  %3095 = vmatprep.subr.mxu0 0.0
  %3096 = vmatpush1.msra.mxu0 0.0
  %3097 = vmatprep.subr.mxu0 0.0
  %3098 = vmatpush1.msra.mxu0 0.0
  %3099 = vmatprep.subr.mxu0 0.0
  %3100 = vmatpush1.msra.mxu0 0.0
  %3101 = vmatprep.subr.mxu0 0.0
  %3102 = vmatpush1.msra.mxu0 0.0
  %3103 = vmatprep.subr.mxu0 0.0
  %3104 = vmatpush1.msra.mxu0 0.0
  %3105 = vmatprep.subr.mxu0 0.0
  %3106 = vmatpush1.msra.mxu0 0.0
  %3107 = vmatprep.subr.mxu0 0.0
  %3108 = vmatpush1.msra.mxu0 0.0
  %3109 = vmatprep.subr.mxu0 0.0
  %3110 = vmatpush1.msra.mxu0 0.0
  %3111 = vmatprep.subr.mxu0 0.0
  %3112 = vmatpush1.msra.mxu0 0.0
  %3113 = vmatprep.subr.mxu0 0.0
  %3114 = vmatpush1.msra.mxu0 0.0
  %3115 = vmatprep.subr.mxu0 0.0
  %3116 = vmatpush1.msra.mxu0 0.0
  %3117 = vmatprep.subr.mxu0 0.0
  %3118 = vmatpush1.msra.mxu0 0.0
  %3119 = vmatprep.subr.mxu0 0.0
  %3120 = vmatpush1.msra.mxu0 0.0
  %3121 = vmatprep.subr.mxu0 0.0
  %3122 = vmatpush1.msra.mxu0 0.0
  %3123 = vmatprep.subr.mxu0 0.0
  %3124 = vmatpush1.msra.mxu0 0.0
  %3125 = vmatprep.subr.mxu0 0.0
  %3126 = vmatpush1.msra.mxu0 0.0
  %3127 = vmatprep.subr.mxu0 0.0
  %3128 = vmatpush1.msra.mxu0 0.0
  %3129 = vmatprep.subr.mxu0 0.0
  %3130 = vmatpush1.msra.mxu0 0.0
  %3131 = vmatprep.subr.mxu0 0.0
  %3132 = vmatpush1.msra.mxu0 0.0
  %3133 = vmatprep.subr.mxu0 0.0
  %3134 = vmatpush1.msra.mxu0 0.0
  %3135 = vmatprep.subr.mxu0 0.0
  %3136 = vmatpush1.msra.mxu0 0.0
  %3137 = vmatprep.subr.mxu0 0.0
  %3138 = vmatpush1.msra.mxu0 0.0
  %3139 = vmatprep.subr.mxu0 0.0
  %3140 = vmatpush1.msra.mxu0 0.0
  %3141 = vmatprep.subr.mxu0 0.0
  %3142 = vmatpush1.msra.mxu0 0.0
  %3143 = vmatprep.subr.mxu0 0.0
  %3144 = vmatpush1.msra.mxu0 0.0
  %3145 = vmatprep.subr.mxu0 0.0
  %3146 = vmatpush1.msra.mxu0 0.0
  %3147 = vmatprep.subr.mxu0 0.0
  %3148 = vmatpush1.msra.mxu0 0.0
  %3149 = vmatprep.subr.mxu0 0.0
  %3150 = vmatpush1.msra.mxu0 0.0
  %3151 = vmatprep.mubr.f32.mxu0 0.0
  %3152 = vmatmul.mubr.f32.gmra.mrb[0].mxu0 %v3085
  %v3153 = vpop.f32.mrb[0].mxu0
  %v3154 = vadd.f32 0.0, %v3153
  %v3155 = vpop.f32.mrb[0].mxu0
  %3156 = vdwg.mxu0
  %3157 = vrot.lane.b32.xlu0 %v2248, 112
  %v3158 = vpop.permute.xlu0 %3157
  %v3161 = vsel %vm285, %v3080, 0
  %3163 = vmatprep.subr.mxu0 0.0
  %3164 = vmatpush1.msra.mxu0 %v3158
  %3165 = vmatprep.subr.mxu0 0.0
  %3166 = vmatpush1.msra.mxu0 0.0
  %3167 = vmatprep.subr.mxu0 0.0
  %3168 = vmatpush1.msra.mxu0 0.0
  %3169 = vmatprep.subr.mxu0 0.0
  %3170 = vmatpush1.msra.mxu0 0.0
  %3171 = vmatprep.subr.mxu0 0.0
  %3172 = vmatpush1.msra.mxu0 0.0
  %3173 = vmatprep.subr.mxu0 0.0
  %3174 = vmatpush1.msra.mxu0 0.0
  %3175 = vmatprep.subr.mxu0 0.0
  %3176 = vmatpush1.msra.mxu0 0.0
  %3177 = vmatprep.subr.mxu0 0.0
  %3178 = vmatpush1.msra.mxu0 0.0
  %3179 = vmatprep.subr.mxu0 0.0
  %3180 = vmatpush1.msra.mxu0 0.0
  %3181 = vmatprep.subr.mxu0 0.0
  %3182 = vmatpush1.msra.mxu0 0.0
  %3183 = vmatprep.subr.mxu0 0.0
  %3184 = vmatpush1.msra.mxu0 0.0
  %3185 = vmatprep.subr.mxu0 0.0
  %3186 = vmatpush1.msra.mxu0 0.0
  %3187 = vmatprep.subr.mxu0 0.0
  %3188 = vmatpush1.msra.mxu0 0.0
  %3189 = vmatprep.subr.mxu0 0.0
  %3190 = vmatpush1.msra.mxu0 0.0
  %3191 = vmatprep.subr.mxu0 0.0
  %3192 = vmatpush1.msra.mxu0 0.0
  %3193 = vmatprep.subr.mxu0 0.0
  %3194 = vmatpush1.msra.mxu0 0.0
  %3195 = vmatprep.subr.mxu0 0.0
  %3196 = vmatpush1.msra.mxu0 0.0
  %3197 = vmatprep.subr.mxu0 0.0
  %3198 = vmatpush1.msra.mxu0 0.0
  %3199 = vmatprep.subr.mxu0 0.0
  %3200 = vmatpush1.msra.mxu0 0.0
  %3201 = vmatprep.subr.mxu0 0.0
  %3202 = vmatpush1.msra.mxu0 0.0
  %3203 = vmatprep.subr.mxu0 0.0
  %3204 = vmatpush1.msra.mxu0 0.0
  %3205 = vmatprep.subr.mxu0 0.0
  %3206 = vmatpush1.msra.mxu0 0.0
  %3207 = vmatprep.subr.mxu0 0.0
  %3208 = vmatpush1.msra.mxu0 0.0
  %3209 = vmatprep.subr.mxu0 0.0
  %3210 = vmatpush1.msra.mxu0 0.0
  %3211 = vmatprep.subr.mxu0 0.0
  %3212 = vmatpush1.msra.mxu0 0.0
  %3213 = vmatprep.subr.mxu0 0.0
  %3214 = vmatpush1.msra.mxu0 0.0
  %3215 = vmatprep.subr.mxu0 0.0
  %3216 = vmatpush1.msra.mxu0 0.0
  %3217 = vmatprep.subr.mxu0 0.0
  %3218 = vmatpush1.msra.mxu0 0.0
  %3219 = vmatprep.subr.mxu0 0.0
  %3220 = vmatpush1.msra.mxu0 0.0
  %3221 = vmatprep.subr.mxu0 0.0
  %3222 = vmatpush1.msra.mxu0 0.0
  %3223 = vmatprep.subr.mxu0 0.0
  %3224 = vmatpush1.msra.mxu0 0.0
  %3225 = vmatprep.subr.mxu0 0.0
  %3226 = vmatpush1.msra.mxu0 0.0
  %3227 = vmatprep.mubr.f32.mxu0 0.0
  %3228 = vmatmul.mubr.f32.gmra.mrb[0].mxu0 %v3161
  %v3229 = vpop.f32.mrb[0].mxu0
  %v3230 = vadd.f32 0.0, %v3229
  %v3231 = vpop.f32.mrb[0].mxu0
  %3232 = vdwg.mxu0
  %3233 = vrot.lane.b32.xlu0 %v2075, 104
  %v3234 = vpop.permute.xlu0 %3233
  %3235 = vrot.lane.b32.xlu0 %v2159, 104
  %v3236 = vpop.permute.xlu0 %3235
  %v3237 = vsel %vm285, %v3234, 0
  %v3239 = vsel %vm285, %v3236, 0
  %3241 = vmatprep.subr.mxu0 0.0
  %3242 = vmatpush1.xpose.msra.mxu0 %v3239
  %3243 = vmatprep.subr.mxu0 0.0
  %3244 = vmatpush1.xpose.msra.mxu0 0.0
  %3245 = vmatprep.subr.mxu0 0.0
  %3246 = vmatpush1.xpose.msra.mxu0 0.0
  %3247 = vmatprep.subr.mxu0 0.0
  %3248 = vmatpush1.xpose.msra.mxu0 0.0
  %3249 = vmatprep.subr.mxu0 0.0
  %3250 = vmatpush1.xpose.msra.mxu0 0.0
  %3251 = vmatprep.subr.mxu0 0.0
  %3252 = vmatpush1.xpose.msra.mxu0 0.0
  %3253 = vmatprep.subr.mxu0 0.0
  %3254 = vmatpush1.xpose.msra.mxu0 0.0
  %3255 = vmatprep.subr.mxu0 0.0
  %3256 = vmatpush1.xpose.msra.mxu0 0.0
  %3257 = vmatprep.subr.mxu0 0.0
  %3258 = vmatpush1.xpose.msra.mxu0 0.0
  %3259 = vmatprep.subr.mxu0 0.0
  %3260 = vmatpush1.xpose.msra.mxu0 0.0
  %3261 = vmatprep.subr.mxu0 0.0
  %3262 = vmatpush1.xpose.msra.mxu0 0.0
  %3263 = vmatprep.subr.mxu0 0.0
  %3264 = vmatpush1.xpose.msra.mxu0 0.0
  %3265 = vmatprep.subr.mxu0 0.0
  %3266 = vmatpush1.xpose.msra.mxu0 0.0
  %3267 = vmatprep.subr.mxu0 0.0
  %3268 = vmatpush1.xpose.msra.mxu0 0.0
  %3269 = vmatprep.subr.mxu0 0.0
  %3270 = vmatpush1.xpose.msra.mxu0 0.0
  %3271 = vmatprep.subr.mxu0 0.0
  %3272 = vmatpush1.xpose.msra.mxu0 0.0
  %3273 = vmatprep.subr.mxu0 0.0
  %3274 = vmatpush1.xpose.msra.mxu0 0.0
  %3275 = vmatprep.subr.mxu0 0.0
  %3276 = vmatpush1.xpose.msra.mxu0 0.0
  %3277 = vmatprep.subr.mxu0 0.0
  %3278 = vmatpush1.xpose.msra.mxu0 0.0
  %3279 = vmatprep.subr.mxu0 0.0
  %3280 = vmatpush1.xpose.msra.mxu0 0.0
  %3281 = vmatprep.subr.mxu0 0.0
  %3282 = vmatpush1.xpose.msra.mxu0 0.0
  %3283 = vmatprep.subr.mxu0 0.0
  %3284 = vmatpush1.xpose.msra.mxu0 0.0
  %3285 = vmatprep.subr.mxu0 0.0
  %3286 = vmatpush1.xpose.msra.mxu0 0.0
  %3287 = vmatprep.subr.mxu0 0.0
  %3288 = vmatpush1.xpose.msra.mxu0 0.0
  %3289 = vmatprep.subr.mxu0 0.0
  %3290 = vmatpush1.xpose.msra.mxu0 0.0
  %3291 = vmatprep.subr.mxu0 0.0
  %3292 = vmatpush1.xpose.msra.mxu0 0.0
  %3293 = vmatprep.subr.mxu0 0.0
  %3294 = vmatpush1.xpose.msra.mxu0 0.0
  %3295 = vmatprep.subr.mxu0 0.0
  %3296 = vmatpush1.xpose.msra.mxu0 0.0
  %3297 = vmatprep.subr.mxu0 0.0
  %3298 = vmatpush1.xpose.msra.mxu0 0.0
  %3299 = vmatprep.subr.mxu0 0.0
  %3300 = vmatpush1.xpose.msra.mxu0 0.0
  %3301 = vmatprep.subr.mxu0 0.0
  %3302 = vmatpush1.xpose.msra.mxu0 0.0
  %3303 = vmatprep.subr.mxu0 0.0
  %3304 = vmatpush1.xpose.msra.mxu0 0.0
  %3305 = vmatprep.mubr.f32.mxu0 0.0
  %3306 = vmatmul.mubr.f32.gmra.mrb[0].mxu0 %v3237
  %v3307 = vpop.f32.mrb[0].mxu0
  %v3308 = vadd.f32 0.0, %v3307
  %v3309 = vpop.f32.mrb[0].mxu0
  %3310 = vdwg.mxu0
  %3311 = vrot.lane.b32.xlu0 %v2080, 104
  %v3312 = vpop.permute.xlu0 %3311
  %3313 = vrot.lane.b32.xlu0 %v2164, 104
  %v3314 = vpop.permute.xlu0 %3313
  %v3315 = vsel %vm285, %v3312, 0
  %v3317 = vsel %vm285, %v3314, 0
  %3319 = vmatprep.subr.mxu0 0.0
  %3320 = vmatpush1.xpose.msra.mxu0 %v3317
  %3321 = vmatprep.subr.mxu0 0.0
  %3322 = vmatpush1.xpose.msra.mxu0 0.0
  %3323 = vmatprep.subr.mxu0 0.0
  %3324 = vmatpush1.xpose.msra.mxu0 0.0
  %3325 = vmatprep.subr.mxu0 0.0
  %3326 = vmatpush1.xpose.msra.mxu0 0.0
  %3327 = vmatprep.subr.mxu0 0.0
  %3328 = vmatpush1.xpose.msra.mxu0 0.0
  %3329 = vmatprep.subr.mxu0 0.0
  %3330 = vmatpush1.xpose.msra.mxu0 0.0
  %3331 = vmatprep.subr.mxu0 0.0
  %3332 = vmatpush1.xpose.msra.mxu0 0.0
  %3333 = vmatprep.subr.mxu0 0.0
  %3334 = vmatpush1.xpose.msra.mxu0 0.0
  %3335 = vmatprep.subr.mxu0 0.0
  %3336 = vmatpush1.xpose.msra.mxu0 0.0
  %3337 = vmatprep.subr.mxu0 0.0
  %3338 = vmatpush1.xpose.msra.mxu0 0.0
  %3339 = vmatprep.subr.mxu0 0.0
  %3340 = vmatpush1.xpose.msra.mxu0 0.0
  %3341 = vmatprep.subr.mxu0 0.0
  %3342 = vmatpush1.xpose.msra.mxu0 0.0
  %3343 = vmatprep.subr.mxu0 0.0
  %3344 = vmatpush1.xpose.msra.mxu0 0.0
  %3345 = vmatprep.subr.mxu0 0.0
  %3346 = vmatpush1.xpose.msra.mxu0 0.0
  %3347 = vmatprep.subr.mxu0 0.0
  %3348 = vmatpush1.xpose.msra.mxu0 0.0
  %3349 = vmatprep.subr.mxu0 0.0
  %3350 = vmatpush1.xpose.msra.mxu0 0.0
  %3351 = vmatprep.subr.mxu0 0.0
  %3352 = vmatpush1.xpose.msra.mxu0 0.0
  %3353 = vmatprep.subr.mxu0 0.0
  %3354 = vmatpush1.xpose.msra.mxu0 0.0
  %3355 = vmatprep.subr.mxu0 0.0
  %3356 = vmatpush1.xpose.msra.mxu0 0.0
  %3357 = vmatprep.subr.mxu0 0.0
  %3358 = vmatpush1.xpose.msra.mxu0 0.0
  %3359 = vmatprep.subr.mxu0 0.0
  %3360 = vmatpush1.xpose.msra.mxu0 0.0
  %3361 = vmatprep.subr.mxu0 0.0
  %3362 = vmatpush1.xpose.msra.mxu0 0.0
  %3363 = vmatprep.subr.mxu0 0.0
  %3364 = vmatpush1.xpose.msra.mxu0 0.0
  %3365 = vmatprep.subr.mxu0 0.0
  %3366 = vmatpush1.xpose.msra.mxu0 0.0
  %3367 = vmatprep.subr.mxu0 0.0
  %3368 = vmatpush1.xpose.msra.mxu0 0.0
  %3369 = vmatprep.subr.mxu0 0.0
  %3370 = vmatpush1.xpose.msra.mxu0 0.0
  %3371 = vmatprep.subr.mxu0 0.0
  %3372 = vmatpush1.xpose.msra.mxu0 0.0
  %3373 = vmatprep.subr.mxu0 0.0
  %3374 = vmatpush1.xpose.msra.mxu0 0.0
  %3375 = vmatprep.subr.mxu0 0.0
  %3376 = vmatpush1.xpose.msra.mxu0 0.0
  %3377 = vmatprep.subr.mxu0 0.0
  %3378 = vmatpush1.xpose.msra.mxu0 0.0
  %3379 = vmatprep.subr.mxu0 0.0
  %3380 = vmatpush1.xpose.msra.mxu0 0.0
  %3381 = vmatprep.subr.mxu0 0.0
  %3382 = vmatpush1.xpose.msra.mxu0 0.0
  %3383 = vmatprep.mubr.f32.mxu0 0.0
  %3384 = vmatmul.mubr.f32.gmra.mrb[0].mxu0 %v3315
  %v3385 = vpop.f32.mrb[0].mxu0
  %v3386 = vadd.f32 0.0, %v3385
  %v3387 = vpop.f32.mrb[0].mxu0
  %3388 = vdwg.mxu0
  %v3389 = vsel %vm285, %v3308, -inf
  %3390 = vmax.xlane.f32.xlu0 %v3389
  %v3391 = vpop.xlane.xlu0 %3390
  %v3392 = vsel %vm285, %v3386, -inf
  %3393 = vmax.xlane.f32.xlu0 %v3392
  %v3394 = vpop.xlane.xlu0 %3393
  %v3395 = vsub.f32 %v3308, %v3391
  %v3396 = vsub.f32 %v3386, %v3394
  %v3397 = vmul.f32 %v3395, 1.442695
  %v3398 = vpow.pop %v3397
  %v3399 = vmul.f32 %v3396, 1.442695
  %v3400 = vpow.pop %v3399
  %v3401 = vsel %vm285, %v3398, 0.0
  %3402 = vadd.xlane.f32.xlu0 %v3401
  %v3403 = vpop.xlane.xlu0 %3402
  %v3404 = vsel %vm285, %v3400, 0.0
  %3405 = vadd.xlane.f32.xlu0 %v3404
  %v3406 = vpop.xlane.xlu0 %3405
  %v3407 = vrcp.pop %v3403
  %v3408 = vmul.f32 %v3398, %v3407
  %v3409 = vrcp.pop %v3406
  %v3410 = vmul.f32 %v3400, %v3409
  %3411 = vrot.lane.b32.xlu0 %v2243, 104
  %v3412 = vpop.permute.xlu0 %3411
  %v3415 = vsel %vm285, %v3408, 0
  %3417 = vmatprep.subr.mxu0 0.0
  %3418 = vmatpush1.msra.mxu0 %v3412
  %3419 = vmatprep.subr.mxu0 0.0
  %3420 = vmatpush1.msra.mxu0 0.0
  %3421 = vmatprep.subr.mxu0 0.0
  %3422 = vmatpush1.msra.mxu0 0.0
  %3423 = vmatprep.subr.mxu0 0.0
  %3424 = vmatpush1.msra.mxu0 0.0
  %3425 = vmatprep.subr.mxu0 0.0
  %3426 = vmatpush1.msra.mxu0 0.0
  %3427 = vmatprep.subr.mxu0 0.0
  %3428 = vmatpush1.msra.mxu0 0.0
  %3429 = vmatprep.subr.mxu0 0.0
  %3430 = vmatpush1.msra.mxu0 0.0
  %3431 = vmatprep.subr.mxu0 0.0
  %3432 = vmatpush1.msra.mxu0 0.0
  %3433 = vmatprep.subr.mxu0 0.0
  %3434 = vmatpush1.msra.mxu0 0.0
  %3435 = vmatprep.subr.mxu0 0.0
  %3436 = vmatpush1.msra.mxu0 0.0
  %3437 = vmatprep.subr.mxu0 0.0
  %3438 = vmatpush1.msra.mxu0 0.0
  %3439 = vmatprep.subr.mxu0 0.0
  %3440 = vmatpush1.msra.mxu0 0.0
  %3441 = vmatprep.subr.mxu0 0.0
  %3442 = vmatpush1.msra.mxu0 0.0
  %3443 = vmatprep.subr.mxu0 0.0
  %3444 = vmatpush1.msra.mxu0 0.0
  %3445 = vmatprep.subr.mxu0 0.0
  %3446 = vmatpush1.msra.mxu0 0.0
  %3447 = vmatprep.subr.mxu0 0.0
  %3448 = vmatpush1.msra.mxu0 0.0
  %3449 = vmatprep.subr.mxu0 0.0
  %3450 = vmatpush1.msra.mxu0 0.0
  %3451 = vmatprep.subr.mxu0 0.0
  %3452 = vmatpush1.msra.mxu0 0.0
  %3453 = vmatprep.subr.mxu0 0.0
  %3454 = vmatpush1.msra.mxu0 0.0
  %3455 = vmatprep.subr.mxu0 0.0
  %3456 = vmatpush1.msra.mxu0 0.0
  %3457 = vmatprep.subr.mxu0 0.0
  %3458 = vmatpush1.msra.mxu0 0.0
  %3459 = vmatprep.subr.mxu0 0.0
  %3460 = vmatpush1.msra.mxu0 0.0
  %3461 = vmatprep.subr.mxu0 0.0
  %3462 = vmatpush1.msra.mxu0 0.0
  %3463 = vmatprep.subr.mxu0 0.0
  %3464 = vmatpush1.msra.mxu0 0.0
  %3465 = vmatprep.subr.mxu0 0.0
  %3466 = vmatpush1.msra.mxu0 0.0
  %3467 = vmatprep.subr.mxu0 0.0
  %3468 = vmatpush1.msra.mxu0 0.0
  %3469 = vmatprep.subr.mxu0 0.0
  %3470 = vmatpush1.msra.mxu0 0.0
  %3471 = vmatprep.subr.mxu0 0.0
  %3472 = vmatpush1.msra.mxu0 0.0
  %3473 = vmatprep.subr.mxu0 0.0
  %3474 = vmatpush1.msra.mxu0 0.0
  %3475 = vmatprep.subr.mxu0 0.0
  %3476 = vmatpush1.msra.mxu0 0.0
  %3477 = vmatprep.subr.mxu0 0.0
  %3478 = vmatpush1.msra.mxu0 0.0
  %3479 = vmatprep.subr.mxu0 0.0
  %3480 = vmatpush1.msra.mxu0 0.0
  %3481 = vmatprep.mubr.f32.mxu0 0.0
  %3482 = vmatmul.mubr.f32.gmra.mrb[0].mxu0 %v3415
  %v3483 = vpop.f32.mrb[0].mxu0
  %v3484 = vadd.f32 0.0, %v3483
  %v3485 = vpop.f32.mrb[0].mxu0
  %3486 = vdwg.mxu0
  %3487 = vrot.lane.b32.xlu0 %v2248, 104
  %v3488 = vpop.permute.xlu0 %3487
  %v3491 = vsel %vm285, %v3410, 0
  %3493 = vmatprep.subr.mxu0 0.0
  %3494 = vmatpush1.msra.mxu0 %v3488
  %3495 = vmatprep.subr.mxu0 0.0
  %3496 = vmatpush1.msra.mxu0 0.0
  %3497 = vmatprep.subr.mxu0 0.0
  %3498 = vmatpush1.msra.mxu0 0.0
  %3499 = vmatprep.subr.mxu0 0.0
  %3500 = vmatpush1.msra.mxu0 0.0
  %3501 = vmatprep.subr.mxu0 0.0
  %3502 = vmatpush1.msra.mxu0 0.0
  %3503 = vmatprep.subr.mxu0 0.0
  %3504 = vmatpush1.msra.mxu0 0.0
  %3505 = vmatprep.subr.mxu0 0.0
  %3506 = vmatpush1.msra.mxu0 0.0
  %3507 = vmatprep.subr.mxu0 0.0
  %3508 = vmatpush1.msra.mxu0 0.0
  %3509 = vmatprep.subr.mxu0 0.0
  %3510 = vmatpush1.msra.mxu0 0.0
  %3511 = vmatprep.subr.mxu0 0.0
  %3512 = vmatpush1.msra.mxu0 0.0
  %3513 = vmatprep.subr.mxu0 0.0
  %3514 = vmatpush1.msra.mxu0 0.0
  %3515 = vmatprep.subr.mxu0 0.0
  %3516 = vmatpush1.msra.mxu0 0.0
  %3517 = vmatprep.subr.mxu0 0.0
  %3518 = vmatpush1.msra.mxu0 0.0
  %3519 = vmatprep.subr.mxu0 0.0
  %3520 = vmatpush1.msra.mxu0 0.0
  %3521 = vmatprep.subr.mxu0 0.0
  %3522 = vmatpush1.msra.mxu0 0.0
  %3523 = vmatprep.subr.mxu0 0.0
  %3524 = vmatpush1.msra.mxu0 0.0
  %3525 = vmatprep.subr.mxu0 0.0
  %3526 = vmatpush1.msra.mxu0 0.0
  %3527 = vmatprep.subr.mxu0 0.0
  %3528 = vmatpush1.msra.mxu0 0.0
  %3529 = vmatprep.subr.mxu0 0.0
  %3530 = vmatpush1.msra.mxu0 0.0
  %3531 = vmatprep.subr.mxu0 0.0
  %3532 = vmatpush1.msra.mxu0 0.0
  %3533 = vmatprep.subr.mxu0 0.0
  %3534 = vmatpush1.msra.mxu0 0.0
  %3535 = vmatprep.subr.mxu0 0.0
  %3536 = vmatpush1.msra.mxu0 0.0
  %3537 = vmatprep.subr.mxu0 0.0
  %3538 = vmatpush1.msra.mxu0 0.0
  %3539 = vmatprep.subr.mxu0 0.0
  %3540 = vmatpush1.msra.mxu0 0.0
  %3541 = vmatprep.subr.mxu0 0.0
  %3542 = vmatpush1.msra.mxu0 0.0
  %3543 = vmatprep.subr.mxu0 0.0
  %3544 = vmatpush1.msra.mxu0 0.0
  %3545 = vmatprep.subr.mxu0 0.0
  %3546 = vmatpush1.msra.mxu0 0.0
  %3547 = vmatprep.subr.mxu0 0.0
  %3548 = vmatpush1.msra.mxu0 0.0
  %3549 = vmatprep.subr.mxu0 0.0
  %3550 = vmatpush1.msra.mxu0 0.0
  %3551 = vmatprep.subr.mxu0 0.0
  %3552 = vmatpush1.msra.mxu0 0.0
  %3553 = vmatprep.subr.mxu0 0.0
  %3554 = vmatpush1.msra.mxu0 0.0
  %3555 = vmatprep.subr.mxu0 0.0
  %3556 = vmatpush1.msra.mxu0 0.0
  %3557 = vmatprep.mubr.f32.mxu0 0.0
  %3558 = vmatmul.mubr.f32.gmra.mrb[0].mxu0 %v3491
  %v3559 = vpop.f32.mrb[0].mxu0
  %v3560 = vadd.f32 0.0, %v3559
  %v3561 = vpop.f32.mrb[0].mxu0
  %3562 = vdwg.mxu0
  %3565 = vrot.lane.b32.xlu0 %v2823, 8
  %v3566 = vpop.permute.xlu0 %3565
  %3567 = vrot.lane.b32.xlu0 %v2900, 8
  %v3568 = vpop.permute.xlu0 %3567
  %3573 = vrot.lane.b32.xlu0 %v3154, 16
  %v3574 = vpop.permute.xlu0 %3573
  %3575 = vrot.lane.b32.xlu0 %v3230, 16
  %v3576 = vpop.permute.xlu0 %3575
  %3581 = vrot.lane.b32.xlu0 %v3484, 24
  %v3582 = vpop.permute.xlu0 %3581
  %3583 = vrot.lane.b32.xlu0 %v3560, 24
  %v3584 = vpop.permute.xlu0 %3583
  %v3587 = vsel %vm285, %v2495, %v3566
  %v3588 = vsel %vm285, %v2568, %v3568
  %v3589 = vsel %vm1624, %v3587, %v3574
  %v3590 = vsel %vm1624, %v3588, %v3576
  %v3591 = vsel %vm1627, %v3589, %v3582
  %v3592 = vsel %vm1627, %v3590, %v3584
  %s3593 = scalar_lea.vmem %s1, 224
  %v3594 = vld [vmem:[%s3593] sm:$0xff]
  %v3595 = vld [vmem:[%s3593 + $0x8] sm:$0xff]
  %v3596 = vld [vmem:[%s3593 + $0x10] sm:$0xff]
  %v3597 = vld [vmem:[%s3593 + $0x18] sm:$0xff]
  %v3598 = vlaneseq
  %v3599 = vshrl.u32 %v3598, 7
  %v3600 = vsub.s32 3, %v3599
  %v3601 = vrot.slane %v1991, %v3600
  %v3603 = vsel %vm35, %v3591, 0
  %v3606 = vsel %vm35, %v3592, 0
  %3608 = vmatprep.subr.mxu0 0.0
  %3609 = vmatpush1.msra.mxu0 %v3594
  %3610 = vmatprep.subr.mxu0 0.0
  %3611 = vmatpush1.msra.mxu0 %v3595
  %3612 = vmatprep.subr.mxu0 0.0
  %3613 = vmatpush1.msra.mxu0 %v3596
  %3614 = vmatprep.subr.mxu0 0.0
  %3615 = vmatpush1.msra.mxu0 %v3597
  %3616 = vmatprep.subr.mxu0 0.0
  %3617 = vmatpush1.msra.mxu0 0.0
  %3618 = vmatprep.subr.mxu0 0.0
  %3619 = vmatpush1.msra.mxu0 0.0
  %3620 = vmatprep.subr.mxu0 0.0
  %3621 = vmatpush1.msra.mxu0 0.0
  %3622 = vmatprep.subr.mxu0 0.0
  %3623 = vmatpush1.msra.mxu0 0.0
  %3624 = vmatprep.subr.mxu0 0.0
  %3625 = vmatpush1.msra.mxu0 0.0
  %3626 = vmatprep.subr.mxu0 0.0
  %3627 = vmatpush1.msra.mxu0 0.0
  %3628 = vmatprep.subr.mxu0 0.0
  %3629 = vmatpush1.msra.mxu0 0.0
  %3630 = vmatprep.subr.mxu0 0.0
  %3631 = vmatpush1.msra.mxu0 0.0
  %3632 = vmatprep.subr.mxu0 0.0
  %3633 = vmatpush1.msra.mxu0 0.0
  %3634 = vmatprep.subr.mxu0 0.0
  %3635 = vmatpush1.msra.mxu0 0.0
  %3636 = vmatprep.subr.mxu0 0.0
  %3637 = vmatpush1.msra.mxu0 0.0
  %3638 = vmatprep.subr.mxu0 0.0
  %3639 = vmatpush1.msra.mxu0 0.0
  %3640 = vmatprep.subr.mxu0 0.0
  %3641 = vmatpush1.msra.mxu0 0.0
  %3642 = vmatprep.subr.mxu0 0.0
  %3643 = vmatpush1.msra.mxu0 0.0
  %3644 = vmatprep.subr.mxu0 0.0
  %3645 = vmatpush1.msra.mxu0 0.0
  %3646 = vmatprep.subr.mxu0 0.0
  %3647 = vmatpush1.msra.mxu0 0.0
  %3648 = vmatprep.subr.mxu0 0.0
  %3649 = vmatpush1.msra.mxu0 0.0
  %3650 = vmatprep.subr.mxu0 0.0
  %3651 = vmatpush1.msra.mxu0 0.0
  %3652 = vmatprep.subr.mxu0 0.0
  %3653 = vmatpush1.msra.mxu0 0.0
  %3654 = vmatprep.subr.mxu0 0.0
  %3655 = vmatpush1.msra.mxu0 0.0
  %3656 = vmatprep.subr.mxu0 0.0
  %3657 = vmatpush1.msra.mxu0 0.0
  %3658 = vmatprep.subr.mxu0 0.0
  %3659 = vmatpush1.msra.mxu0 0.0
  %3660 = vmatprep.subr.mxu0 0.0
  %3661 = vmatpush1.msra.mxu0 0.0
  %3662 = vmatprep.subr.mxu0 0.0
  %3663 = vmatpush1.msra.mxu0 0.0
  %3664 = vmatprep.subr.mxu0 0.0
  %3665 = vmatpush1.msra.mxu0 0.0
  %3666 = vmatprep.subr.mxu0 0.0
  %3667 = vmatpush1.msra.mxu0 0.0
  %3668 = vmatprep.subr.mxu0 0.0
  %3669 = vmatpush1.msra.mxu0 0.0
  %3670 = vmatprep.subr.mxu0 0.0
  %3671 = vmatpush1.msra.mxu0 0.0
  %3672 = vmatprep.mubr.f32.mxu0 0.0
  %3673 = vmatmul.mubr.f32.gmra.mrb[0].mxu0 %v3603
  %v3674 = vpop.f32.mrb[0].mxu0
  %v3675 = vadd.f32 %v3601, %v3674
  %v3676 = vpop.f32.mrb[0].mxu0
  %3677 = vmatprep.mubr.f32.mxu0 0.0
  %3678 = vmatmul.mubr.f32.gmra.mrb[0].mxu0 %v3606
  %v3679 = vpop.f32.mrb[0].mxu0
  %v3680 = vadd.f32 %v3601, %v3679
  %v3681 = vpop.f32.mrb[0].mxu0
  %3682 = vdwg.mxu0
  %v3683 = vadd.f32 %v1988, %v3675
  %v3684 = vadd.f32 %v1989, %v3680
  %v3685 = vsel %vm35, %v3683, 0.0
  %3686 = vadd.xlane.f32.xlu0 %v3685
  %v3687 = vpop.xlane.xlu0 %3686
  %v3688 = vsel %vm35, %v3684, 0.0
  %3689 = vadd.xlane.f32.xlu0 %v3688
  %v3690 = vpop.xlane.xlu0 %3689
  %v3691 = vmul.f32 %v3687, %v1728
  %v3692 = vmul.f32 %v3690, %v1728
  %v3693 = vsub.f32 %v3683, %v3691
  %v3694 = vsub.f32 %v3684, %v3692
  %v3695 = vmul.f32 %v3693, %v3693
  %v3696 = vmul.f32 %v3694, %v3694
  %v3697 = vsel %vm35, %v3695, 0.0
  %3698 = vadd.xlane.f32.xlu0 %v3697
  %v3699 = vpop.xlane.xlu0 %3698
  %v3700 = vsel %vm35, %v3696, 0.0
  %3701 = vadd.xlane.f32.xlu0 %v3700
  %v3702 = vpop.xlane.xlu0 %3701
  %v3703 = vmul.f32 %v3699, %v1728
  %v3704 = vmul.f32 %v3702, %v1728
  %v3705 = vadd.f32 %v3703, 1e-05
  %v3706 = vadd.f32 %v3704, 1e-05
  %v3707 = vrsqrt.pop %v3705
  %v3708 = vrsqrt.pop %v3706
  %v3709 = vmul.f32 %v3693, %v3707
  %v3710 = vmul.f32 %v3694, %v3708
  %v3711 = vlaneseq
  %v3712 = vshrl.u32 %v3711, 7
  %v3713 = vsub.s32 4, %v3712
  %v3714 = vrot.slane %v1991, %v3713
  %v3715 = vmul.f32 %v3709, %v3714
  %v3716 = vmul.f32 %v3710, %v3714
  %v3717 = vlaneseq
  %v3718 = vshrl.u32 %v3717, 7
  %v3719 = vsub.s32 5, %v3718
  %v3720 = vrot.slane %v1991, %v3719
  %v3721 = vadd.f32 %v3715, %v3720
  %v3722 = vadd.f32 %v3716, %v3720
  %s3723 = scalar_lea.vmem %s2, 32
  %v3724 = vld [vmem:[%s3723] sm:$0xff]
  %v3725 = vld [vmem:[%s3723 + $0x8] sm:$0xff]
  %v3726 = vld [vmem:[%s3723 + $0x10] sm:$0xff]
  %v3727 = vld [vmem:[%s3723 + $0x18] sm:$0xff]
  %s3728 = scalar_lea.vmem %s5, 1
  %v3729 = vld [vmem:[%s3728] sm:$0x1]
  %v3731 = vlaneseq
  %v3732 = vshrl.u32 %v3731, 7
  %v3733 = vsub.s32 0, %v3732
  %v3734 = vrot.slane %v3729, %v3733
  %v3737 = vsel %vm35, %v3721, 0
  %v3740 = vsel %vm35, %v3722, 0
  %3742 = vmatprep.subr.mxu0 0.0
  %3743 = vmatpush1.msra.mxu0 %v3724
  %3744 = vmatprep.subr.mxu0 0.0
  %3745 = vmatpush1.msra.mxu0 %v3725
  %3746 = vmatprep.subr.mxu0 0.0
  %3747 = vmatpush1.msra.mxu0 %v3726
  %3748 = vmatprep.subr.mxu0 0.0
  %3749 = vmatpush1.msra.mxu0 %v3727
  %3750 = vmatprep.subr.mxu0 0.0
  %3751 = vmatpush1.msra.mxu0 0.0
  %3752 = vmatprep.subr.mxu0 0.0
  %3753 = vmatpush1.msra.mxu0 0.0
  %3754 = vmatprep.subr.mxu0 0.0
  %3755 = vmatpush1.msra.mxu0 0.0
  %3756 = vmatprep.subr.mxu0 0.0
  %3757 = vmatpush1.msra.mxu0 0.0
  %3758 = vmatprep.subr.mxu0 0.0
  %3759 = vmatpush1.msra.mxu0 0.0
  %3760 = vmatprep.subr.mxu0 0.0
  %3761 = vmatpush1.msra.mxu0 0.0
  %3762 = vmatprep.subr.mxu0 0.0
  %3763 = vmatpush1.msra.mxu0 0.0
  %3764 = vmatprep.subr.mxu0 0.0
  %3765 = vmatpush1.msra.mxu0 0.0
  %3766 = vmatprep.subr.mxu0 0.0
  %3767 = vmatpush1.msra.mxu0 0.0
  %3768 = vmatprep.subr.mxu0 0.0
  %3769 = vmatpush1.msra.mxu0 0.0
  %3770 = vmatprep.subr.mxu0 0.0
  %3771 = vmatpush1.msra.mxu0 0.0
  %3772 = vmatprep.subr.mxu0 0.0
  %3773 = vmatpush1.msra.mxu0 0.0
  %3774 = vmatprep.subr.mxu0 0.0
  %3775 = vmatpush1.msra.mxu0 0.0
  %3776 = vmatprep.subr.mxu0 0.0
  %3777 = vmatpush1.msra.mxu0 0.0
  %3778 = vmatprep.subr.mxu0 0.0
  %3779 = vmatpush1.msra.mxu0 0.0
  %3780 = vmatprep.subr.mxu0 0.0
  %3781 = vmatpush1.msra.mxu0 0.0
  %3782 = vmatprep.subr.mxu0 0.0
  %3783 = vmatpush1.msra.mxu0 0.0
  %3784 = vmatprep.subr.mxu0 0.0
  %3785 = vmatpush1.msra.mxu0 0.0
  %3786 = vmatprep.subr.mxu0 0.0
  %3787 = vmatpush1.msra.mxu0 0.0
  %3788 = vmatprep.subr.mxu0 0.0
  %3789 = vmatpush1.msra.mxu0 0.0
  %3790 = vmatprep.subr.mxu0 0.0
  %3791 = vmatpush1.msra.mxu0 0.0
  %3792 = vmatprep.subr.mxu0 0.0
  %3793 = vmatpush1.msra.mxu0 0.0
  %3794 = vmatprep.subr.mxu0 0.0
  %3795 = vmatpush1.msra.mxu0 0.0
  %3796 = vmatprep.subr.mxu0 0.0
  %3797 = vmatpush1.msra.mxu0 0.0
  %3798 = vmatprep.subr.mxu0 0.0
  %3799 = vmatpush1.msra.mxu0 0.0
  %3800 = vmatprep.subr.mxu0 0.0
  %3801 = vmatpush1.msra.mxu0 0.0
  %3802 = vmatprep.subr.mxu0 0.0
  %3803 = vmatpush1.msra.mxu0 0.0
  %3804 = vmatprep.subr.mxu0 0.0
  %3805 = vmatpush1.msra.mxu0 0.0
  %3806 = vmatprep.mubr.f32.mxu0 0.0
  %3807 = vmatmul.mubr.f32.gmra.mrb[0].mxu0 %v3737
  %v3808 = vpop.f32.mrb[0].mxu0
  %v3809 = vadd.f32 %v3734, %v3808
  %v3810 = vpop.f32.mrb[0].mxu0
  %3811 = vmatprep.mubr.f32.mxu0 0.0
  %3812 = vmatmul.mubr.f32.gmra.mrb[0].mxu0 %v3740
  %v3813 = vpop.f32.mrb[0].mxu0
  %v3814 = vadd.f32 %v3734, %v3813
  %v3815 = vpop.f32.mrb[0].mxu0
  %3816 = vdwg.mxu0
  %v3817 = vmax.f32 %v3809, 0.0
  %v3818 = vmax.f32 %v3814, 0.0
  %s3819 = scalar_lea.vmem %s3, 128
  %v3820 = vld [vmem:[%s3819] sm:$0xff]
  %v3821 = vld [vmem:[%s3819 + $0x8] sm:$0xff]
  %v3822 = vld [vmem:[%s3819 + $0x10] sm:$0xff]
  %v3823 = vld [vmem:[%s3819 + $0x18] sm:$0xff]
  %v3824 = vld [vmem:[%s3819 + $0x20] sm:$0xff]
  %v3825 = vld [vmem:[%s3819 + $0x28] sm:$0xff]
  %v3826 = vld [vmem:[%s3819 + $0x30] sm:$0xff]
  %v3827 = vld [vmem:[%s3819 + $0x38] sm:$0xff]
  %v3828 = vld [vmem:[%s3819 + $0x40] sm:$0xff]
  %v3829 = vld [vmem:[%s3819 + $0x48] sm:$0xff]
  %v3830 = vld [vmem:[%s3819 + $0x50] sm:$0xff]
  %v3831 = vld [vmem:[%s3819 + $0x58] sm:$0xff]
  %v3832 = vld [vmem:[%s3819 + $0x60] sm:$0xff]
  %v3833 = vld [vmem:[%s3819 + $0x68] sm:$0xff]
  %v3834 = vld [vmem:[%s3819 + $0x70] sm:$0xff]
  %v3835 = vld [vmem:[%s3819 + $0x78] sm:$0xff]
  %v3836 = vlaneseq
  %v3837 = vshrl.u32 %v3836, 7
  %v3838 = vsub.s32 6, %v3837
  %v3839 = vrot.slane %v1991, %v3838
  %3840 = vmatprep.subr.mxu0 0.0
  %3841 = vmatpush1.msra.mxu0 %v3820
  %3842 = vmatprep.subr.mxu0 0.0
  %3843 = vmatpush1.msra.mxu0 %v3821
  %3844 = vmatprep.subr.mxu0 0.0
  %3845 = vmatpush1.msra.mxu0 %v3822
  %3846 = vmatprep.subr.mxu0 0.0
  %3847 = vmatpush1.msra.mxu0 %v3823
  %3848 = vmatprep.subr.mxu0 0.0
  %3849 = vmatpush1.msra.mxu0 %v3824
  %3850 = vmatprep.subr.mxu0 0.0
  %3851 = vmatpush1.msra.mxu0 %v3825
  %3852 = vmatprep.subr.mxu0 0.0
  %3853 = vmatpush1.msra.mxu0 %v3826
  %3854 = vmatprep.subr.mxu0 0.0
  %3855 = vmatpush1.msra.mxu0 %v3827
  %3856 = vmatprep.subr.mxu0 0.0
  %3857 = vmatpush1.msra.mxu0 %v3828
  %3858 = vmatprep.subr.mxu0 0.0
  %3859 = vmatpush1.msra.mxu0 %v3829
  %3860 = vmatprep.subr.mxu0 0.0
  %3861 = vmatpush1.msra.mxu0 %v3830
  %3862 = vmatprep.subr.mxu0 0.0
  %3863 = vmatpush1.msra.mxu0 %v3831
  %3864 = vmatprep.subr.mxu0 0.0
  %3865 = vmatpush1.msra.mxu0 %v3832
  %3866 = vmatprep.subr.mxu0 0.0
  %3867 = vmatpush1.msra.mxu0 %v3833
  %3868 = vmatprep.subr.mxu0 0.0
  %3869 = vmatpush1.msra.mxu0 %v3834
  %3870 = vmatprep.subr.mxu0 0.0
  %3871 = vmatpush1.msra.mxu0 %v3835
  %3872 = vmatprep.subr.mxu0 0.0
  %3873 = vmatpush1.msra.mxu0 0.0
  %3874 = vmatprep.subr.mxu0 0.0
  %3875 = vmatpush1.msra.mxu0 0.0
  %3876 = vmatprep.subr.mxu0 0.0
  %3877 = vmatpush1.msra.mxu0 0.0
  %3878 = vmatprep.subr.mxu0 0.0
  %3879 = vmatpush1.msra.mxu0 0.0
  %3880 = vmatprep.subr.mxu0 0.0
  %3881 = vmatpush1.msra.mxu0 0.0
  %3882 = vmatprep.subr.mxu0 0.0
  %3883 = vmatpush1.msra.mxu0 0.0
  %3884 = vmatprep.subr.mxu0 0.0
  %3885 = vmatpush1.msra.mxu0 0.0
  %3886 = vmatprep.subr.mxu0 0.0
  %3887 = vmatpush1.msra.mxu0 0.0
  %3888 = vmatprep.subr.mxu0 0.0
  %3889 = vmatpush1.msra.mxu0 0.0
  %3890 = vmatprep.subr.mxu0 0.0
  %3891 = vmatpush1.msra.mxu0 0.0
  %3892 = vmatprep.subr.mxu0 0.0
  %3893 = vmatpush1.msra.mxu0 0.0
  %3894 = vmatprep.subr.mxu0 0.0
  %3895 = vmatpush1.msra.mxu0 0.0
  %3896 = vmatprep.subr.mxu0 0.0
  %3897 = vmatpush1.msra.mxu0 0.0
  %3898 = vmatprep.subr.mxu0 0.0
  %3899 = vmatpush1.msra.mxu0 0.0
  %3900 = vmatprep.subr.mxu0 0.0
  %3901 = vmatpush1.msra.mxu0 0.0
  %3902 = vmatprep.subr.mxu0 0.0
  %3903 = vmatpush1.msra.mxu0 0.0
  %3904 = vmatprep.mubr.f32.mxu0 0.0
  %3905 = vmatmul.mubr.f32.gmra.mrb[0].mxu0 %v3817
  %v3906 = vpop.f32.mrb[0].mxu0
  %v3907 = vadd.f32 %v3839, %v3906
  %v3908 = vpop.f32.mrb[0].mxu0
  %3909 = vmatprep.mubr.f32.mxu0 0.0
  %3910 = vmatmul.mubr.f32.gmra.mrb[0].mxu0 %v3818
  %v3911 = vpop.f32.mrb[0].mxu0
  %v3912 = vadd.f32 %v3839, %v3911
  %v3913 = vpop.f32.mrb[0].mxu0
  %3914 = vdwg.mxu0
  %v3915 = vadd.f32 %v3721, %v3907
  %v3916 = vadd.f32 %v3722, %v3912
  %v3917 = vsel %vm35, %v3915, 0.0
  %3918 = vadd.xlane.f32.xlu0 %v3917
  %v3919 = vpop.xlane.xlu0 %3918
  %v3920 = vsel %vm35, %v3916, 0.0
  %3921 = vadd.xlane.f32.xlu0 %v3920
  %v3922 = vpop.xlane.xlu0 %3921
  %v3923 = vmul.f32 %v3919, %v1728
  %v3924 = vmul.f32 %v3922, %v1728
  %v3925 = vsub.f32 %v3915, %v3923
  %v3926 = vsub.f32 %v3916, %v3924
  %v3927 = vmul.f32 %v3925, %v3925
  %v3928 = vmul.f32 %v3926, %v3926
  %v3929 = vsel %vm35, %v3927, 0.0
  %3930 = vadd.xlane.f32.xlu0 %v3929
  %v3931 = vpop.xlane.xlu0 %3930
  %v3932 = vsel %vm35, %v3928, 0.0
  %3933 = vadd.xlane.f32.xlu0 %v3932
  %v3934 = vpop.xlane.xlu0 %3933
  %v3935 = vmul.f32 %v3931, %v1728
  %v3936 = vmul.f32 %v3934, %v1728
  %v3937 = vadd.f32 %v3935, 1e-05
  %v3938 = vadd.f32 %v3936, 1e-05
  %v3939 = vrsqrt.pop %v3937
  %v3940 = vrsqrt.pop %v3938
  %v3941 = vmul.f32 %v3925, %v3939
  %v3942 = vmul.f32 %v3926, %v3940
  %v3943 = vlaneseq
  %v3944 = vshrl.u32 %v3943, 7
  %v3945 = vsub.s32 7, %v3944
  %v3946 = vrot.slane %v1991, %v3945
  %v3947 = vmul.f32 %v3941, %v3946
  %v3948 = vmul.f32 %v3942, %v3946
  %v3949 = vlaneseq
  %v3950 = vshrl.u32 %v3949, 7
  %v3951 = vsub.s32 0, %v3950
  %v3952 = vrot.slane %v1992, %v3951
  %v3953 = vadd.f32 %v3947, %v3952
  %v3954 = vadd.f32 %v3948, %v3952
  %3955 = vst.msk [vmem:[%s6] sm:$0xff] %vm35, %v3953
  %3956 = vst.msk [vmem:[%s6 + $0x8] sm:$0xff] %vm35, %v3954
  // Predicated region
  $region26: #{transformer_encoder.1} parent=0 // pred_check
    _
  $region27: #{transformer_encoder.1} parent=0 // pred_check_branch
    %3958 = sbr.rel (0) target = $region29
  $region28: #{transformer_encoder.1} parent=0 // pred_region
    _
  $region29: #{transformer_encoder.1} parent=0 // pred_fallthru
    _
  // Predicated region
  $region30: #{transformer_encoder.1} parent=0 // pred_check
    _
  $region31: #{transformer_encoder.1} parent=0 // pred_check_branch
    %3960 = sbr.rel (0) target = $region33
  $region32: #{transformer_encoder.1} parent=0 // pred_region
    _
  $region33: #{transformer_encoder.1} parent=0 // pred_fallthru
    _

</llo_original>
